<compile_context>
chip_gen: v6e
topology: v6e:2x2x1
jax: 0.10.0
libtpu: 0.0.40
codegen_flags: <defaults>
</compile_context>

<pallas_src>
import numpy as np
import jax
import jax.numpy as jnp
from jax.experimental import pallas as pl
from jax.experimental.pallas import tpu as pltpu

# ---- small synthetic config (scaled down from n_fft=510, hop=128, frames=256) ----
N_FFT = 30
HOP = 8
NUM_FRAMES = 16
SPEC_FACTOR = 0.15
SPEC_ABS_EXPONENT = 0.5
TARGET_LEN = (NUM_FRAMES - 1) * HOP                     # 120
F_BINS = N_FFT // 2 + 1                                 # 16 onesided rfft bins
FRAME_PAD = HOP * ((N_FFT + HOP - 1) // HOP)            # 32 (frame padded to hop multiple)
CHUNKS_PER_FRAME = FRAME_PAD // HOP                     # 4
NCHUNK = NUM_FRAMES - 1 + CHUNKS_PER_FRAME              # 19 hop-chunks per signal
OUT_LEN = NCHUNK * HOP                                  # 152 (lane-dense output row)
HIDDEN = 8
BATCH = 2
BT = BATCH * NUM_FRAMES                                 # 32 stacked spec rows

# spec_back post-warp amplitude (1/factor)^(1/e); folded into the `ola` constant.
BACK_AMP = float((1.0 / SPEC_FACTOR) ** (1.0 / SPEC_ABS_EXPONENT))


# ----------------------------- in-kernel helpers ----------------------------------
def _warp_scale(re, im, exponent):
    """Per-element scale s.t. (re,im)*scale == |z|^exponent * exp(i*angle(z))."""
    if exponent == 1.0:
        return jnp.ones_like(re)
    mag2 = re * re + im * im
    nz = mag2 > 0.0
    safe = jnp.where(nz, mag2, 1.0)
    if exponent == 0.5:                       # |z|^(-1/2): sqrt + rsqrt (EUP only)
        s = jax.lax.rsqrt(jnp.sqrt(safe))
    elif exponent == 2.0:                     # |z|^(+1)
        s = jnp.sqrt(safe)
    else:                                     # general fallback
        s = jnp.exp((exponent - 1.0) * 0.5 * jnp.log(safe))
    return jnp.where(nz, s, 0.0)


# ----------------------------- the single fused kernel ----------------------------
def ncsnpp_fused_kernel(chunks_ref, fsel_ref, wdft_ref, tshift_ref,
                        w1_ref, b1_ref, w2_ref, b2_ref,
                        osel_ref, ola_ref, out_ref):
    f32 = jnp.float32

    # ---- STFT + spec_fwd: framing + Hann window folded into matmul constants ----
    chunks = chunks_ref[...]                                            # (B*NCHUNK, HOP)
    spec = jnp.zeros((BT, 2 * F_BINS), f32)
    for j in range(CHUNKS_PER_FRAME):                                   # 4 accumulated dots
        rows = jnp.dot(fsel_ref[j], chunks, preferred_element_type=f32)  # frame rows (BT, HOP)
        spec = spec + jnp.dot(rows, wdft_ref[j], preferred_element_type=f32)  # (BT, 2F)
    re = spec[:, :F_BINS]
    im = spec[:, F_BINS:]
    s = _warp_scale(re, im, SPEC_ABS_EXPONENT) * SPEC_FACTOR
    x = jnp.concatenate([re * s, im * s], axis=1)                       # (BT, 2F)

    # ---- stand-in net: conv3x3(2->H) + SiLU + conv3x3(H->2), all on the MXU ------
    def band_conv(xin, wband_ref, brow_ref):
        acc = jnp.dot(xin, wband_ref[1], preferred_element_type=f32)    # centre frame tap
        for idx, kh in ((0, 0), (1, 2)):                                # -1 / +1 frame taps
            xs = jnp.dot(tshift_ref[idx], xin, preferred_element_type=f32)
            acc = acc + jnp.dot(xs, wband_ref[kh], preferred_element_type=f32)
        return acc + brow_ref[...]

    h = band_conv(x, w1_ref, b1_ref)                                    # (BT, F*HIDDEN)=(32,128)
    h = h * pl.reciprocal(1.0 + jnp.exp(-h), approx=True)               # SiLU (EUP recip)
    o = band_conv(h, w2_ref, b2_ref)                                    # (BT, 2F)

    # ---- spec_back + iSTFT + overlap-add + 1/win^2 norm (all folded into `ola`) ---
    re = o[:, :F_BINS]
    im = o[:, F_BINS:]
    s = _warp_scale(re, im, 1.0 / SPEC_ABS_EXPONENT)                    # (1/factor)^(1/e) in ola
    warped = jnp.concatenate([re * s, im * s], axis=1)                  # (BT, 2F)

    out = jnp.zeros((BATCH, OUT_LEN), f32)
    for t in range(NUM_FRAMES):
        rows = jnp.dot(osel_ref[t], warped, preferred_element_type=f32)  # (B, 2F) frame-t rows
        out = out + jnp.dot(rows, ola_ref[t], preferred_element_type=f32)  # (B, OUT_LEN)
    out_ref[...] = out                                                  # lane-dense store


# ----------------------------- pallas_call wrapper --------------------------------
def _full_spec(shape):
    nd = len(shape)
    return pl.BlockSpec(shape, lambda i, _n=nd: (0,) * _n)


def ncsnpp_fused(chunks2d, c):
    args = (chunks2d, c["fsel"], c["wdft"], c["tshift"], c["w1band"], c["b1row"],
            c["w2band"], c["b2row"], c["osel"], c["ola"])
    return pl.pallas_call(
        ncsnpp_fused_kernel,
        grid=(1,),                      # one fused step; at production sizes tile frames
        in_specs=[_full_spec(a.shape) for a in args],
        out_specs=_full_spec((BATCH, OUT_LEN)),
        out_shape=jax.ShapeDtypeStruct((BATCH, OUT_LEN), jnp.float32),
        compiler_params=pltpu.CompilerParams(dimension_semantics=("arbitrary",)),
    )(*args)


# ----------------------------- host-side constant setup ---------------------------
def make_consts(w1, b1, w2, b2):
    w1 = np.asarray(w1, np.float64)                       # (HIDDEN, 2, 3, 3)
    w2 = np.asarray(w2, np.float64)                       # (2, HIDDEN, 3, 3)
    b1 = np.asarray(b1, np.float64)
    b2 = np.asarray(b2, np.float64)

    win = 0.5 * (1.0 - np.cos(2.0 * np.pi * np.arange(N_FFT) / N_FFT))   # hann, periodic

    # forward windowed rDFT, padded to FRAME_PAD rows (zeros), split per hop-chunk
    n = np.arange(N_FFT, dtype=np.float64)[:, None]
    k = np.arange(F_BINS, dtype=np.float64)[None, :]
    ang = 2.0 * np.pi * n * k / N_FFT
    wdft = win[:, None] * np.concatenate([np.cos(ang), -np.sin(ang)], axis=1)  # (N_FFT, 2F)
    wdft = np.concatenate([wdft, np.zeros((FRAME_PAD - N_FFT, 2 * F_BINS))], axis=0)
    wdft = wdft.reshape(CHUNKS_PER_FRAME, HOP, 2 * F_BINS)

    # framing as a matmul: fsel[j, b*T + t, b*NCHUNK + t + j] = 1  (batch block-diag)
    fsel = np.zeros((CHUNKS_PER_FRAME, BT, BATCH * NCHUNK), np.float32)
    for j in range(CHUNKS_PER_FRAME):
        for b in range(BATCH):
            for t in range(NUM_FRAMES):
                fsel[j, b * NUM_FRAMES + t, b * NCHUNK + t + j] = 1.0

    # conv +-1 frame-shift matrices (block-diag over batch -> zero pad at edges)
    tshift = np.zeros((2, BT, BT), np.float32)
    for idx, d in enumerate((-1, 1)):
        for b in range(BATCH):
            for t in range(NUM_FRAMES):
                if 0 <= t + d < NUM_FRAMES:
                    tshift[idx, b * NUM_FRAMES + t, b * NUM_FRAMES + t + d] = 1.0

    # banded conv matrices: frequency shift + channel mixing in one (Cin*F, Cout*F) tile
    def band(w):
        cout, cin = w.shape[0], w.shape[1]
        m = np.zeros((3, cin * F_BINS, cout * F_BINS), np.float32)
        for kh in range(3):
            for co in range(cout):
                for ci in range(cin):
                    for fo in range(F_BINS):
                        for kw in range(3):
                            fi = fo + kw - 1
                            if 0 <= fi < F_BINS:
                                m[kh, ci * F_BINS + fi, co * F_BINS + fo] = w[co, ci, kh, kw]
        return m

    w1band = band(w1)                                     # (3, 2F, F*HIDDEN)
    w2band = band(w2)                                     # (3, F*HIDDEN, 2F)
    b1row = np.repeat(b1, F_BINS)[None, :].astype(np.float32)   # (1, F*HIDDEN)
    b2row = np.repeat(b2, F_BINS)[None, :].astype(np.float32)   # (1, 2F)

    # inverse: windowed irDFT, per-frame placement, 1/sum(win^2) and spec_back amp folded in
    wk = np.full((F_BINS,), 2.0)
    wk[0] = 1.0
    wk[-1] = 1.0                                          # even n_fft: Nyquist weight 1
    kk = np.arange(F_BINS, dtype=np.float64)[:, None]
    nn = np.arange(N_FFT, dtype=np.float64)[None, :]
    ang2 = 2.0 * np.pi * kk * nn / N_FFT
    idft = np.concatenate([(wk[:, None] / N_FFT) * np.cos(ang2),
                           -(wk[:, None] / N_FFT) * np.sin(ang2)], axis=0)     # (2F, N_FFT)
    widft = idft * win[None, :]                                                # synth window

    den = np.zeros((OUT_LEN,))
    for t in range(NUM_FRAMES):
        den[t * HOP:t * HOP + N_FFT] += win ** 2
    invden = np.where(den > 1e-11, 1.0 / np.maximum(den, 1e-11), 0.0)

    ola = np.zeros((NUM_FRAMES, 2 * F_BINS, OUT_LEN), np.float64)
    for t in range(NUM_FRAMES):
        ola[t, :, t * HOP:t * HOP + N_FFT] = (
            widft * invden[None, t * HOP:t * HOP + N_FFT] * BACK_AMP)

    # row selectors for the OLA matmuls: osel[t, b, b*T + t] = 1
    osel = np.zeros((NUM_FRAMES, BATCH, BT), np.float32)
    for t in range(NUM_FRAMES):
        for b in range(BATCH):
            osel[t, b, b * NUM_FRAMES + t] = 1.0

    return {
        "fsel": jnp.asarray(fsel),
        "wdft": jnp.asarray(wdft, jnp.float32),
        "tshift": jnp.asarray(tshift),
        "w1band": jnp.asarray(w1band),
        "b1row": jnp.asarray(b1row),
        "w2band": jnp.asarray(w2band),
        "b2row": jnp.asarray(b2row),
        "osel": jnp.asarray(osel),
        "ola": jnp.asarray(ola, jnp.float32),
    }


# ----------------------------- model path (jitted) --------------------------------
@jax.jit
def run_model(y, consts):
    B = y.shape[0]
    half = N_FFT // 2
    ypad = jnp.pad(y, ((0, 0), (half, half)), mode="reflect")            # torch.stft center=True
    ypad = jnp.pad(ypad, ((0, 0), (0, OUT_LEN - ypad.shape[1])))         # round up to hop chunks
    chunks2d = ypad.reshape(B * NCHUNK, HOP)                             # (B*NCHUNK, HOP)
    out = ncsnpp_fused(chunks2d, consts)                                 # (B, OUT_LEN)
    return out[:, half:half + TARGET_LEN]


def forward(batch_data, consts):
    # 'clean' branch of NCSNPP_Wrapper.forward
    x = batch_data["clean"]
    y = batch_data["perturbed"]
    current_len = x.shape[-1]
    pad = max(TARGET_LEN - current_len, 0)
    if pad == 0:
        # host-side RNG exactly like the reference module (not traced/jitted)
        start = int(np.random.uniform(0, current_len - TARGET_LEN))
        x = x[..., start:start + TARGET_LEN]
        y = y[..., start:start + TARGET_LEN]
    else:
        x = jnp.pad(x, ((0, 0), (pad // 2, pad // 2 + pad % 2)))
        y = jnp.pad(y, ((0, 0), (pad // 2, pad // 2 + pad % 2)))

    y_fake = run_model(y, consts)
    batch_data["clean"] = x
    batch_data["perturbed"] = y
    batch_data["fake"] = y_fake
    return batch_data


if __name__ == "__main__":
    key = jax.random.PRNGKey(0)
    k1, k2, k3, k4 = jax.random.split(key, 4)
    clean = jax.random.normal(k1, (BATCH, TARGET_LEN), dtype=jnp.float32)
    perturbed = clean + 0.1 * jax.random.normal(k2, (BATCH, TARGET_LEN), dtype=jnp.float32)

    w1 = 0.1 * jax.random.normal(k3, (HIDDEN, 2, 3, 3), dtype=jnp.float32)   # (Cout,Cin,3,3)
    w2 = 0.1 * jax.random.normal(k4, (2, HIDDEN, 3, 3), dtype=jnp.float32)
    b1 = jnp.zeros((HIDDEN,), jnp.float32)
    b2 = jnp.zeros((2,), jnp.float32)

    consts = make_consts(w1, b1, w2, b2)

    np.random.seed(0)
    batch = {"clean": clean, "perturbed": perturbed}
    out = forward(batch, consts)
    jax.block_until_ready(out["fake"])

    assert out["fake"].shape == (BATCH, TARGET_LEN)
    assert bool(jnp.all(jnp.isfinite(out["fake"])))
    print("KERNEL_OK")
</pallas_src>

<mosaic_0001>
module attributes {stable_mosaic.version = 11 : i64} {
  func.func @ncsnpp_fused_kernel(%arg0: i32, %arg1: memref<38x8xf32, #tpu.memory_space<vmem>>, %arg2: memref<4x32x38xf32, #tpu.memory_space<vmem>>, %arg3: memref<4x8x32xf32, #tpu.memory_space<vmem>>, %arg4: memref<2x32x32xf32, #tpu.memory_space<vmem>>, %arg5: memref<3x32x128xf32, #tpu.memory_space<vmem>>, %arg6: memref<1x128xf32, #tpu.memory_space<vmem>>, %arg7: memref<3x128x32xf32, #tpu.memory_space<vmem>>, %arg8: memref<1x32xf32, #tpu.memory_space<vmem>>, %arg9: memref<16x2x32xf32, #tpu.memory_space<vmem>>, %arg10: memref<16x32x152xf32, #tpu.memory_space<vmem>>, %arg11: memref<2x152xf32, #tpu.memory_space<vmem>>) attributes {dimension_semantics = [#tpu.dimension_semantics<arbitrary>], iteration_bounds = array<i64: 1>, scalar_prefetch = 0 : i64, scratch_operands = 0 : i64, tpu.core_type = #tpu.core_type<tc>, window_params = [{pipeline_mode = #tpu.pipeline_mode<synchronous>, transform_indices = @transform_0, window_bounds = array<i64: 38, 8>}, {pipeline_mode = #tpu.pipeline_mode<synchronous>, transform_indices = @transform_1, window_bounds = array<i64: 4, 32, 38>}, {pipeline_mode = #tpu.pipeline_mode<synchronous>, transform_indices = @transform_2, window_bounds = array<i64: 4, 8, 32>}, {pipeline_mode = #tpu.pipeline_mode<synchronous>, transform_indices = @transform_3, window_bounds = array<i64: 2, 32, 32>}, {pipeline_mode = #tpu.pipeline_mode<synchronous>, transform_indices = @transform_4, window_bounds = array<i64: 3, 32, 128>}, {pipeline_mode = #tpu.pipeline_mode<synchronous>, transform_indices = @transform_5, window_bounds = array<i64: 1, 128>}, {pipeline_mode = #tpu.pipeline_mode<synchronous>, transform_indices = @transform_6, window_bounds = array<i64: 3, 128, 32>}, {pipeline_mode = #tpu.pipeline_mode<synchronous>, transform_indices = @transform_7, window_bounds = array<i64: 1, 32>}, {pipeline_mode = #tpu.pipeline_mode<synchronous>, transform_indices = @transform_8, window_bounds = array<i64: 16, 2, 32>}, {pipeline_mode = #tpu.pipeline_mode<synchronous>, transform_indices = @transform_9, window_bounds = array<i64: 16, 32, 152>}, {pipeline_mode = #tpu.pipeline_mode<synchronous>, transform_indices = @transform_10, window_bounds = array<i64: 2, 152>}]} {
    %c0 = arith.constant 0 : index
    %c0_0 = arith.constant 0 : index
    %0 = vector.load %arg1[%c0, %c0_0] : memref<38x8xf32, #tpu.memory_space<vmem>>, vector<38x8xf32>
    %cst = arith.constant 0.000000e+00 : f32
    %1 = vector.broadcast %cst : f32 to vector<32x32xf32>
    %c0_1 = arith.constant 0 : index
    %c0_2 = arith.constant 0 : index
    %c0_3 = arith.constant 0 : index
    %2 = vector.load %arg2[%c0_1, %c0_2, %c0_3] : memref<4x32x38xf32, #tpu.memory_space<vmem>>, vector<1x32x38xf32>
    %3 = vector.shape_cast %2 : vector<1x32x38xf32> to vector<32x38xf32>
    %cst_4 = arith.constant dense<0.000000e+00> : vector<32x8xf32>
    %4 = tpu.matmul %3, %0, %cst_4 {dimension_numbers = #tpu.dot_dimension_numbers<[1], [0], [0], [1], [0, 0, 1, 1], [], []>} : vector<32x38xf32>, vector<38x8xf32>, vector<32x8xf32> -> vector<32x8xf32>
    %c0_5 = arith.constant 0 : index
    %c0_6 = arith.constant 0 : index
    %c0_7 = arith.constant 0 : index
    %5 = vector.load %arg3[%c0_5, %c0_6, %c0_7] : memref<4x8x32xf32, #tpu.memory_space<vmem>>, vector<1x8x32xf32>
    %6 = vector.shape_cast %5 : vector<1x8x32xf32> to vector<8x32xf32>
    %cst_8 = arith.constant dense<0.000000e+00> : vector<32x32xf32>
    %7 = tpu.matmul %4, %6, %cst_8 {dimension_numbers = #tpu.dot_dimension_numbers<[1], [0], [0], [1], [0, 0, 1, 1], [], []>} : vector<32x8xf32>, vector<8x32xf32>, vector<32x32xf32> -> vector<32x32xf32>
    %8 = arith.addf %1, %7 : vector<32x32xf32>
    %c1 = arith.constant 1 : index
    %c0_9 = arith.constant 0 : index
    %c0_10 = arith.constant 0 : index
    %9 = vector.load %arg2[%c1, %c0_9, %c0_10] : memref<4x32x38xf32, #tpu.memory_space<vmem>>, vector<1x32x38xf32>
    %10 = vector.shape_cast %9 : vector<1x32x38xf32> to vector<32x38xf32>
    %cst_11 = arith.constant dense<0.000000e+00> : vector<32x8xf32>
    %11 = tpu.matmul %10, %0, %cst_11 {dimension_numbers = #tpu.dot_dimension_numbers<[1], [0], [0], [1], [0, 0, 1, 1], [], []>} : vector<32x38xf32>, vector<38x8xf32>, vector<32x8xf32> -> vector<32x8xf32>
    %c1_12 = arith.constant 1 : index
    %c0_13 = arith.constant 0 : index
    %c0_14 = arith.constant 0 : index
    %12 = vector.load %arg3[%c1_12, %c0_13, %c0_14] : memref<4x8x32xf32, #tpu.memory_space<vmem>>, vector<1x8x32xf32>
    %13 = vector.shape_cast %12 : vector<1x8x32xf32> to vector<8x32xf32>
    %cst_15 = arith.constant dense<0.000000e+00> : vector<32x32xf32>
    %14 = tpu.matmul %11, %13, %cst_15 {dimension_numbers = #tpu.dot_dimension_numbers<[1], [0], [0], [1], [0, 0, 1, 1], [], []>} : vector<32x8xf32>, vector<8x32xf32>, vector<32x32xf32> -> vector<32x32xf32>
    %15 = arith.addf %8, %14 : vector<32x32xf32>
    %c2 = arith.constant 2 : index
    %c0_16 = arith.constant 0 : index
    %c0_17 = arith.constant 0 : index
    %16 = vector.load %arg2[%c2, %c0_16, %c0_17] : memref<4x32x38xf32, #tpu.memory_space<vmem>>, vector<1x32x38xf32>
    %17 = vector.shape_cast %16 : vector<1x32x38xf32> to vector<32x38xf32>
    %cst_18 = arith.constant dense<0.000000e+00> : vector<32x8xf32>
    %18 = tpu.matmul %17, %0, %cst_18 {dimension_numbers = #tpu.dot_dimension_numbers<[1], [0], [0], [1], [0, 0, 1, 1], [], []>} : vector<32x38xf32>, vector<38x8xf32>, vector<32x8xf32> -> vector<32x8xf32>
    %c2_19 = arith.constant 2 : index
    %c0_20 = arith.constant 0 : index
    %c0_21 = arith.constant 0 : index
    %19 = vector.load %arg3[%c2_19, %c0_20, %c0_21] : memref<4x8x32xf32, #tpu.memory_space<vmem>>, vector<1x8x32xf32>
    %20 = vector.shape_cast %19 : vector<1x8x32xf32> to vector<8x32xf32>
    %cst_22 = arith.constant dense<0.000000e+00> : vector<32x32xf32>
    %21 = tpu.matmul %18, %20, %cst_22 {dimension_numbers = #tpu.dot_dimension_numbers<[1], [0], [0], [1], [0, 0, 1, 1], [], []>} : vector<32x8xf32>, vector<8x32xf32>, vector<32x32xf32> -> vector<32x32xf32>
    %22 = arith.addf %15, %21 : vector<32x32xf32>
    %c3 = arith.constant 3 : index
    %c0_23 = arith.constant 0 : index
    %c0_24 = arith.constant 0 : index
    %23 = vector.load %arg2[%c3, %c0_23, %c0_24] : memref<4x32x38xf32, #tpu.memory_space<vmem>>, vector<1x32x38xf32>
    %24 = vector.shape_cast %23 : vector<1x32x38xf32> to vector<32x38xf32>
    %cst_25 = arith.constant dense<0.000000e+00> : vector<32x8xf32>
    %25 = tpu.matmul %24, %0, %cst_25 {dimension_numbers = #tpu.dot_dimension_numbers<[1], [0], [0], [1], [0, 0, 1, 1], [], []>} : vector<32x38xf32>, vector<38x8xf32>, vector<32x8xf32> -> vector<32x8xf32>
    %c3_26 = arith.constant 3 : index
    %c0_27 = arith.constant 0 : index
    %c0_28 = arith.constant 0 : index
    %26 = vector.load %arg3[%c3_26, %c0_27, %c0_28] : memref<4x8x32xf32, #tpu.memory_space<vmem>>, vector<1x8x32xf32>
    %27 = vector.shape_cast %26 : vector<1x8x32xf32> to vector<8x32xf32>
    %cst_29 = arith.constant dense<0.000000e+00> : vector<32x32xf32>
    %28 = tpu.matmul %25, %27, %cst_29 {dimension_numbers = #tpu.dot_dimension_numbers<[1], [0], [0], [1], [0, 0, 1, 1], [], []>} : vector<32x8xf32>, vector<8x32xf32>, vector<32x32xf32> -> vector<32x32xf32>
    %29 = arith.addf %22, %28 : vector<32x32xf32>
    %30 = vector.extract_strided_slice %29 {offsets = [0, 0], sizes = [32, 16], strides = [1, 1]} : vector<32x32xf32> to vector<32x16xf32>
    %31 = vector.extract_strided_slice %29 {offsets = [0, 16], sizes = [32, 16], strides = [1, 1]} : vector<32x32xf32> to vector<32x16xf32>
    %32 = arith.mulf %30, %30 : vector<32x16xf32>
    %33 = arith.mulf %31, %31 : vector<32x16xf32>
    %34 = arith.addf %32, %33 : vector<32x16xf32>
    %cst_30 = arith.constant 0.000000e+00 : f32
    %35 = vector.broadcast %cst_30 : f32 to vector<32x16xf32>
    %36 = arith.cmpf ogt, %34, %35 : vector<32x16xf32>
    %cst_31 = arith.constant 1.000000e+00 : f32
    %37 = vector.broadcast %cst_31 : f32 to vector<32x16xf32>
    %38 = arith.select %36, %34, %37 : vector<32x16xi1>, vector<32x16xf32>
    %39 = math.sqrt %38 : vector<32x16xf32>
    %40 = math.rsqrt %39 : vector<32x16xf32>
    %cst_32 = arith.constant 0.000000e+00 : f32
    %41 = vector.broadcast %cst_32 : f32 to vector<32x16xf32>
    %42 = arith.select %36, %40, %41 : vector<32x16xi1>, vector<32x16xf32>
    %cst_33 = arith.constant 1.500000e-01 : f32
    %43 = vector.broadcast %cst_33 : f32 to vector<32x16xf32>
    %44 = arith.mulf %42, %43 : vector<32x16xf32>
    %45 = arith.mulf %30, %44 : vector<32x16xf32>
    %46 = arith.mulf %31, %44 : vector<32x16xf32>
    %47 = tpu.concatenate %45, %46 in 1 : vector<32x16xf32>, vector<32x16xf32> -> vector<32x32xf32>
    %c1_34 = arith.constant 1 : index
    %c0_35 = arith.constant 0 : index
    %c0_36 = arith.constant 0 : index
    %48 = vector.load %arg5[%c1_34, %c0_35, %c0_36] : memref<3x32x128xf32, #tpu.memory_space<vmem>>, vector<1x32x128xf32>
    %49 = vector.shape_cast %48 : vector<1x32x128xf32> to vector<32x128xf32>
    %cst_37 = arith.constant dense<0.000000e+00> : vector<32x128xf32>
    %50 = tpu.matmul %47, %49, %cst_37 {dimension_numbers = #tpu.dot_dimension_numbers<[1], [0], [0], [1], [0, 0, 1, 1], [], []>} : vector<32x32xf32>, vector<32x128xf32>, vector<32x128xf32> -> vector<32x128xf32>
    %c0_38 = arith.constant 0 : index
    %c0_39 = arith.constant 0 : index
    %c0_40 = arith.constant 0 : index
    %51 = vector.load %arg4[%c0_38, %c0_39, %c0_40] : memref<2x32x32xf32, #tpu.memory_space<vmem>>, vector<1x32x32xf32>
    %52 = vector.shape_cast %51 : vector<1x32x32xf32> to vector<32x32xf32>
    %cst_41 = arith.constant dense<0.000000e+00> : vector<32x32xf32>
    %53 = tpu.matmul %52, %47, %cst_41 {dimension_numbers = #tpu.dot_dimension_numbers<[1], [0], [0], [1], [0, 0, 1, 1], [], []>} : vector<32x32xf32>, vector<32x32xf32>, vector<32x32xf32> -> vector<32x32xf32>
    %c0_42 = arith.constant 0 : index
    %c0_43 = arith.constant 0 : index
    %c0_44 = arith.constant 0 : index
    %54 = vector.load %arg5[%c0_42, %c0_43, %c0_44] : memref<3x32x128xf32, #tpu.memory_space<vmem>>, vector<1x32x128xf32>
    %55 = vector.shape_cast %54 : vector<1x32x128xf32> to vector<32x128xf32>
    %cst_45 = arith.constant dense<0.000000e+00> : vector<32x128xf32>
    %56 = tpu.matmul %53, %55, %cst_45 {dimension_numbers = #tpu.dot_dimension_numbers<[1], [0], [0], [1], [0, 0, 1, 1], [], []>} : vector<32x32xf32>, vector<32x128xf32>, vector<32x128xf32> -> vector<32x128xf32>
    %57 = arith.addf %50, %56 : vector<32x128xf32>
    %c1_46 = arith.constant 1 : index
    %c0_47 = arith.constant 0 : index
    %c0_48 = arith.constant 0 : index
    %58 = vector.load %arg4[%c1_46, %c0_47, %c0_48] : memref<2x32x32xf32, #tpu.memory_space<vmem>>, vector<1x32x32xf32>
    %59 = vector.shape_cast %58 : vector<1x32x32xf32> to vector<32x32xf32>
    %cst_49 = arith.constant dense<0.000000e+00> : vector<32x32xf32>
    %60 = tpu.matmul %59, %47, %cst_49 {dimension_numbers = #tpu.dot_dimension_numbers<[1], [0], [0], [1], [0, 0, 1, 1], [], []>} : vector<32x32xf32>, vector<32x32xf32>, vector<32x32xf32> -> vector<32x32xf32>
    %c2_50 = arith.constant 2 : index
    %c0_51 = arith.constant 0 : index
    %c0_52 = arith.constant 0 : index
    %61 = vector.load %arg5[%c2_50, %c0_51, %c0_52] : memref<3x32x128xf32, #tpu.memory_space<vmem>>, vector<1x32x128xf32>
    %62 = vector.shape_cast %61 : vector<1x32x128xf32> to vector<32x128xf32>
    %cst_53 = arith.constant dense<0.000000e+00> : vector<32x128xf32>
    %63 = tpu.matmul %60, %62, %cst_53 {dimension_numbers = #tpu.dot_dimension_numbers<[1], [0], [0], [1], [0, 0, 1, 1], [], []>} : vector<32x32xf32>, vector<32x128xf32>, vector<32x128xf32> -> vector<32x128xf32>
    %64 = arith.addf %57, %63 : vector<32x128xf32>
    %c0_54 = arith.constant 0 : index
    %c0_55 = arith.constant 0 : index
    %65 = vector.load %arg6[%c0_54, %c0_55] : memref<1x128xf32, #tpu.memory_space<vmem>>, vector<1x128xf32>
    %66 = vector.broadcast %65 : vector<1x128xf32> to vector<32x128xf32>
    %67 = arith.addf %64, %66 : vector<32x128xf32>
    %cst_56 = arith.constant 0.000000e+00 : f32
    %68 = vector.broadcast %cst_56 : f32 to vector<32x128xf32>
    %69 = arith.subf %68, %67 : vector<32x128xf32>
    %70 = math.exp %69 : vector<32x128xf32>
    %cst_57 = arith.constant 1.000000e+00 : f32
    %71 = vector.broadcast %cst_57 : f32 to vector<32x128xf32>
    %72 = arith.addf %71, %70 : vector<32x128xf32>
    %73 = tpu.reciprocal %72 {approx = true} : vector<32x128xf32> -> vector<32x128xf32>
    %74 = arith.mulf %67, %73 : vector<32x128xf32>
    %c1_58 = arith.constant 1 : index
    %c0_59 = arith.constant 0 : index
    %c0_60 = arith.constant 0 : index
    %75 = vector.load %arg7[%c1_58, %c0_59, %c0_60] : memref<3x128x32xf32, #tpu.memory_space<vmem>>, vector<1x128x32xf32>
    %76 = vector.shape_cast %75 : vector<1x128x32xf32> to vector<128x32xf32>
    %cst_61 = arith.constant dense<0.000000e+00> : vector<32x32xf32>
    %77 = tpu.matmul %74, %76, %cst_61 {dimension_numbers = #tpu.dot_dimension_numbers<[1], [0], [0], [1], [0, 0, 1, 1], [], []>} : vector<32x128xf32>, vector<128x32xf32>, vector<32x32xf32> -> vector<32x32xf32>
    %c0_62 = arith.constant 0 : index
    %c0_63 = arith.constant 0 : index
    %c0_64 = arith.constant 0 : index
    %78 = vector.load %arg4[%c0_62, %c0_63, %c0_64] : memref<2x32x32xf32, #tpu.memory_space<vmem>>, vector<1x32x32xf32>
    %79 = vector.shape_cast %78 : vector<1x32x32xf32> to vector<32x32xf32>
    %cst_65 = arith.constant dense<0.000000e+00> : vector<32x128xf32>
    %80 = tpu.matmul %79, %74, %cst_65 {dimension_numbers = #tpu.dot_dimension_numbers<[1], [0], [0], [1], [0, 0, 1, 1], [], []>} : vector<32x32xf32>, vector<32x128xf32>, vector<32x128xf32> -> vector<32x128xf32>
    %c0_66 = arith.constant 0 : index
    %c0_67 = arith.constant 0 : index
    %c0_68 = arith.constant 0 : index
    %81 = vector.load %arg7[%c0_66, %c0_67, %c0_68] : memref<3x128x32xf32, #tpu.memory_space<vmem>>, vector<1x128x32xf32>
    %82 = vector.shape_cast %81 : vector<1x128x32xf32> to vector<128x32xf32>
    %cst_69 = arith.constant dense<0.000000e+00> : vector<32x32xf32>
    %83 = tpu.matmul %80, %82, %cst_69 {dimension_numbers = #tpu.dot_dimension_numbers<[1], [0], [0], [1], [0, 0, 1, 1], [], []>} : vector<32x128xf32>, vector<128x32xf32>, vector<32x32xf32> -> vector<32x32xf32>
    %84 = arith.addf %77, %83 : vector<32x32xf32>
    %c1_70 = arith.constant 1 : index
    %c0_71 = arith.constant 0 : index
    %c0_72 = arith.constant 0 : index
    %85 = vector.load %arg4[%c1_70, %c0_71, %c0_72] : memref<2x32x32xf32, #tpu.memory_space<vmem>>, vector<1x32x32xf32>
    %86 = vector.shape_cast %85 : vector<1x32x32xf32> to vector<32x32xf32>
    %cst_73 = arith.constant dense<0.000000e+00> : vector<32x128xf32>
    %87 = tpu.matmul %86, %74, %cst_73 {dimension_numbers = #tpu.dot_dimension_numbers<[1], [0], [0], [1], [0, 0, 1, 1], [], []>} : vector<32x32xf32>, vector<32x128xf32>, vector<32x128xf32> -> vector<32x128xf32>
    %c2_74 = arith.constant 2 : index
    %c0_75 = arith.constant 0 : index
    %c0_76 = arith.constant 0 : index
    %88 = vector.load %arg7[%c2_74, %c0_75, %c0_76] : memref<3x128x32xf32, #tpu.memory_space<vmem>>, vector<1x128x32xf32>
    %89 = vector.shape_cast %88 : vector<1x128x32xf32> to vector<128x32xf32>
    %cst_77 = arith.constant dense<0.000000e+00> : vector<32x32xf32>
    %90 = tpu.matmul %87, %89, %cst_77 {dimension_numbers = #tpu.dot_dimension_numbers<[1], [0], [0], [1], [0, 0, 1, 1], [], []>} : vector<32x128xf32>, vector<128x32xf32>, vector<32x32xf32> -> vector<32x32xf32>
    %91 = arith.addf %84, %90 : vector<32x32xf32>
    %c0_78 = arith.constant 0 : index
    %c0_79 = arith.constant 0 : index
    %92 = vector.load %arg8[%c0_78, %c0_79] : memref<1x32xf32, #tpu.memory_space<vmem>>, vector<1x32xf32>
    %93 = vector.broadcast %92 : vector<1x32xf32> to vector<32x32xf32>
    %94 = arith.addf %91, %93 : vector<32x32xf32>
    %95 = vector.extract_strided_slice %94 {offsets = [0, 0], sizes = [32, 16], strides = [1, 1]} : vector<32x32xf32> to vector<32x16xf32>
    %96 = vector.extract_strided_slice %94 {offsets = [0, 16], sizes = [32, 16], strides = [1, 1]} : vector<32x32xf32> to vector<32x16xf32>
    %97 = arith.mulf %95, %95 : vector<32x16xf32>
    %98 = arith.mulf %96, %96 : vector<32x16xf32>
    %99 = arith.addf %97, %98 : vector<32x16xf32>
    %cst_80 = arith.constant 0.000000e+00 : f32
    %100 = vector.broadcast %cst_80 : f32 to vector<32x16xf32>
    %101 = arith.cmpf ogt, %99, %100 : vector<32x16xf32>
    %cst_81 = arith.constant 1.000000e+00 : f32
    %102 = vector.broadcast %cst_81 : f32 to vector<32x16xf32>
    %103 = arith.select %101, %99, %102 : vector<32x16xi1>, vector<32x16xf32>
    %104 = math.sqrt %103 : vector<32x16xf32>
    %cst_82 = arith.constant 0.000000e+00 : f32
    %105 = vector.broadcast %cst_82 : f32 to vector<32x16xf32>
    %106 = arith.select %101, %104, %105 : vector<32x16xi1>, vector<32x16xf32>
    %107 = arith.mulf %95, %106 : vector<32x16xf32>
    %108 = arith.mulf %96, %106 : vector<32x16xf32>
    %109 = tpu.concatenate %107, %108 in 1 : vector<32x16xf32>, vector<32x16xf32> -> vector<32x32xf32>
    %cst_83 = arith.constant 0.000000e+00 : f32
    %110 = vector.broadcast %cst_83 : f32 to vector<2x152xf32>
    %c0_84 = arith.constant 0 : index
    %c0_85 = arith.constant 0 : index
    %c0_86 = arith.constant 0 : index
    %111 = vector.load %arg9[%c0_84, %c0_85, %c0_86] : memref<16x2x32xf32, #tpu.memory_space<vmem>>, vector<1x2x32xf32>
    %112 = vector.shape_cast %111 : vector<1x2x32xf32> to vector<2x32xf32>
    %cst_87 = arith.constant dense<0.000000e+00> : vector<2x32xf32>
    %113 = tpu.matmul %112, %109, %cst_87 {dimension_numbers = #tpu.dot_dimension_numbers<[1], [0], [0], [1], [0, 0, 1, 1], [], []>} : vector<2x32xf32>, vector<32x32xf32>, vector<2x32xf32> -> vector<2x32xf32>
    %c0_88 = arith.constant 0 : index
    %c0_89 = arith.constant 0 : index
    %c0_90 = arith.constant 0 : index
    %114 = vector.load %arg10[%c0_88, %c0_89, %c0_90] : memref<16x32x152xf32, #tpu.memory_space<vmem>>, vector<1x32x152xf32>
    %115 = vector.shape_cast %114 : vector<1x32x152xf32> to vector<32x152xf32>
    %cst_91 = arith.constant dense<0.000000e+00> : vector<2x152xf32>
    %116 = tpu.matmul %113, %115, %cst_91 {dimension_numbers = #tpu.dot_dimension_numbers<[1], [0], [0], [1], [0, 0, 1, 1], [], []>} : vector<2x32xf32>, vector<32x152xf32>, vector<2x152xf32> -> vector<2x152xf32>
    %117 = arith.addf %110, %116 : vector<2x152xf32>
    %c1_92 = arith.constant 1 : index
    %c0_93 = arith.constant 0 : index
    %c0_94 = arith.constant 0 : index
    %118 = vector.load %arg9[%c1_92, %c0_93, %c0_94] : memref<16x2x32xf32, #tpu.memory_space<vmem>>, vector<1x2x32xf32>
    %119 = vector.shape_cast %118 : vector<1x2x32xf32> to vector<2x32xf32>
    %cst_95 = arith.constant dense<0.000000e+00> : vector<2x32xf32>
    %120 = tpu.matmul %119, %109, %cst_95 {dimension_numbers = #tpu.dot_dimension_numbers<[1], [0], [0], [1], [0, 0, 1, 1], [], []>} : vector<2x32xf32>, vector<32x32xf32>, vector<2x32xf32> -> vector<2x32xf32>
    %c1_96 = arith.constant 1 : index
    %c0_97 = arith.constant 0 : index
    %c0_98 = arith.constant 0 : index
    %121 = vector.load %arg10[%c1_96, %c0_97, %c0_98] : memref<16x32x152xf32, #tpu.memory_space<vmem>>, vector<1x32x152xf32>
    %122 = vector.shape_cast %121 : vector<1x32x152xf32> to vector<32x152xf32>
    %cst_99 = arith.constant dense<0.000000e+00> : vector<2x152xf32>
    %123 = tpu.matmul %120, %122, %cst_99 {dimension_numbers = #tpu.dot_dimension_numbers<[1], [0], [0], [1], [0, 0, 1, 1], [], []>} : vector<2x32xf32>, vector<32x152xf32>, vector<2x152xf32> -> vector<2x152xf32>
    %124 = arith.addf %117, %123 : vector<2x152xf32>
    %c2_100 = arith.constant 2 : index
    %c0_101 = arith.constant 0 : index
    %c0_102 = arith.constant 0 : index
    %125 = vector.load %arg9[%c2_100, %c0_101, %c0_102] : memref<16x2x32xf32, #tpu.memory_space<vmem>>, vector<1x2x32xf32>
    %126 = vector.shape_cast %125 : vector<1x2x32xf32> to vector<2x32xf32>
    %cst_103 = arith.constant dense<0.000000e+00> : vector<2x32xf32>
    %127 = tpu.matmul %126, %109, %cst_103 {dimension_numbers = #tpu.dot_dimension_numbers<[1], [0], [0], [1], [0, 0, 1, 1], [], []>} : vector<2x32xf32>, vector<32x32xf32>, vector<2x32xf32> -> vector<2x32xf32>
    %c2_104 = arith.constant 2 : index
    %c0_105 = arith.constant 0 : index
    %c0_106 = arith.constant 0 : index
    %128 = vector.load %arg10[%c2_104, %c0_105, %c0_106] : memref<16x32x152xf32, #tpu.memory_space<vmem>>, vector<1x32x152xf32>
    %129 = vector.shape_cast %128 : vector<1x32x152xf32> to vector<32x152xf32>
    %cst_107 = arith.constant dense<0.000000e+00> : vector<2x152xf32>
    %130 = tpu.matmul %127, %129, %cst_107 {dimension_numbers = #tpu.dot_dimension_numbers<[1], [0], [0], [1], [0, 0, 1, 1], [], []>} : vector<2x32xf32>, vector<32x152xf32>, vector<2x152xf32> -> vector<2x152xf32>
    %131 = arith.addf %124, %130 : vector<2x152xf32>
    %c3_108 = arith.constant 3 : index
    %c0_109 = arith.constant 0 : index
    %c0_110 = arith.constant 0 : index
    %132 = vector.load %arg9[%c3_108, %c0_109, %c0_110] : memref<16x2x32xf32, #tpu.memory_space<vmem>>, vector<1x2x32xf32>
    %133 = vector.shape_cast %132 : vector<1x2x32xf32> to vector<2x32xf32>
    %cst_111 = arith.constant dense<0.000000e+00> : vector<2x32xf32>
    %134 = tpu.matmul %133, %109, %cst_111 {dimension_numbers = #tpu.dot_dimension_numbers<[1], [0], [0], [1], [0, 0, 1, 1], [], []>} : vector<2x32xf32>, vector<32x32xf32>, vector<2x32xf32> -> vector<2x32xf32>
    %c3_112 = arith.constant 3 : index
    %c0_113 = arith.constant 0 : index
    %c0_114 = arith.constant 0 : index
    %135 = vector.load %arg10[%c3_112, %c0_113, %c0_114] : memref<16x32x152xf32, #tpu.memory_space<vmem>>, vector<1x32x152xf32>
    %136 = vector.shape_cast %135 : vector<1x32x152xf32> to vector<32x152xf32>
    %cst_115 = arith.constant dense<0.000000e+00> : vector<2x152xf32>
    %137 = tpu.matmul %134, %136, %cst_115 {dimension_numbers = #tpu.dot_dimension_numbers<[1], [0], [0], [1], [0, 0, 1, 1], [], []>} : vector<2x32xf32>, vector<32x152xf32>, vector<2x152xf32> -> vector<2x152xf32>
    %138 = arith.addf %131, %137 : vector<2x152xf32>
    %c4 = arith.constant 4 : index
    %c0_116 = arith.constant 0 : index
    %c0_117 = arith.constant 0 : index
    %139 = vector.load %arg9[%c4, %c0_116, %c0_117] : memref<16x2x32xf32, #tpu.memory_space<vmem>>, vector<1x2x32xf32>
    %140 = vector.shape_cast %139 : vector<1x2x32xf32> to vector<2x32xf32>
    %cst_118 = arith.constant dense<0.000000e+00> : vector<2x32xf32>
    %141 = tpu.matmul %140, %109, %cst_118 {dimension_numbers = #tpu.dot_dimension_numbers<[1], [0], [0], [1], [0, 0, 1, 1], [], []>} : vector<2x32xf32>, vector<32x32xf32>, vector<2x32xf32> -> vector<2x32xf32>
    %c4_119 = arith.constant 4 : index
    %c0_120 = arith.constant 0 : index
    %c0_121 = arith.constant 0 : index
    %142 = vector.load %arg10[%c4_119, %c0_120, %c0_121] : memref<16x32x152xf32, #tpu.memory_space<vmem>>, vector<1x32x152xf32>
    %143 = vector.shape_cast %142 : vector<1x32x152xf32> to vector<32x152xf32>
    %cst_122 = arith.constant dense<0.000000e+00> : vector<2x152xf32>
    %144 = tpu.matmul %141, %143, %cst_122 {dimension_numbers = #tpu.dot_dimension_numbers<[1], [0], [0], [1], [0, 0, 1, 1], [], []>} : vector<2x32xf32>, vector<32x152xf32>, vector<2x152xf32> -> vector<2x152xf32>
    %145 = arith.addf %138, %144 : vector<2x152xf32>
    %c5 = arith.constant 5 : index
    %c0_123 = arith.constant 0 : index
    %c0_124 = arith.constant 0 : index
    %146 = vector.load %arg9[%c5, %c0_123, %c0_124] : memref<16x2x32xf32, #tpu.memory_space<vmem>>, vector<1x2x32xf32>
    %147 = vector.shape_cast %146 : vector<1x2x32xf32> to vector<2x32xf32>
    %cst_125 = arith.constant dense<0.000000e+00> : vector<2x32xf32>
    %148 = tpu.matmul %147, %109, %cst_125 {dimension_numbers = #tpu.dot_dimension_numbers<[1], [0], [0], [1], [0, 0, 1, 1], [], []>} : vector<2x32xf32>, vector<32x32xf32>, vector<2x32xf32> -> vector<2x32xf32>
    %c5_126 = arith.constant 5 : index
    %c0_127 = arith.constant 0 : index
    %c0_128 = arith.constant 0 : index
    %149 = vector.load %arg10[%c5_126, %c0_127, %c0_128] : memref<16x32x152xf32, #tpu.memory_space<vmem>>, vector<1x32x152xf32>
    %150 = vector.shape_cast %149 : vector<1x32x152xf32> to vector<32x152xf32>
    %cst_129 = arith.constant dense<0.000000e+00> : vector<2x152xf32>
    %151 = tpu.matmul %148, %150, %cst_129 {dimension_numbers = #tpu.dot_dimension_numbers<[1], [0], [0], [1], [0, 0, 1, 1], [], []>} : vector<2x32xf32>, vector<32x152xf32>, vector<2x152xf32> -> vector<2x152xf32>
    %152 = arith.addf %145, %151 : vector<2x152xf32>
    %c6 = arith.constant 6 : index
    %c0_130 = arith.constant 0 : index
    %c0_131 = arith.constant 0 : index
    %153 = vector.load %arg9[%c6, %c0_130, %c0_131] : memref<16x2x32xf32, #tpu.memory_space<vmem>>, vector<1x2x32xf32>
    %154 = vector.shape_cast %153 : vector<1x2x32xf32> to vector<2x32xf32>
    %cst_132 = arith.constant dense<0.000000e+00> : vector<2x32xf32>
    %155 = tpu.matmul %154, %109, %cst_132 {dimension_numbers = #tpu.dot_dimension_numbers<[1], [0], [0], [1], [0, 0, 1, 1], [], []>} : vector<2x32xf32>, vector<32x32xf32>, vector<2x32xf32> -> vector<2x32xf32>
    %c6_133 = arith.constant 6 : index
    %c0_134 = arith.constant 0 : index
    %c0_135 = arith.constant 0 : index
    %156 = vector.load %arg10[%c6_133, %c0_134, %c0_135] : memref<16x32x152xf32, #tpu.memory_space<vmem>>, vector<1x32x152xf32>
    %157 = vector.shape_cast %156 : vector<1x32x152xf32> to vector<32x152xf32>
    %cst_136 = arith.constant dense<0.000000e+00> : vector<2x152xf32>
    %158 = tpu.matmul %155, %157, %cst_136 {dimension_numbers = #tpu.dot_dimension_numbers<[1], [0], [0], [1], [0, 0, 1, 1], [], []>} : vector<2x32xf32>, vector<32x152xf32>, vector<2x152xf32> -> vector<2x152xf32>
    %159 = arith.addf %152, %158 : vector<2x152xf32>
    %c7 = arith.constant 7 : index
    %c0_137 = arith.constant 0 : index
    %c0_138 = arith.constant 0 : index
    %160 = vector.load %arg9[%c7, %c0_137, %c0_138] : memref<16x2x32xf32, #tpu.memory_space<vmem>>, vector<1x2x32xf32>
    %161 = vector.shape_cast %160 : vector<1x2x32xf32> to vector<2x32xf32>
    %cst_139 = arith.constant dense<0.000000e+00> : vector<2x32xf32>
    %162 = tpu.matmul %161, %109, %cst_139 {dimension_numbers = #tpu.dot_dimension_numbers<[1], [0], [0], [1], [0, 0, 1, 1], [], []>} : vector<2x32xf32>, vector<32x32xf32>, vector<2x32xf32> -> vector<2x32xf32>
    %c7_140 = arith.constant 7 : index
    %c0_141 = arith.constant 0 : index
    %c0_142 = arith.constant 0 : index
    %163 = vector.load %arg10[%c7_140, %c0_141, %c0_142] : memref<16x32x152xf32, #tpu.memory_space<vmem>>, vector<1x32x152xf32>
    %164 = vector.shape_cast %163 : vector<1x32x152xf32> to vector<32x152xf32>
    %cst_143 = arith.constant dense<0.000000e+00> : vector<2x152xf32>
    %165 = tpu.matmul %162, %164, %cst_143 {dimension_numbers = #tpu.dot_dimension_numbers<[1], [0], [0], [1], [0, 0, 1, 1], [], []>} : vector<2x32xf32>, vector<32x152xf32>, vector<2x152xf32> -> vector<2x152xf32>
    %166 = arith.addf %159, %165 : vector<2x152xf32>
    %c8 = arith.constant 8 : index
    %c0_144 = arith.constant 0 : index
    %c0_145 = arith.constant 0 : index
    %167 = vector.load %arg9[%c8, %c0_144, %c0_145] : memref<16x2x32xf32, #tpu.memory_space<vmem>>, vector<1x2x32xf32>
    %168 = vector.shape_cast %167 : vector<1x2x32xf32> to vector<2x32xf32>
    %cst_146 = arith.constant dense<0.000000e+00> : vector<2x32xf32>
    %169 = tpu.matmul %168, %109, %cst_146 {dimension_numbers = #tpu.dot_dimension_numbers<[1], [0], [0], [1], [0, 0, 1, 1], [], []>} : vector<2x32xf32>, vector<32x32xf32>, vector<2x32xf32> -> vector<2x32xf32>
    %c8_147 = arith.constant 8 : index
    %c0_148 = arith.constant 0 : index
    %c0_149 = arith.constant 0 : index
    %170 = vector.load %arg10[%c8_147, %c0_148, %c0_149] : memref<16x32x152xf32, #tpu.memory_space<vmem>>, vector<1x32x152xf32>
    %171 = vector.shape_cast %170 : vector<1x32x152xf32> to vector<32x152xf32>
    %cst_150 = arith.constant dense<0.000000e+00> : vector<2x152xf32>
    %172 = tpu.matmul %169, %171, %cst_150 {dimension_numbers = #tpu.dot_dimension_numbers<[1], [0], [0], [1], [0, 0, 1, 1], [], []>} : vector<2x32xf32>, vector<32x152xf32>, vector<2x152xf32> -> vector<2x152xf32>
    %173 = arith.addf %166, %172 : vector<2x152xf32>
    %c9 = arith.constant 9 : index
    %c0_151 = arith.constant 0 : index
    %c0_152 = arith.constant 0 : index
    %174 = vector.load %arg9[%c9, %c0_151, %c0_152] : memref<16x2x32xf32, #tpu.memory_space<vmem>>, vector<1x2x32xf32>
    %175 = vector.shape_cast %174 : vector<1x2x32xf32> to vector<2x32xf32>
    %cst_153 = arith.constant dense<0.000000e+00> : vector<2x32xf32>
    %176 = tpu.matmul %175, %109, %cst_153 {dimension_numbers = #tpu.dot_dimension_numbers<[1], [0], [0], [1], [0, 0, 1, 1], [], []>} : vector<2x32xf32>, vector<32x32xf32>, vector<2x32xf32> -> vector<2x32xf32>
    %c9_154 = arith.constant 9 : index
    %c0_155 = arith.constant 0 : index
    %c0_156 = arith.constant 0 : index
    %177 = vector.load %arg10[%c9_154, %c0_155, %c0_156] : memref<16x32x152xf32, #tpu.memory_space<vmem>>, vector<1x32x152xf32>
    %178 = vector.shape_cast %177 : vector<1x32x152xf32> to vector<32x152xf32>
    %cst_157 = arith.constant dense<0.000000e+00> : vector<2x152xf32>
    %179 = tpu.matmul %176, %178, %cst_157 {dimension_numbers = #tpu.dot_dimension_numbers<[1], [0], [0], [1], [0, 0, 1, 1], [], []>} : vector<2x32xf32>, vector<32x152xf32>, vector<2x152xf32> -> vector<2x152xf32>
    %180 = arith.addf %173, %179 : vector<2x152xf32>
    %c10 = arith.constant 10 : index
    %c0_158 = arith.constant 0 : index
    %c0_159 = arith.constant 0 : index
    %181 = vector.load %arg9[%c10, %c0_158, %c0_159] : memref<16x2x32xf32, #tpu.memory_space<vmem>>, vector<1x2x32xf32>
    %182 = vector.shape_cast %181 : vector<1x2x32xf32> to vector<2x32xf32>
    %cst_160 = arith.constant dense<0.000000e+00> : vector<2x32xf32>
    %183 = tpu.matmul %182, %109, %cst_160 {dimension_numbers = #tpu.dot_dimension_numbers<[1], [0], [0], [1], [0, 0, 1, 1], [], []>} : vector<2x32xf32>, vector<32x32xf32>, vector<2x32xf32> -> vector<2x32xf32>
    %c10_161 = arith.constant 10 : index
    %c0_162 = arith.constant 0 : index
    %c0_163 = arith.constant 0 : index
    %184 = vector.load %arg10[%c10_161, %c0_162, %c0_163] : memref<16x32x152xf32, #tpu.memory_space<vmem>>, vector<1x32x152xf32>
    %185 = vector.shape_cast %184 : vector<1x32x152xf32> to vector<32x152xf32>
    %cst_164 = arith.constant dense<0.000000e+00> : vector<2x152xf32>
    %186 = tpu.matmul %183, %185, %cst_164 {dimension_numbers = #tpu.dot_dimension_numbers<[1], [0], [0], [1], [0, 0, 1, 1], [], []>} : vector<2x32xf32>, vector<32x152xf32>, vector<2x152xf32> -> vector<2x152xf32>
    %187 = arith.addf %180, %186 : vector<2x152xf32>
    %c11 = arith.constant 11 : index
    %c0_165 = arith.constant 0 : index
    %c0_166 = arith.constant 0 : index
    %188 = vector.load %arg9[%c11, %c0_165, %c0_166] : memref<16x2x32xf32, #tpu.memory_space<vmem>>, vector<1x2x32xf32>
    %189 = vector.shape_cast %188 : vector<1x2x32xf32> to vector<2x32xf32>
    %cst_167 = arith.constant dense<0.000000e+00> : vector<2x32xf32>
    %190 = tpu.matmul %189, %109, %cst_167 {dimension_numbers = #tpu.dot_dimension_numbers<[1], [0], [0], [1], [0, 0, 1, 1], [], []>} : vector<2x32xf32>, vector<32x32xf32>, vector<2x32xf32> -> vector<2x32xf32>
    %c11_168 = arith.constant 11 : index
    %c0_169 = arith.constant 0 : index
    %c0_170 = arith.constant 0 : index
    %191 = vector.load %arg10[%c11_168, %c0_169, %c0_170] : memref<16x32x152xf32, #tpu.memory_space<vmem>>, vector<1x32x152xf32>
    %192 = vector.shape_cast %191 : vector<1x32x152xf32> to vector<32x152xf32>
    %cst_171 = arith.constant dense<0.000000e+00> : vector<2x152xf32>
    %193 = tpu.matmul %190, %192, %cst_171 {dimension_numbers = #tpu.dot_dimension_numbers<[1], [0], [0], [1], [0, 0, 1, 1], [], []>} : vector<2x32xf32>, vector<32x152xf32>, vector<2x152xf32> -> vector<2x152xf32>
    %194 = arith.addf %187, %193 : vector<2x152xf32>
    %c12 = arith.constant 12 : index
    %c0_172 = arith.constant 0 : index
    %c0_173 = arith.constant 0 : index
    %195 = vector.load %arg9[%c12, %c0_172, %c0_173] : memref<16x2x32xf32, #tpu.memory_space<vmem>>, vector<1x2x32xf32>
    %196 = vector.shape_cast %195 : vector<1x2x32xf32> to vector<2x32xf32>
    %cst_174 = arith.constant dense<0.000000e+00> : vector<2x32xf32>
    %197 = tpu.matmul %196, %109, %cst_174 {dimension_numbers = #tpu.dot_dimension_numbers<[1], [0], [0], [1], [0, 0, 1, 1], [], []>} : vector<2x32xf32>, vector<32x32xf32>, vector<2x32xf32> -> vector<2x32xf32>
    %c12_175 = arith.constant 12 : index
    %c0_176 = arith.constant 0 : index
    %c0_177 = arith.constant 0 : index
    %198 = vector.load %arg10[%c12_175, %c0_176, %c0_177] : memref<16x32x152xf32, #tpu.memory_space<vmem>>, vector<1x32x152xf32>
    %199 = vector.shape_cast %198 : vector<1x32x152xf32> to vector<32x152xf32>
    %cst_178 = arith.constant dense<0.000000e+00> : vector<2x152xf32>
    %200 = tpu.matmul %197, %199, %cst_178 {dimension_numbers = #tpu.dot_dimension_numbers<[1], [0], [0], [1], [0, 0, 1, 1], [], []>} : vector<2x32xf32>, vector<32x152xf32>, vector<2x152xf32> -> vector<2x152xf32>
    %201 = arith.addf %194, %200 : vector<2x152xf32>
    %c13 = arith.constant 13 : index
    %c0_179 = arith.constant 0 : index
    %c0_180 = arith.constant 0 : index
    %202 = vector.load %arg9[%c13, %c0_179, %c0_180] : memref<16x2x32xf32, #tpu.memory_space<vmem>>, vector<1x2x32xf32>
    %203 = vector.shape_cast %202 : vector<1x2x32xf32> to vector<2x32xf32>
    %cst_181 = arith.constant dense<0.000000e+00> : vector<2x32xf32>
    %204 = tpu.matmul %203, %109, %cst_181 {dimension_numbers = #tpu.dot_dimension_numbers<[1], [0], [0], [1], [0, 0, 1, 1], [], []>} : vector<2x32xf32>, vector<32x32xf32>, vector<2x32xf32> -> vector<2x32xf32>
    %c13_182 = arith.constant 13 : index
    %c0_183 = arith.constant 0 : index
    %c0_184 = arith.constant 0 : index
    %205 = vector.load %arg10[%c13_182, %c0_183, %c0_184] : memref<16x32x152xf32, #tpu.memory_space<vmem>>, vector<1x32x152xf32>
    %206 = vector.shape_cast %205 : vector<1x32x152xf32> to vector<32x152xf32>
    %cst_185 = arith.constant dense<0.000000e+00> : vector<2x152xf32>
    %207 = tpu.matmul %204, %206, %cst_185 {dimension_numbers = #tpu.dot_dimension_numbers<[1], [0], [0], [1], [0, 0, 1, 1], [], []>} : vector<2x32xf32>, vector<32x152xf32>, vector<2x152xf32> -> vector<2x152xf32>
    %208 = arith.addf %201, %207 : vector<2x152xf32>
    %c14 = arith.constant 14 : index
    %c0_186 = arith.constant 0 : index
    %c0_187 = arith.constant 0 : index
    %209 = vector.load %arg9[%c14, %c0_186, %c0_187] : memref<16x2x32xf32, #tpu.memory_space<vmem>>, vector<1x2x32xf32>
    %210 = vector.shape_cast %209 : vector<1x2x32xf32> to vector<2x32xf32>
    %cst_188 = arith.constant dense<0.000000e+00> : vector<2x32xf32>
    %211 = tpu.matmul %210, %109, %cst_188 {dimension_numbers = #tpu.dot_dimension_numbers<[1], [0], [0], [1], [0, 0, 1, 1], [], []>} : vector<2x32xf32>, vector<32x32xf32>, vector<2x32xf32> -> vector<2x32xf32>
    %c14_189 = arith.constant 14 : index
    %c0_190 = arith.constant 0 : index
    %c0_191 = arith.constant 0 : index
    %212 = vector.load %arg10[%c14_189, %c0_190, %c0_191] : memref<16x32x152xf32, #tpu.memory_space<vmem>>, vector<1x32x152xf32>
    %213 = vector.shape_cast %212 : vector<1x32x152xf32> to vector<32x152xf32>
    %cst_192 = arith.constant dense<0.000000e+00> : vector<2x152xf32>
    %214 = tpu.matmul %211, %213, %cst_192 {dimension_numbers = #tpu.dot_dimension_numbers<[1], [0], [0], [1], [0, 0, 1, 1], [], []>} : vector<2x32xf32>, vector<32x152xf32>, vector<2x152xf32> -> vector<2x152xf32>
    %215 = arith.addf %208, %214 : vector<2x152xf32>
    %c15 = arith.constant 15 : index
    %c0_193 = arith.constant 0 : index
    %c0_194 = arith.constant 0 : index
    %216 = vector.load %arg9[%c15, %c0_193, %c0_194] : memref<16x2x32xf32, #tpu.memory_space<vmem>>, vector<1x2x32xf32>
    %217 = vector.shape_cast %216 : vector<1x2x32xf32> to vector<2x32xf32>
    %cst_195 = arith.constant dense<0.000000e+00> : vector<2x32xf32>
    %218 = tpu.matmul %217, %109, %cst_195 {dimension_numbers = #tpu.dot_dimension_numbers<[1], [0], [0], [1], [0, 0, 1, 1], [], []>} : vector<2x32xf32>, vector<32x32xf32>, vector<2x32xf32> -> vector<2x32xf32>
    %c15_196 = arith.constant 15 : index
    %c0_197 = arith.constant 0 : index
    %c0_198 = arith.constant 0 : index
    %219 = vector.load %arg10[%c15_196, %c0_197, %c0_198] : memref<16x32x152xf32, #tpu.memory_space<vmem>>, vector<1x32x152xf32>
    %220 = vector.shape_cast %219 : vector<1x32x152xf32> to vector<32x152xf32>
    %cst_199 = arith.constant dense<0.000000e+00> : vector<2x152xf32>
    %221 = tpu.matmul %218, %220, %cst_199 {dimension_numbers = #tpu.dot_dimension_numbers<[1], [0], [0], [1], [0, 0, 1, 1], [], []>} : vector<2x32xf32>, vector<32x152xf32>, vector<2x152xf32> -> vector<2x152xf32>
    %222 = arith.addf %215, %221 : vector<2x152xf32>
    %c0_200 = arith.constant 0 : index
    %c0_201 = arith.constant 0 : index
    %223 = vector.load %arg11[%c0_200, %c0_201] : memref<2x152xf32, #tpu.memory_space<vmem>>, vector<2x152xf32>
    tpu.vector_store %arg11[%c0_200, %c0_201], %222 {strides = array<i32>} : memref<2x152xf32, #tpu.memory_space<vmem>>, vector<2x152xf32>,
    return
  }
  func.func @transform_0(%arg0: i32) -> (i32, i32) {
    %c0_i32 = arith.constant 0 : i32
    %c0_i32_0 = arith.constant 0 : i32
    %c0_i32_1 = arith.constant 0 : i32
    return %c0_i32, %c0_i32_0 : i32, i32
  }
  func.func @transform_1(%arg0: i32) -> (i32, i32, i32) {
    %c0_i32 = arith.constant 0 : i32
    %c0_i32_0 = arith.constant 0 : i32
    %c0_i32_1 = arith.constant 0 : i32
    %c0_i32_2 = arith.constant 0 : i32
    return %c0_i32, %c0_i32_0, %c0_i32_1 : i32, i32, i32
  }
  func.func @transform_2(%arg0: i32) -> (i32, i32, i32) {
    %c0_i32 = arith.constant 0 : i32
    %c0_i32_0 = arith.constant 0 : i32
    %c0_i32_1 = arith.constant 0 : i32
    %c0_i32_2 = arith.constant 0 : i32
    return %c0_i32, %c0_i32_0, %c0_i32_1 : i32, i32, i32
  }
  func.func @transform_3(%arg0: i32) -> (i32, i32, i32) {
    %c0_i32 = arith.constant 0 : i32
    %c0_i32_0 = arith.constant 0 : i32
    %c0_i32_1 = arith.constant 0 : i32
    %c0_i32_2 = arith.constant 0 : i32
    return %c0_i32, %c0_i32_0, %c0_i32_1 : i32, i32, i32
  }
  func.func @transform_4(%arg0: i32) -> (i32, i32, i32) {
    %c0_i32 = arith.constant 0 : i32
    %c0_i32_0 = arith.constant 0 : i32
    %c0_i32_1 = arith.constant 0 : i32
    %c0_i32_2 = arith.constant 0 : i32
    return %c0_i32, %c0_i32_0, %c0_i32_1 : i32, i32, i32
  }
  func.func @transform_5(%arg0: i32) -> (i32, i32) {
    %c0_i32 = arith.constant 0 : i32
    %c0_i32_0 = arith.constant 0 : i32
    %c0_i32_1 = arith.constant 0 : i32
    return %c0_i32, %c0_i32_0 : i32, i32
  }
  func.func @transform_6(%arg0: i32) -> (i32, i32, i32) {
    %c0_i32 = arith.constant 0 : i32
    %c0_i32_0 = arith.constant 0 : i32
    %c0_i32_1 = arith.constant 0 : i32
    %c0_i32_2 = arith.constant 0 : i32
    return %c0_i32, %c0_i32_0, %c0_i32_1 : i32, i32, i32
  }
  func.func @transform_7(%arg0: i32) -> (i32, i32) {
    %c0_i32 = arith.constant 0 : i32
    %c0_i32_0 = arith.constant 0 : i32
    %c0_i32_1 = arith.constant 0 : i32
    return %c0_i32, %c0_i32_0 : i32, i32
  }
  func.func @transform_8(%arg0: i32) -> (i32, i32, i32) {
    %c0_i32 = arith.constant 0 : i32
    %c0_i32_0 = arith.constant 0 : i32
    %c0_i32_1 = arith.constant 0 : i32
    %c0_i32_2 = arith.constant 0 : i32
    return %c0_i32, %c0_i32_0, %c0_i32_1 : i32, i32, i32
  }
  func.func @transform_9(%arg0: i32) -> (i32, i32, i32) {
    %c0_i32 = arith.constant 0 : i32
    %c0_i32_0 = arith.constant 0 : i32
    %c0_i32_1 = arith.constant 0 : i32
    %c0_i32_2 = arith.constant 0 : i32
    return %c0_i32, %c0_i32_0, %c0_i32_1 : i32, i32, i32
  }
  func.func @transform_10(%arg0: i32) -> (i32, i32) {
    %c0_i32 = arith.constant 0 : i32
    %c0_i32_0 = arith.constant 0 : i32
    %c0_i32_1 = arith.constant 0 : i32
    return %c0_i32, %c0_i32_0 : i32, i32
  }
}

</mosaic_0001>

<llo_original>
// kernel: run_model.1
$region0: #{run_model.1}
  #allocation0 [shape = 'u32[]', space=smem, size = 0x4, offset = 0x4, fixed_abs, tag = 'smem constant byte address 0x4 - core index']
  #allocation1 [shape = 'u32[144,128]{1,0:T(1,128)}', space=vmem, size = 0x12000, scoped, tag = 'internal scratch']
  %s0 = inlined_call_operand.vmem [shape: f32[38,8], index: 0, kind: input, shape index: {}]
  %s1 = inlined_call_operand.vmem [shape: f32[4,32,38], index: 1, kind: input, shape index: {}]
  %s2 = inlined_call_operand.vmem [shape: f32[4,8,32], index: 2, kind: input, shape index: {}]
  %s3 = inlined_call_operand.vmem [shape: f32[2,32,32], index: 3, kind: input, shape index: {}]
  %s4 = inlined_call_operand.vmem [shape: f32[3,32,128], index: 4, kind: input, shape index: {}]
  %s5 = inlined_call_operand.vmem [shape: f32[1,128], index: 5, kind: input, shape index: {}]
  %s6 = inlined_call_operand.vmem [shape: f32[3,128,32], index: 6, kind: input, shape index: {}]
  %s7 = inlined_call_operand.vmem [shape: f32[1,32], index: 7, kind: input, shape index: {}]
  %s8 = inlined_call_operand.vmem [shape: f32[16,2,32], index: 8, kind: input, shape index: {}]
  %s9 = inlined_call_operand.hbm [shape: f32[16,32,152], index: 9, kind: input, shape index: {}]
  %s10 = inlined_call_operand.vmem [shape: f32[2,152], index: 10, kind: output, shape index: {}]
  %s11 = sld [smem:[#allocation0]]
  $region54: #{run_model.1} parent=0
    _
  %s13 = ssub.s32 1, %s11
  %s14 = scalar_select 0, %s13, %s11
  $region1: #{run_model.1} parent=0
    #allocation2 [shape = 'u8[524288]{0}', space=vmem, size = 0x80000, scoped, tag = 'input window, operand 9, single buffered']
    #allocation3 [shape = 's32[1]{0}', space=sflag, size = 0x4, scoped, tag = 'scoped memory for run_model.1']
    %15 = vsyncpa [#allocation3], 0
    // Predicated region
    $region2: #{run_model.1} parent=1 // pred_check
      _
    $region3: #{run_model.1} parent=1 // pred_check_branch
      %17 = sbr.rel (0) target = $region5
    $region4: #{run_model.1} parent=1 // pred_region
      _
    $region5: #{run_model.1} parent=1 // pred_fallthru
      _
    // Predicated region
    $region6: #{run_model.1} parent=1 // pred_check
      _
    $region7: #{run_model.1} parent=1 // pred_check_branch
      %19 = sbr.rel (0) target = $region9
    $region8: #{run_model.1} parent=1 // pred_region
      _
    $region9: #{run_model.1} parent=1 // pred_fallthru
      _
    // Predicated region
    $region10: #{run_model.1} parent=1 // pred_check
      _
    $region11: #{run_model.1} parent=1 // pred_check_branch
      %21 = sbr.rel (0) target = $region13
    $region12: #{run_model.1} parent=1 // pred_region
      _
    $region13: #{run_model.1} parent=1 // pred_fallthru
      _
    // Predicated region
    $region14: #{run_model.1} parent=1 // pred_check
      _
    $region15: #{run_model.1} parent=1 // pred_check_branch
      %23 = sbr.rel (0) target = $region17
    $region16: #{run_model.1} parent=1 // pred_region
      _
    $region17: #{run_model.1} parent=1 // pred_fallthru
      _
    // Predicated region
    $region18: #{run_model.1} parent=1 // pred_check
      _
    $region19: #{run_model.1} parent=1 // pred_check_branch
      %25 = sbr.rel (0) target = $region21
    $region20: #{run_model.1} parent=1 // pred_region
      _
    $region21: #{run_model.1} parent=1 // pred_fallthru
      _
    // Predicated region
    $region22: #{run_model.1} parent=1 // pred_check
      _
    $region23: #{run_model.1} parent=1 // pred_check_branch
      %27 = sbr.rel (0) target = $region25
    $region24: #{run_model.1} parent=1 // pred_region
      _
    $region25: #{run_model.1} parent=1 // pred_fallthru
      _
    // Predicated region
    $region26: #{run_model.1} parent=1 // pred_check
      _
    $region27: #{run_model.1} parent=1 // pred_check_branch
      %29 = sbr.rel (0) target = $region29
    $region28: #{run_model.1} parent=1 // pred_region
      _
    $region29: #{run_model.1} parent=1 // pred_fallthru
      _
    // Predicated region
    $region30: #{run_model.1} parent=1 // pred_check
      _
    $region31: #{run_model.1} parent=1 // pred_check_branch
      %31 = sbr.rel (0) target = $region33
    $region32: #{run_model.1} parent=1 // pred_region
      _
    $region33: #{run_model.1} parent=1 // pred_fallthru
      _
    // Predicated region
    $region34: #{run_model.1} parent=1 // pred_check
      _
    $region35: #{run_model.1} parent=1 // pred_check_branch
      %33 = sbr.rel (0) target = $region37
    $region36: #{run_model.1} parent=1 // pred_region
      _
    $region37: #{run_model.1} parent=1 // pred_fallthru
      _
    // Predicated region
    $region38: #{run_model.1} parent=1 // pred_check
      _
    $region39: #{run_model.1} parent=1 // pred_check_branch
      %35 = sbr.rel (0) target = $region41
    $region40: #{run_model.1} parent=1 // pred_region
      %s37 = ssub.s32 16384, 16384
      %38 = vsyncadd [#allocation3], %s37
      %s39 = sshll.u32 [#allocation2], 4
      %s40 = int_to_ptr.vmem [resolvable:$true] %s39
      %45 = dma.hbm_to_vmem [thread:$0]  %s9, 16384, %s40, [#allocation3], 256, 256, 16
    $region41: #{run_model.1} parent=1 // pred_fallthru
      _
    // Predicated region
    $region42: #{run_model.1} parent=1 // pred_check
      _
    $region43: #{run_model.1} parent=1 // pred_check_branch
      %47 = sbr.rel (0) target = $region45
    $region44: #{run_model.1} parent=1 // pred_region
      %48 = dma.done [#allocation3], 16384
    $region45: #{run_model.1} parent=1 // pred_fallthru
      _
    %v49 = vld [vmem:[%s0] sm:$0xff]
    %v50 = vld [vmem:[%s0 + $0x8] sm:$0xff]
    %v51 = vld [vmem:[%s0 + $0x10] sm:$0xff]
    %v52 = vld [vmem:[%s0 + $0x18] sm:$0xff]
    %v53 = vld [vmem:[%s0 + $0x20] sm:$0x3f]
    %v54 = vld [vmem:[%s1] sm:$0xff]
    %v55 = vld [vmem:[%s1 + $0x8] sm:$0xff]
    %v56 = vld [vmem:[%s1 + $0x10] sm:$0xff]
    %v57 = vld [vmem:[%s1 + $0x18] sm:$0xff]
    %vm58 = vcmask 310272
    %v60 = vsel %vm58, %v54, 0
    %v63 = vsel %vm58, %v55, 0
    %v66 = vsel %vm58, %v56, 0
    %v69 = vsel %vm58, %v57, 0
    %vm71 = vcmask 1045504
    %v73 = vsel %vm71, %v53, 0
    %75 = vmatprep.subr.mxu0 0.0
    %76 = vmatpush1.msra.mxu0 0.0
    %77 = vmatprep.subr.mxu0 0.0
    %78 = vmatpush1.msra.mxu0 0.0
    %79 = vmatprep.subr.mxu0 0.0
    %80 = vmatpush1.msra.mxu0 0.0
    %81 = vmatprep.subr.mxu0 0.0
    %82 = vmatpush1.msra.mxu0 0.0
    %83 = vmatprep.subr.mxu0 0.0
    %84 = vmatpush1.msra.mxu0 0.0
    %85 = vmatprep.subr.mxu0 0.0
    %86 = vmatpush1.msra.mxu0 0.0
    %87 = vmatprep.subr.mxu0 0.0
    %88 = vmatpush1.msra.mxu0 0.0
    %89 = vmatprep.subr.mxu0 0.0
    %90 = vmatpush1.msra.mxu0 0.0
    %91 = vmatprep.subr.mxu0 0.0
    %92 = vmatpush1.msra.mxu0 0.0
    %93 = vmatprep.subr.mxu0 0.0
    %94 = vmatpush1.msra.mxu0 0.0
    %95 = vmatprep.subr.mxu0 0.0
    %96 = vmatpush1.msra.mxu0 0.0
    %97 = vmatprep.subr.mxu0 0.0
    %98 = vmatpush1.msra.mxu0 %v73
    %99 = vmatprep.subr.mxu0 0.0
    %100 = vmatpush1.msra.mxu0 %v52
    %101 = vmatprep.subr.mxu0 0.0
    %102 = vmatpush1.msra.mxu0 %v51
    %103 = vmatprep.subr.mxu0 0.0
    %104 = vmatpush1.msra.mxu0 %v50
    %105 = vmatprep.subr.mxu0 0.0
    %106 = vmatpush1.msra.mxu0 %v49
    %107 = vmatprep.subr.mxu0 0.0
    %108 = vmatpush2.msra.mxu0 0.0
    %109 = vmatprep.subr.mxu0 0.0
    %110 = vmatpush2.msra.mxu0 0.0
    %111 = vmatprep.subr.mxu0 0.0
    %112 = vmatpush2.msra.mxu0 0.0
    %113 = vmatprep.subr.mxu0 0.0
    %114 = vmatpush2.msra.mxu0 0.0
    %115 = vmatprep.subr.mxu0 0.0
    %116 = vmatpush2.msra.mxu0 0.0
    %117 = vmatprep.subr.mxu0 0.0
    %118 = vmatpush2.msra.mxu0 0.0
    %119 = vmatprep.subr.mxu0 0.0
    %120 = vmatpush2.msra.mxu0 0.0
    %121 = vmatprep.subr.mxu0 0.0
    %122 = vmatpush2.msra.mxu0 0.0
    %123 = vmatprep.subr.mxu0 0.0
    %124 = vmatpush2.msra.mxu0 0.0
    %125 = vmatprep.subr.mxu0 0.0
    %126 = vmatpush2.msra.mxu0 0.0
    %127 = vmatprep.subr.mxu0 0.0
    %128 = vmatpush2.msra.mxu0 0.0
    %129 = vmatprep.subr.mxu0 0.0
    %130 = vmatpush2.msra.mxu0 0.0
    %131 = vmatprep.subr.mxu0 0.0
    %132 = vmatpush2.msra.mxu0 0.0
    %133 = vmatprep.subr.mxu0 0.0
    %134 = vmatpush2.msra.mxu0 0.0
    %135 = vmatprep.subr.mxu0 0.0
    %136 = vmatpush2.msra.mxu0 0.0
    %137 = vmatprep.subr.mxu0 0.0
    %138 = vmatpush2.msra.mxu0 0.0
    %139 = vmatprep.mubr.f32.mxu0 0.0
    %140 = vmatmul.mubr.f32.gmra.mxu0 %v60
    %v141 = vpop.f32.mrf.mxu0
    %v142 = vadd.f32 0.0, %v141
    %v143 = vpop.f32.mrf.mxu0
    %144 = vmatprep.mubr.f32.mxu0 0.0
    %145 = vmatmul.mubr.f32.gmra.mxu0 %v63
    %v146 = vpop.f32.mrf.mxu0
    %v147 = vadd.f32 0.0, %v146
    %v148 = vpop.f32.mrf.mxu0
    %149 = vmatprep.mubr.f32.mxu0 0.0
    %150 = vmatmul.mubr.f32.gmra.mxu0 %v66
    %v151 = vpop.f32.mrf.mxu0
    %v152 = vadd.f32 0.0, %v151
    %v153 = vpop.f32.mrf.mxu0
    %154 = vmatprep.mubr.f32.mxu0 0.0
    %155 = vmatmul.mubr.f32.gmra.mxu0 %v69
    %v156 = vpop.f32.mrf.mxu0
    %v157 = vadd.f32 0.0, %v156
    %v158 = vpop.f32.mrf.mxu0
    %159 = vdwg.mxu0
    %v160 = vld [vmem:[%s2] sm:$0xff]
    %s161 = scalar_lea.vmem %s1, 32
    %v162 = vld [vmem:[%s161] sm:$0xff]
    %v163 = vld [vmem:[%s161 + $0x8] sm:$0xff]
    %v164 = vld [vmem:[%s161 + $0x10] sm:$0xff]
    %v165 = vld [vmem:[%s161 + $0x18] sm:$0xff]
    %v167 = vsel %vm58, %v162, 0
    %v170 = vsel %vm58, %v163, 0
    %v173 = vsel %vm58, %v164, 0
    %v176 = vsel %vm58, %v165, 0
    %178 = vmatprep.subr.mxu0 0.0
    %179 = vmatpush1.msra.mxu0 0.0
    %180 = vmatprep.subr.mxu0 0.0
    %181 = vmatpush1.msra.mxu0 0.0
    %182 = vmatprep.subr.mxu0 0.0
    %183 = vmatpush1.msra.mxu0 0.0
    %184 = vmatprep.subr.mxu0 0.0
    %185 = vmatpush1.msra.mxu0 0.0
    %186 = vmatprep.subr.mxu0 0.0
    %187 = vmatpush1.msra.mxu0 0.0
    %188 = vmatprep.subr.mxu0 0.0
    %189 = vmatpush1.msra.mxu0 0.0
    %190 = vmatprep.subr.mxu0 0.0
    %191 = vmatpush1.msra.mxu0 0.0
    %192 = vmatprep.subr.mxu0 0.0
    %193 = vmatpush1.msra.mxu0 0.0
    %194 = vmatprep.subr.mxu0 0.0
    %195 = vmatpush1.msra.mxu0 0.0
    %196 = vmatprep.subr.mxu0 0.0
    %197 = vmatpush1.msra.mxu0 0.0
    %198 = vmatprep.subr.mxu0 0.0
    %199 = vmatpush1.msra.mxu0 0.0
    %200 = vmatprep.subr.mxu0 0.0
    %201 = vmatpush1.msra.mxu0 %v73
    %202 = vmatprep.subr.mxu0 0.0
    %203 = vmatpush1.msra.mxu0 %v52
    %204 = vmatprep.subr.mxu0 0.0
    %205 = vmatpush1.msra.mxu0 %v51
    %206 = vmatprep.subr.mxu0 0.0
    %207 = vmatpush1.msra.mxu0 %v50
    %208 = vmatprep.subr.mxu0 0.0
    %209 = vmatpush1.msra.mxu0 %v49
    %210 = vmatprep.subr.mxu0 0.0
    %211 = vmatpush2.msra.mxu0 0.0
    %212 = vmatprep.subr.mxu0 0.0
    %213 = vmatpush2.msra.mxu0 0.0
    %214 = vmatprep.subr.mxu0 0.0
    %215 = vmatpush2.msra.mxu0 0.0
    %216 = vmatprep.subr.mxu0 0.0
    %217 = vmatpush2.msra.mxu0 0.0
    %218 = vmatprep.subr.mxu0 0.0
    %219 = vmatpush2.msra.mxu0 0.0
    %220 = vmatprep.subr.mxu0 0.0
    %221 = vmatpush2.msra.mxu0 0.0
    %222 = vmatprep.subr.mxu0 0.0
    %223 = vmatpush2.msra.mxu0 0.0
    %224 = vmatprep.subr.mxu0 0.0
    %225 = vmatpush2.msra.mxu0 0.0
    %226 = vmatprep.subr.mxu0 0.0
    %227 = vmatpush2.msra.mxu0 0.0
    %228 = vmatprep.subr.mxu0 0.0
    %229 = vmatpush2.msra.mxu0 0.0
    %230 = vmatprep.subr.mxu0 0.0
    %231 = vmatpush2.msra.mxu0 0.0
    %232 = vmatprep.subr.mxu0 0.0
    %233 = vmatpush2.msra.mxu0 0.0
    %234 = vmatprep.subr.mxu0 0.0
    %235 = vmatpush2.msra.mxu0 0.0
    %236 = vmatprep.subr.mxu0 0.0
    %237 = vmatpush2.msra.mxu0 0.0
    %238 = vmatprep.subr.mxu0 0.0
    %239 = vmatpush2.msra.mxu0 0.0
    %240 = vmatprep.subr.mxu0 0.0
    %241 = vmatpush2.msra.mxu0 0.0
    %242 = vmatprep.mubr.f32.mxu0 0.0
    %243 = vmatmul.mubr.f32.gmra.mxu0 %v167
    %v244 = vpop.f32.mrf.mxu0
    %v245 = vadd.f32 0.0, %v244
    %v246 = vpop.f32.mrf.mxu0
    %247 = vmatprep.mubr.f32.mxu0 0.0
    %248 = vmatmul.mubr.f32.gmra.mxu0 %v170
    %v249 = vpop.f32.mrf.mxu0
    %v250 = vadd.f32 0.0, %v249
    %v251 = vpop.f32.mrf.mxu0
    %252 = vmatprep.mubr.f32.mxu0 0.0
    %253 = vmatmul.mubr.f32.gmra.mxu0 %v173
    %v254 = vpop.f32.mrf.mxu0
    %v255 = vadd.f32 0.0, %v254
    %v256 = vpop.f32.mrf.mxu0
    %257 = vmatprep.mubr.f32.mxu0 0.0
    %258 = vmatmul.mubr.f32.gmra.mxu0 %v176
    %v259 = vpop.f32.mrf.mxu0
    %v260 = vadd.f32 0.0, %v259
    %v261 = vpop.f32.mrf.mxu0
    %262 = vdwg.mxu0
    %s263 = scalar_lea.vmem %s2, 8
    %v264 = vld [vmem:[%s263] sm:$0xff]
    %vm265 = vcmask 64512
    %v267 = vsel %vm265, %v245, 0
    %v270 = vsel %vm265, %v250, 0
    %v273 = vsel %vm265, %v255, 0
    %v276 = vsel %vm265, %v260, 0
    %278 = vmatprep.subr.mxu0 0.0
    %279 = vmatpush1.msra.mxu0 0.0
    %280 = vmatprep.subr.mxu0 0.0
    %281 = vmatpush1.msra.mxu0 0.0
    %282 = vmatprep.subr.mxu0 0.0
    %283 = vmatpush1.msra.mxu0 0.0
    %284 = vmatprep.subr.mxu0 0.0
    %285 = vmatpush1.msra.mxu0 0.0
    %286 = vmatprep.subr.mxu0 0.0
    %287 = vmatpush1.msra.mxu0 0.0
    %288 = vmatprep.subr.mxu0 0.0
    %289 = vmatpush1.msra.mxu0 0.0
    %290 = vmatprep.subr.mxu0 0.0
    %291 = vmatpush1.msra.mxu0 0.0
    %292 = vmatprep.subr.mxu0 0.0
    %293 = vmatpush1.msra.mxu0 0.0
    %294 = vmatprep.subr.mxu0 0.0
    %295 = vmatpush1.msra.mxu0 0.0
    %296 = vmatprep.subr.mxu0 0.0
    %297 = vmatpush1.msra.mxu0 0.0
    %298 = vmatprep.subr.mxu0 0.0
    %299 = vmatpush1.msra.mxu0 0.0
    %300 = vmatprep.subr.mxu0 0.0
    %301 = vmatpush1.msra.mxu0 0.0
    %302 = vmatprep.subr.mxu0 0.0
    %303 = vmatpush1.msra.mxu0 0.0
    %304 = vmatprep.subr.mxu0 0.0
    %305 = vmatpush1.msra.mxu0 0.0
    %306 = vmatprep.subr.mxu0 0.0
    %307 = vmatpush1.msra.mxu0 0.0
    %308 = vmatprep.subr.mxu0 0.0
    %309 = vmatpush1.msra.mxu0 %v264
    %310 = vmatprep.subr.mxu0 0.0
    %311 = vmatpush2.msra.mxu0 0.0
    %312 = vmatprep.subr.mxu0 0.0
    %313 = vmatpush2.msra.mxu0 0.0
    %314 = vmatprep.subr.mxu0 0.0
    %315 = vmatpush2.msra.mxu0 0.0
    %316 = vmatprep.subr.mxu0 0.0
    %317 = vmatpush2.msra.mxu0 0.0
    %318 = vmatprep.subr.mxu0 0.0
    %319 = vmatpush2.msra.mxu0 0.0
    %320 = vmatprep.subr.mxu0 0.0
    %321 = vmatpush2.msra.mxu0 0.0
    %322 = vmatprep.subr.mxu0 0.0
    %323 = vmatpush2.msra.mxu0 0.0
    %324 = vmatprep.subr.mxu0 0.0
    %325 = vmatpush2.msra.mxu0 0.0
    %326 = vmatprep.subr.mxu0 0.0
    %327 = vmatpush2.msra.mxu0 0.0
    %328 = vmatprep.subr.mxu0 0.0
    %329 = vmatpush2.msra.mxu0 0.0
    %330 = vmatprep.subr.mxu0 0.0
    %331 = vmatpush2.msra.mxu0 0.0
    %332 = vmatprep.subr.mxu0 0.0
    %333 = vmatpush2.msra.mxu0 0.0
    %334 = vmatprep.subr.mxu0 0.0
    %335 = vmatpush2.msra.mxu0 0.0
    %336 = vmatprep.subr.mxu0 0.0
    %337 = vmatpush2.msra.mxu0 0.0
    %338 = vmatprep.subr.mxu0 0.0
    %339 = vmatpush2.msra.mxu0 0.0
    %340 = vmatprep.subr.mxu0 0.0
    %341 = vmatpush2.msra.mxu0 0.0
    %342 = vmatprep.mubr.f32.mxu0 0.0
    %343 = vmatmul.mubr.f32.gmra.mxu0 %v267
    %v344 = vpop.f32.mrf.mxu0
    %v345 = vadd.f32 0.0, %v344
    %v346 = vpop.f32.mrf.mxu0
    %347 = vmatprep.mubr.f32.mxu0 0.0
    %348 = vmatmul.mubr.f32.gmra.mxu0 %v270
    %v349 = vpop.f32.mrf.mxu0
    %v350 = vadd.f32 0.0, %v349
    %v351 = vpop.f32.mrf.mxu0
    %352 = vmatprep.mubr.f32.mxu0 0.0
    %353 = vmatmul.mubr.f32.gmra.mxu0 %v273
    %v354 = vpop.f32.mrf.mxu0
    %v355 = vadd.f32 0.0, %v354
    %v356 = vpop.f32.mrf.mxu0
    %357 = vmatprep.mubr.f32.mxu0 0.0
    %358 = vmatmul.mubr.f32.gmra.mxu0 %v276
    %v359 = vpop.f32.mrf.mxu0
    %v360 = vadd.f32 0.0, %v359
    %v361 = vpop.f32.mrf.mxu0
    %362 = vdwg.mxu0
    %v364 = vsel %vm265, %v142, 0
    %v367 = vsel %vm265, %v147, 0
    %v370 = vsel %vm265, %v152, 0
    %v373 = vsel %vm265, %v157, 0
    %375 = vmatprep.subr.mxu0 0.0
    %376 = vmatpush1.msra.mxu0 0.0
    %377 = vmatprep.subr.mxu0 0.0
    %378 = vmatpush1.msra.mxu0 0.0
    %379 = vmatprep.subr.mxu0 0.0
    %380 = vmatpush1.msra.mxu0 0.0
    %381 = vmatprep.subr.mxu0 0.0
    %382 = vmatpush1.msra.mxu0 0.0
    %383 = vmatprep.subr.mxu0 0.0
    %384 = vmatpush1.msra.mxu0 0.0
    %385 = vmatprep.subr.mxu0 0.0
    %386 = vmatpush1.msra.mxu0 0.0
    %387 = vmatprep.subr.mxu0 0.0
    %388 = vmatpush1.msra.mxu0 0.0
    %389 = vmatprep.subr.mxu0 0.0
    %390 = vmatpush1.msra.mxu0 0.0
    %391 = vmatprep.subr.mxu0 0.0
    %392 = vmatpush1.msra.mxu0 0.0
    %393 = vmatprep.subr.mxu0 0.0
    %394 = vmatpush1.msra.mxu0 0.0
    %395 = vmatprep.subr.mxu0 0.0
    %396 = vmatpush1.msra.mxu0 0.0
    %397 = vmatprep.subr.mxu0 0.0
    %398 = vmatpush1.msra.mxu0 0.0
    %399 = vmatprep.subr.mxu0 0.0
    %400 = vmatpush1.msra.mxu0 0.0
    %401 = vmatprep.subr.mxu0 0.0
    %402 = vmatpush1.msra.mxu0 0.0
    %403 = vmatprep.subr.mxu0 0.0
    %404 = vmatpush1.msra.mxu0 0.0
    %405 = vmatprep.subr.mxu0 0.0
    %406 = vmatpush1.msra.mxu0 %v160
    %407 = vmatprep.subr.mxu0 0.0
    %408 = vmatpush2.msra.mxu0 0.0
    %409 = vmatprep.subr.mxu0 0.0
    %410 = vmatpush2.msra.mxu0 0.0
    %411 = vmatprep.subr.mxu0 0.0
    %412 = vmatpush2.msra.mxu0 0.0
    %413 = vmatprep.subr.mxu0 0.0
    %414 = vmatpush2.msra.mxu0 0.0
    %415 = vmatprep.subr.mxu0 0.0
    %416 = vmatpush2.msra.mxu0 0.0
    %417 = vmatprep.subr.mxu0 0.0
    %418 = vmatpush2.msra.mxu0 0.0
    %419 = vmatprep.subr.mxu0 0.0
    %420 = vmatpush2.msra.mxu0 0.0
    %421 = vmatprep.subr.mxu0 0.0
    %422 = vmatpush2.msra.mxu0 0.0
    %423 = vmatprep.subr.mxu0 0.0
    %424 = vmatpush2.msra.mxu0 0.0
    %425 = vmatprep.subr.mxu0 0.0
    %426 = vmatpush2.msra.mxu0 0.0
    %427 = vmatprep.subr.mxu0 0.0
    %428 = vmatpush2.msra.mxu0 0.0
    %429 = vmatprep.subr.mxu0 0.0
    %430 = vmatpush2.msra.mxu0 0.0
    %431 = vmatprep.subr.mxu0 0.0
    %432 = vmatpush2.msra.mxu0 0.0
    %433 = vmatprep.subr.mxu0 0.0
    %434 = vmatpush2.msra.mxu0 0.0
    %435 = vmatprep.subr.mxu0 0.0
    %436 = vmatpush2.msra.mxu0 0.0
    %437 = vmatprep.subr.mxu0 0.0
    %438 = vmatpush2.msra.mxu0 0.0
    %439 = vmatprep.mubr.f32.mxu0 0.0
    %440 = vmatmul.mubr.f32.gmra.mxu0 %v364
    %v441 = vpop.f32.mrf.mxu0
    %v442 = vadd.f32 %v345, %v441
    %v443 = vpop.f32.mrf.mxu0
    %444 = vmatprep.mubr.f32.mxu0 0.0
    %445 = vmatmul.mubr.f32.gmra.mxu0 %v367
    %v446 = vpop.f32.mrf.mxu0
    %v447 = vadd.f32 %v350, %v446
    %v448 = vpop.f32.mrf.mxu0
    %449 = vmatprep.mubr.f32.mxu0 0.0
    %450 = vmatmul.mubr.f32.gmra.mxu0 %v370
    %v451 = vpop.f32.mrf.mxu0
    %v452 = vadd.f32 %v355, %v451
    %v453 = vpop.f32.mrf.mxu0
    %454 = vmatprep.mubr.f32.mxu0 0.0
    %455 = vmatmul.mubr.f32.gmra.mxu0 %v373
    %v456 = vpop.f32.mrf.mxu0
    %v457 = vadd.f32 %v360, %v456
    %v458 = vpop.f32.mrf.mxu0
    %459 = vdwg.mxu0
    %s460 = scalar_lea.vmem %s1, 64
    %v461 = vld [vmem:[%s460] sm:$0xff]
    %v462 = vld [vmem:[%s460 + $0x8] sm:$0xff]
    %v463 = vld [vmem:[%s460 + $0x10] sm:$0xff]
    %v464 = vld [vmem:[%s460 + $0x18] sm:$0xff]
    %v466 = vsel %vm58, %v461, 0
    %v469 = vsel %vm58, %v462, 0
    %v472 = vsel %vm58, %v463, 0
    %v475 = vsel %vm58, %v464, 0
    %477 = vmatprep.subr.mxu0 0.0
    %478 = vmatpush1.msra.mxu0 0.0
    %479 = vmatprep.subr.mxu0 0.0
    %480 = vmatpush1.msra.mxu0 0.0
    %481 = vmatprep.subr.mxu0 0.0
    %482 = vmatpush1.msra.mxu0 0.0
    %483 = vmatprep.subr.mxu0 0.0
    %484 = vmatpush1.msra.mxu0 0.0
    %485 = vmatprep.subr.mxu0 0.0
    %486 = vmatpush1.msra.mxu0 0.0
    %487 = vmatprep.subr.mxu0 0.0
    %488 = vmatpush1.msra.mxu0 0.0
    %489 = vmatprep.subr.mxu0 0.0
    %490 = vmatpush1.msra.mxu0 0.0
    %491 = vmatprep.subr.mxu0 0.0
    %492 = vmatpush1.msra.mxu0 0.0
    %493 = vmatprep.subr.mxu0 0.0
    %494 = vmatpush1.msra.mxu0 0.0
    %495 = vmatprep.subr.mxu0 0.0
    %496 = vmatpush1.msra.mxu0 0.0
    %497 = vmatprep.subr.mxu0 0.0
    %498 = vmatpush1.msra.mxu0 0.0
    %499 = vmatprep.subr.mxu0 0.0
    %500 = vmatpush1.msra.mxu0 %v73
    %501 = vmatprep.subr.mxu0 0.0
    %502 = vmatpush1.msra.mxu0 %v52
    %503 = vmatprep.subr.mxu0 0.0
    %504 = vmatpush1.msra.mxu0 %v51
    %505 = vmatprep.subr.mxu0 0.0
    %506 = vmatpush1.msra.mxu0 %v50
    %507 = vmatprep.subr.mxu0 0.0
    %508 = vmatpush1.msra.mxu0 %v49
    %509 = vmatprep.subr.mxu0 0.0
    %510 = vmatpush2.msra.mxu0 0.0
    %511 = vmatprep.subr.mxu0 0.0
    %512 = vmatpush2.msra.mxu0 0.0
    %513 = vmatprep.subr.mxu0 0.0
    %514 = vmatpush2.msra.mxu0 0.0
    %515 = vmatprep.subr.mxu0 0.0
    %516 = vmatpush2.msra.mxu0 0.0
    %517 = vmatprep.subr.mxu0 0.0
    %518 = vmatpush2.msra.mxu0 0.0
    %519 = vmatprep.subr.mxu0 0.0
    %520 = vmatpush2.msra.mxu0 0.0
    %521 = vmatprep.subr.mxu0 0.0
    %522 = vmatpush2.msra.mxu0 0.0
    %523 = vmatprep.subr.mxu0 0.0
    %524 = vmatpush2.msra.mxu0 0.0
    %525 = vmatprep.subr.mxu0 0.0
    %526 = vmatpush2.msra.mxu0 0.0
    %527 = vmatprep.subr.mxu0 0.0
    %528 = vmatpush2.msra.mxu0 0.0
    %529 = vmatprep.subr.mxu0 0.0
    %530 = vmatpush2.msra.mxu0 0.0
    %531 = vmatprep.subr.mxu0 0.0
    %532 = vmatpush2.msra.mxu0 0.0
    %533 = vmatprep.subr.mxu0 0.0
    %534 = vmatpush2.msra.mxu0 0.0
    %535 = vmatprep.subr.mxu0 0.0
    %536 = vmatpush2.msra.mxu0 0.0
    %537 = vmatprep.subr.mxu0 0.0
    %538 = vmatpush2.msra.mxu0 0.0
    %539 = vmatprep.subr.mxu0 0.0
    %540 = vmatpush2.msra.mxu0 0.0
    %541 = vmatprep.mubr.f32.mxu0 0.0
    %542 = vmatmul.mubr.f32.gmra.mxu0 %v466
    %v543 = vpop.f32.mrf.mxu0
    %v544 = vadd.f32 0.0, %v543
    %v545 = vpop.f32.mrf.mxu0
    %546 = vmatprep.mubr.f32.mxu0 0.0
    %547 = vmatmul.mubr.f32.gmra.mxu0 %v469
    %v548 = vpop.f32.mrf.mxu0
    %v549 = vadd.f32 0.0, %v548
    %v550 = vpop.f32.mrf.mxu0
    %551 = vmatprep.mubr.f32.mxu0 0.0
    %552 = vmatmul.mubr.f32.gmra.mxu0 %v472
    %v553 = vpop.f32.mrf.mxu0
    %v554 = vadd.f32 0.0, %v553
    %v555 = vpop.f32.mrf.mxu0
    %556 = vmatprep.mubr.f32.mxu0 0.0
    %557 = vmatmul.mubr.f32.gmra.mxu0 %v475
    %v558 = vpop.f32.mrf.mxu0
    %v559 = vadd.f32 0.0, %v558
    %v560 = vpop.f32.mrf.mxu0
    %561 = vdwg.mxu0
    %s562 = scalar_lea.vmem %s2, 16
    %v563 = vld [vmem:[%s562] sm:$0xff]
    %v565 = vsel %vm265, %v544, 0
    %v568 = vsel %vm265, %v549, 0
    %v571 = vsel %vm265, %v554, 0
    %v574 = vsel %vm265, %v559, 0
    %576 = vmatprep.subr.mxu0 0.0
    %577 = vmatpush1.msra.mxu0 0.0
    %578 = vmatprep.subr.mxu0 0.0
    %579 = vmatpush1.msra.mxu0 0.0
    %580 = vmatprep.subr.mxu0 0.0
    %581 = vmatpush1.msra.mxu0 0.0
    %582 = vmatprep.subr.mxu0 0.0
    %583 = vmatpush1.msra.mxu0 0.0
    %584 = vmatprep.subr.mxu0 0.0
    %585 = vmatpush1.msra.mxu0 0.0
    %586 = vmatprep.subr.mxu0 0.0
    %587 = vmatpush1.msra.mxu0 0.0
    %588 = vmatprep.subr.mxu0 0.0
    %589 = vmatpush1.msra.mxu0 0.0
    %590 = vmatprep.subr.mxu0 0.0
    %591 = vmatpush1.msra.mxu0 0.0
    %592 = vmatprep.subr.mxu0 0.0
    %593 = vmatpush1.msra.mxu0 0.0
    %594 = vmatprep.subr.mxu0 0.0
    %595 = vmatpush1.msra.mxu0 0.0
    %596 = vmatprep.subr.mxu0 0.0
    %597 = vmatpush1.msra.mxu0 0.0
    %598 = vmatprep.subr.mxu0 0.0
    %599 = vmatpush1.msra.mxu0 0.0
    %600 = vmatprep.subr.mxu0 0.0
    %601 = vmatpush1.msra.mxu0 0.0
    %602 = vmatprep.subr.mxu0 0.0
    %603 = vmatpush1.msra.mxu0 0.0
    %604 = vmatprep.subr.mxu0 0.0
    %605 = vmatpush1.msra.mxu0 0.0
    %606 = vmatprep.subr.mxu0 0.0
    %607 = vmatpush1.msra.mxu0 %v563
    %608 = vmatprep.subr.mxu0 0.0
    %609 = vmatpush2.msra.mxu0 0.0
    %610 = vmatprep.subr.mxu0 0.0
    %611 = vmatpush2.msra.mxu0 0.0
    %612 = vmatprep.subr.mxu0 0.0
    %613 = vmatpush2.msra.mxu0 0.0
    %614 = vmatprep.subr.mxu0 0.0
    %615 = vmatpush2.msra.mxu0 0.0
    %616 = vmatprep.subr.mxu0 0.0
    %617 = vmatpush2.msra.mxu0 0.0
    %618 = vmatprep.subr.mxu0 0.0
    %619 = vmatpush2.msra.mxu0 0.0
    %620 = vmatprep.subr.mxu0 0.0
    %621 = vmatpush2.msra.mxu0 0.0
    %622 = vmatprep.subr.mxu0 0.0
    %623 = vmatpush2.msra.mxu0 0.0
    %624 = vmatprep.subr.mxu0 0.0
    %625 = vmatpush2.msra.mxu0 0.0
    %626 = vmatprep.subr.mxu0 0.0
    %627 = vmatpush2.msra.mxu0 0.0
    %628 = vmatprep.subr.mxu0 0.0
    %629 = vmatpush2.msra.mxu0 0.0
    %630 = vmatprep.subr.mxu0 0.0
    %631 = vmatpush2.msra.mxu0 0.0
    %632 = vmatprep.subr.mxu0 0.0
    %633 = vmatpush2.msra.mxu0 0.0
    %634 = vmatprep.subr.mxu0 0.0
    %635 = vmatpush2.msra.mxu0 0.0
    %636 = vmatprep.subr.mxu0 0.0
    %637 = vmatpush2.msra.mxu0 0.0
    %638 = vmatprep.subr.mxu0 0.0
    %639 = vmatpush2.msra.mxu0 0.0
    %640 = vmatprep.mubr.f32.mxu0 0.0
    %641 = vmatmul.mubr.f32.gmra.mxu0 %v565
    %v642 = vpop.f32.mrf.mxu0
    %v643 = vadd.f32 0.0, %v642
    %v644 = vpop.f32.mrf.mxu0
    %645 = vmatprep.mubr.f32.mxu0 0.0
    %646 = vmatmul.mubr.f32.gmra.mxu0 %v568
    %v647 = vpop.f32.mrf.mxu0
    %v648 = vadd.f32 0.0, %v647
    %v649 = vpop.f32.mrf.mxu0
    %650 = vmatprep.mubr.f32.mxu0 0.0
    %651 = vmatmul.mubr.f32.gmra.mxu0 %v571
    %v652 = vpop.f32.mrf.mxu0
    %v653 = vadd.f32 0.0, %v652
    %v654 = vpop.f32.mrf.mxu0
    %655 = vmatprep.mubr.f32.mxu0 0.0
    %656 = vmatmul.mubr.f32.gmra.mxu0 %v574
    %v657 = vpop.f32.mrf.mxu0
    %v658 = vadd.f32 0.0, %v657
    %v659 = vpop.f32.mrf.mxu0
    %660 = vdwg.mxu0
    %v661 = vadd.f32 %v442, %v643
    %v662 = vadd.f32 %v447, %v648
    %v663 = vadd.f32 %v452, %v653
    %v664 = vadd.f32 %v457, %v658
    %s665 = scalar_lea.vmem %s1, 96
    %v666 = vld [vmem:[%s665] sm:$0xff]
    %v667 = vld [vmem:[%s665 + $0x8] sm:$0xff]
    %v668 = vld [vmem:[%s665 + $0x10] sm:$0xff]
    %v669 = vld [vmem:[%s665 + $0x18] sm:$0xff]
    %v671 = vsel %vm58, %v666, 0
    %v674 = vsel %vm58, %v667, 0
    %v677 = vsel %vm58, %v668, 0
    %v680 = vsel %vm58, %v669, 0
    %682 = vmatprep.subr.mxu0 0.0
    %683 = vmatpush1.msra.mxu0 0.0
    %684 = vmatprep.subr.mxu0 0.0
    %685 = vmatpush1.msra.mxu0 0.0
    %686 = vmatprep.subr.mxu0 0.0
    %687 = vmatpush1.msra.mxu0 0.0
    %688 = vmatprep.subr.mxu0 0.0
    %689 = vmatpush1.msra.mxu0 0.0
    %690 = vmatprep.subr.mxu0 0.0
    %691 = vmatpush1.msra.mxu0 0.0
    %692 = vmatprep.subr.mxu0 0.0
    %693 = vmatpush1.msra.mxu0 0.0
    %694 = vmatprep.subr.mxu0 0.0
    %695 = vmatpush1.msra.mxu0 0.0
    %696 = vmatprep.subr.mxu0 0.0
    %697 = vmatpush1.msra.mxu0 0.0
    %698 = vmatprep.subr.mxu0 0.0
    %699 = vmatpush1.msra.mxu0 0.0
    %700 = vmatprep.subr.mxu0 0.0
    %701 = vmatpush1.msra.mxu0 0.0
    %702 = vmatprep.subr.mxu0 0.0
    %703 = vmatpush1.msra.mxu0 0.0
    %704 = vmatprep.subr.mxu0 0.0
    %705 = vmatpush1.msra.mxu0 %v73
    %706 = vmatprep.subr.mxu0 0.0
    %707 = vmatpush1.msra.mxu0 %v52
    %708 = vmatprep.subr.mxu0 0.0
    %709 = vmatpush1.msra.mxu0 %v51
    %710 = vmatprep.subr.mxu0 0.0
    %711 = vmatpush1.msra.mxu0 %v50
    %712 = vmatprep.subr.mxu0 0.0
    %713 = vmatpush1.msra.mxu0 %v49
    %714 = vmatprep.subr.mxu0 0.0
    %715 = vmatpush2.msra.mxu0 0.0
    %716 = vmatprep.subr.mxu0 0.0
    %717 = vmatpush2.msra.mxu0 0.0
    %718 = vmatprep.subr.mxu0 0.0
    %719 = vmatpush2.msra.mxu0 0.0
    %720 = vmatprep.subr.mxu0 0.0
    %721 = vmatpush2.msra.mxu0 0.0
    %722 = vmatprep.subr.mxu0 0.0
    %723 = vmatpush2.msra.mxu0 0.0
    %724 = vmatprep.subr.mxu0 0.0
    %725 = vmatpush2.msra.mxu0 0.0
    %726 = vmatprep.subr.mxu0 0.0
    %727 = vmatpush2.msra.mxu0 0.0
    %728 = vmatprep.subr.mxu0 0.0
    %729 = vmatpush2.msra.mxu0 0.0
    %730 = vmatprep.subr.mxu0 0.0
    %731 = vmatpush2.msra.mxu0 0.0
    %732 = vmatprep.subr.mxu0 0.0
    %733 = vmatpush2.msra.mxu0 0.0
    %734 = vmatprep.subr.mxu0 0.0
    %735 = vmatpush2.msra.mxu0 0.0
    %736 = vmatprep.subr.mxu0 0.0
    %737 = vmatpush2.msra.mxu0 0.0
    %738 = vmatprep.subr.mxu0 0.0
    %739 = vmatpush2.msra.mxu0 0.0
    %740 = vmatprep.subr.mxu0 0.0
    %741 = vmatpush2.msra.mxu0 0.0
    %742 = vmatprep.subr.mxu0 0.0
    %743 = vmatpush2.msra.mxu0 0.0
    %744 = vmatprep.subr.mxu0 0.0
    %745 = vmatpush2.msra.mxu0 0.0
    %746 = vmatprep.mubr.f32.mxu0 0.0
    %747 = vmatmul.mubr.f32.gmra.mxu0 %v671
    %v748 = vpop.f32.mrf.mxu0
    %v749 = vadd.f32 0.0, %v748
    %v750 = vpop.f32.mrf.mxu0
    %751 = vmatprep.mubr.f32.mxu0 0.0
    %752 = vmatmul.mubr.f32.gmra.mxu0 %v674
    %v753 = vpop.f32.mrf.mxu0
    %v754 = vadd.f32 0.0, %v753
    %v755 = vpop.f32.mrf.mxu0
    %756 = vmatprep.mubr.f32.mxu0 0.0
    %757 = vmatmul.mubr.f32.gmra.mxu0 %v677
    %v758 = vpop.f32.mrf.mxu0
    %v759 = vadd.f32 0.0, %v758
    %v760 = vpop.f32.mrf.mxu0
    %761 = vmatprep.mubr.f32.mxu0 0.0
    %762 = vmatmul.mubr.f32.gmra.mxu0 %v680
    %v763 = vpop.f32.mrf.mxu0
    %v764 = vadd.f32 0.0, %v763
    %v765 = vpop.f32.mrf.mxu0
    %766 = vdwg.mxu0
    %s767 = scalar_lea.vmem %s2, 24
    %v768 = vld [vmem:[%s767] sm:$0xff]
    %v770 = vsel %vm265, %v749, 0
    %v773 = vsel %vm265, %v754, 0
    %v776 = vsel %vm265, %v759, 0
    %v779 = vsel %vm265, %v764, 0
    %781 = vmatprep.subr.mxu0 0.0
    %782 = vmatpush1.msra.mxu0 0.0
    %783 = vmatprep.subr.mxu0 0.0
    %784 = vmatpush1.msra.mxu0 0.0
    %785 = vmatprep.subr.mxu0 0.0
    %786 = vmatpush1.msra.mxu0 0.0
    %787 = vmatprep.subr.mxu0 0.0
    %788 = vmatpush1.msra.mxu0 0.0
    %789 = vmatprep.subr.mxu0 0.0
    %790 = vmatpush1.msra.mxu0 0.0
    %791 = vmatprep.subr.mxu0 0.0
    %792 = vmatpush1.msra.mxu0 0.0
    %793 = vmatprep.subr.mxu0 0.0
    %794 = vmatpush1.msra.mxu0 0.0
    %795 = vmatprep.subr.mxu0 0.0
    %796 = vmatpush1.msra.mxu0 0.0
    %797 = vmatprep.subr.mxu0 0.0
    %798 = vmatpush1.msra.mxu0 0.0
    %799 = vmatprep.subr.mxu0 0.0
    %800 = vmatpush1.msra.mxu0 0.0
    %801 = vmatprep.subr.mxu0 0.0
    %802 = vmatpush1.msra.mxu0 0.0
    %803 = vmatprep.subr.mxu0 0.0
    %804 = vmatpush1.msra.mxu0 0.0
    %805 = vmatprep.subr.mxu0 0.0
    %806 = vmatpush1.msra.mxu0 0.0
    %807 = vmatprep.subr.mxu0 0.0
    %808 = vmatpush1.msra.mxu0 0.0
    %809 = vmatprep.subr.mxu0 0.0
    %810 = vmatpush1.msra.mxu0 0.0
    %811 = vmatprep.subr.mxu0 0.0
    %812 = vmatpush1.msra.mxu0 %v768
    %813 = vmatprep.subr.mxu0 0.0
    %814 = vmatpush2.msra.mxu0 0.0
    %815 = vmatprep.subr.mxu0 0.0
    %816 = vmatpush2.msra.mxu0 0.0
    %817 = vmatprep.subr.mxu0 0.0
    %818 = vmatpush2.msra.mxu0 0.0
    %819 = vmatprep.subr.mxu0 0.0
    %820 = vmatpush2.msra.mxu0 0.0
    %821 = vmatprep.subr.mxu0 0.0
    %822 = vmatpush2.msra.mxu0 0.0
    %823 = vmatprep.subr.mxu0 0.0
    %824 = vmatpush2.msra.mxu0 0.0
    %825 = vmatprep.subr.mxu0 0.0
    %826 = vmatpush2.msra.mxu0 0.0
    %827 = vmatprep.subr.mxu0 0.0
    %828 = vmatpush2.msra.mxu0 0.0
    %829 = vmatprep.subr.mxu0 0.0
    %830 = vmatpush2.msra.mxu0 0.0
    %831 = vmatprep.subr.mxu0 0.0
    %832 = vmatpush2.msra.mxu0 0.0
    %833 = vmatprep.subr.mxu0 0.0
    %834 = vmatpush2.msra.mxu0 0.0
    %835 = vmatprep.subr.mxu0 0.0
    %836 = vmatpush2.msra.mxu0 0.0
    %837 = vmatprep.subr.mxu0 0.0
    %838 = vmatpush2.msra.mxu0 0.0
    %839 = vmatprep.subr.mxu0 0.0
    %840 = vmatpush2.msra.mxu0 0.0
    %841 = vmatprep.subr.mxu0 0.0
    %842 = vmatpush2.msra.mxu0 0.0
    %843 = vmatprep.subr.mxu0 0.0
    %844 = vmatpush2.msra.mxu0 0.0
    %845 = vmatprep.mubr.f32.mxu0 0.0
    %846 = vmatmul.mubr.f32.gmra.mxu0 %v770
    %v847 = vpop.f32.mrf.mxu0
    %v848 = vadd.f32 0.0, %v847
    %v849 = vpop.f32.mrf.mxu0
    %850 = vmatprep.mubr.f32.mxu0 0.0
    %851 = vmatmul.mubr.f32.gmra.mxu0 %v773
    %v852 = vpop.f32.mrf.mxu0
    %v853 = vadd.f32 0.0, %v852
    %v854 = vpop.f32.mrf.mxu0
    %855 = vmatprep.mubr.f32.mxu0 0.0
    %856 = vmatmul.mubr.f32.gmra.mxu0 %v776
    %v857 = vpop.f32.mrf.mxu0
    %v858 = vadd.f32 0.0, %v857
    %v859 = vpop.f32.mrf.mxu0
    %860 = vmatprep.mubr.f32.mxu0 0.0
    %861 = vmatmul.mubr.f32.gmra.mxu0 %v779
    %v862 = vpop.f32.mrf.mxu0
    %v863 = vadd.f32 0.0, %v862
    %v864 = vpop.f32.mrf.mxu0
    %865 = vdwg.mxu0
    %v866 = vadd.f32 %v661, %v848
    %v867 = vadd.f32 %v662, %v853
    %v868 = vadd.f32 %v663, %v858
    %v869 = vadd.f32 %v664, %v863
    %v870 = vmul.f32 %v866, %v866
    %v871 = vmul.f32 %v867, %v867
    %v872 = vmul.f32 %v868, %v868
    %v873 = vmul.f32 %v869, %v869
    %878 = vrot.lane.b32.xlu0 %v870, 112
    %v879 = vpop.permute.xlu0 %878
    %880 = vrot.lane.b32.xlu0 %v871, 112
    %v881 = vpop.permute.xlu0 %880
    %882 = vrot.lane.b32.xlu0 %v872, 112
    %v883 = vpop.permute.xlu0 %882
    %884 = vrot.lane.b32.xlu0 %v873, 112
    %v885 = vpop.permute.xlu0 %884
    %v890 = vadd.f32 %v870, %v879
    %v891 = vadd.f32 %v871, %v881
    %v892 = vadd.f32 %v872, %v883
    %v893 = vadd.f32 %v873, %v885
    %vm894 = vcmp.gt.f32.partialorder %v890, 0.0
    %vm895 = vcmp.gt.f32.partialorder %v891, 0.0
    %vm896 = vcmp.gt.f32.partialorder %v892, 0.0
    %vm897 = vcmp.gt.f32.partialorder %v893, 0.0
    %v898 = vsel %vm894, %v890, 1.0
    %v899 = vsel %vm895, %v891, 1.0
    %v900 = vsel %vm896, %v892, 1.0
    %v901 = vsel %vm897, %v893, 1.0
    %v902 = vrsqrt.pop %v898
    %v903 = vmul.f32 %v898, %v902
    %vm904 = vcmp.eq.f32.partialorder %v898, inf
    %v905 = vsel %vm904, %v898, %v903
    %vm906 = vcmp.eq.f32.partialorder %v898, 0.0
    %v907 = vand.u32 %v898, 2147483648
    %v908 = vsel %vm906, %v907, %v905
    %v909 = vrsqrt.pop %v899
    %v910 = vmul.f32 %v899, %v909
    %vm911 = vcmp.eq.f32.partialorder %v899, inf
    %v912 = vsel %vm911, %v899, %v910
    %vm913 = vcmp.eq.f32.partialorder %v899, 0.0
    %v914 = vand.u32 %v899, 2147483648
    %v915 = vsel %vm913, %v914, %v912
    %v916 = vrsqrt.pop %v900
    %v917 = vmul.f32 %v900, %v916
    %vm918 = vcmp.eq.f32.partialorder %v900, inf
    %v919 = vsel %vm918, %v900, %v917
    %vm920 = vcmp.eq.f32.partialorder %v900, 0.0
    %v921 = vand.u32 %v900, 2147483648
    %v922 = vsel %vm920, %v921, %v919
    %v923 = vrsqrt.pop %v901
    %v924 = vmul.f32 %v901, %v923
    %vm925 = vcmp.eq.f32.partialorder %v901, inf
    %v926 = vsel %vm925, %v901, %v924
    %vm927 = vcmp.eq.f32.partialorder %v901, 0.0
    %v928 = vand.u32 %v901, 2147483648
    %v929 = vsel %vm927, %v928, %v926
    %v930 = vrsqrt.pop %v908
    %v931 = vrsqrt.pop %v915
    %v932 = vrsqrt.pop %v922
    %v933 = vrsqrt.pop %v929
    %v934 = vsel %vm894, %v930, 0.0
    %v935 = vsel %vm895, %v931, 0.0
    %v936 = vsel %vm896, %v932, 0.0
    %v937 = vsel %vm897, %v933, 0.0
    %v938 = vmul.f32 %v934, 0.15
    %v939 = vmul.f32 %v935, 0.15
    %v940 = vmul.f32 %v936, 0.15
    %v941 = vmul.f32 %v937, 0.15
    %v942 = vmul.f32 %v866, %v938
    %v943 = vmul.f32 %v867, %v939
    %v944 = vmul.f32 %v868, %v940
    %v945 = vmul.f32 %v869, %v941
    %950 = vrot.lane.b32.xlu0 %v938, 16
    %v951 = vpop.permute.xlu0 %950
    %952 = vrot.lane.b32.xlu0 %v939, 16
    %v953 = vpop.permute.xlu0 %952
    %954 = vrot.lane.b32.xlu0 %v940, 16
    %v955 = vpop.permute.xlu0 %954
    %956 = vrot.lane.b32.xlu0 %v941, 16
    %v957 = vpop.permute.xlu0 %956
    %v962 = vmul.f32 %v866, %v951
    %v963 = vmul.f32 %v867, %v953
    %v964 = vmul.f32 %v868, %v955
    %v965 = vmul.f32 %v869, %v957
    %vm966 = vcmask 130048
    %v967 = vsel %vm966, %v942, %v962
    %v968 = vsel %vm966, %v943, %v963
    %v969 = vsel %vm966, %v944, %v964
    %v970 = vsel %vm966, %v945, %v965
    %s971 = scalar_lea.vmem %s4, 32
    %v972 = vld [vmem:[%s971] sm:$0xff]
    %v973 = vld [vmem:[%s971 + $0x8] sm:$0xff]
    %v974 = vld [vmem:[%s971 + $0x10] sm:$0xff]
    %v975 = vld [vmem:[%s971 + $0x18] sm:$0xff]
    %v976 = vld [vmem:[%s3] sm:$0xff]
    %v977 = vld [vmem:[%s3 + $0x8] sm:$0xff]
    %v978 = vld [vmem:[%s3 + $0x10] sm:$0xff]
    %v979 = vld [vmem:[%s3 + $0x18] sm:$0xff]
    %vm980 = vcmask 261120
    %v982 = vsel %vm980, %v976, 0
    %v985 = vsel %vm980, %v977, 0
    %v988 = vsel %vm980, %v978, 0
    %v991 = vsel %vm980, %v979, 0
    %993 = vmatprep.subr.mxu0 0.0
    %994 = vmatpush1.msra.mxu0 0.0
    %995 = vmatprep.subr.mxu0 0.0
    %996 = vmatpush1.msra.mxu0 0.0
    %997 = vmatprep.subr.mxu0 0.0
    %998 = vmatpush1.msra.mxu0 0.0
    %999 = vmatprep.subr.mxu0 0.0
    %1000 = vmatpush1.msra.mxu0 0.0
    %1001 = vmatprep.subr.mxu0 0.0
    %1002 = vmatpush1.msra.mxu0 0.0
    %1003 = vmatprep.subr.mxu0 0.0
    %1004 = vmatpush1.msra.mxu0 0.0
    %1005 = vmatprep.subr.mxu0 0.0
    %1006 = vmatpush1.msra.mxu0 0.0
    %1007 = vmatprep.subr.mxu0 0.0
    %1008 = vmatpush1.msra.mxu0 0.0
    %1009 = vmatprep.subr.mxu0 0.0
    %1010 = vmatpush1.msra.mxu0 0.0
    %1011 = vmatprep.subr.mxu0 0.0
    %1012 = vmatpush1.msra.mxu0 0.0
    %1013 = vmatprep.subr.mxu0 0.0
    %1014 = vmatpush1.msra.mxu0 0.0
    %1015 = vmatprep.subr.mxu0 0.0
    %1016 = vmatpush1.msra.mxu0 0.0
    %1017 = vmatprep.subr.mxu0 0.0
    %1018 = vmatpush1.msra.mxu0 %v970
    %1019 = vmatprep.subr.mxu0 0.0
    %1020 = vmatpush1.msra.mxu0 %v969
    %1021 = vmatprep.subr.mxu0 0.0
    %1022 = vmatpush1.msra.mxu0 %v968
    %1023 = vmatprep.subr.mxu0 0.0
    %1024 = vmatpush1.msra.mxu0 %v967
    %1025 = vmatprep.subr.mxu0 0.0
    %1026 = vmatpush2.msra.mxu0 0.0
    %1027 = vmatprep.subr.mxu0 0.0
    %1028 = vmatpush2.msra.mxu0 0.0
    %1029 = vmatprep.subr.mxu0 0.0
    %1030 = vmatpush2.msra.mxu0 0.0
    %1031 = vmatprep.subr.mxu0 0.0
    %1032 = vmatpush2.msra.mxu0 0.0
    %1033 = vmatprep.subr.mxu0 0.0
    %1034 = vmatpush2.msra.mxu0 0.0
    %1035 = vmatprep.subr.mxu0 0.0
    %1036 = vmatpush2.msra.mxu0 0.0
    %1037 = vmatprep.subr.mxu0 0.0
    %1038 = vmatpush2.msra.mxu0 0.0
    %1039 = vmatprep.subr.mxu0 0.0
    %1040 = vmatpush2.msra.mxu0 0.0
    %1041 = vmatprep.subr.mxu0 0.0
    %1042 = vmatpush2.msra.mxu0 0.0
    %1043 = vmatprep.subr.mxu0 0.0
    %1044 = vmatpush2.msra.mxu0 0.0
    %1045 = vmatprep.subr.mxu0 0.0
    %1046 = vmatpush2.msra.mxu0 0.0
    %1047 = vmatprep.subr.mxu0 0.0
    %1048 = vmatpush2.msra.mxu0 0.0
    %1049 = vmatprep.subr.mxu0 0.0
    %1050 = vmatpush2.msra.mxu0 0.0
    %1051 = vmatprep.subr.mxu0 0.0
    %1052 = vmatpush2.msra.mxu0 0.0
    %1053 = vmatprep.subr.mxu0 0.0
    %1054 = vmatpush2.msra.mxu0 0.0
    %1055 = vmatprep.subr.mxu0 0.0
    %1056 = vmatpush2.msra.mxu0 0.0
    %1057 = vmatprep.mubr.f32.mxu0 0.0
    %1058 = vmatmul.mubr.f32.gmra.mxu0 %v982
    %v1059 = vpop.f32.mrf.mxu0
    %v1060 = vadd.f32 0.0, %v1059
    %v1061 = vpop.f32.mrf.mxu0
    %1062 = vmatprep.mubr.f32.mxu0 0.0
    %1063 = vmatmul.mubr.f32.gmra.mxu0 %v985
    %v1064 = vpop.f32.mrf.mxu0
    %v1065 = vadd.f32 0.0, %v1064
    %v1066 = vpop.f32.mrf.mxu0
    %1067 = vmatprep.mubr.f32.mxu0 0.0
    %1068 = vmatmul.mubr.f32.gmra.mxu0 %v988
    %v1069 = vpop.f32.mrf.mxu0
    %v1070 = vadd.f32 0.0, %v1069
    %v1071 = vpop.f32.mrf.mxu0
    %1072 = vmatprep.mubr.f32.mxu0 0.0
    %1073 = vmatmul.mubr.f32.gmra.mxu0 %v991
    %v1074 = vpop.f32.mrf.mxu0
    %v1075 = vadd.f32 0.0, %v1074
    %v1076 = vpop.f32.mrf.mxu0
    %1077 = vdwg.mxu0
    %v1078 = vld [vmem:[%s4] sm:$0xff]
    %v1079 = vld [vmem:[%s4 + $0x8] sm:$0xff]
    %v1080 = vld [vmem:[%s4 + $0x10] sm:$0xff]
    %v1081 = vld [vmem:[%s4 + $0x18] sm:$0xff]
    %v1083 = vsel %vm980, %v1060, 0
    %v1086 = vsel %vm980, %v1065, 0
    %v1089 = vsel %vm980, %v1070, 0
    %v1092 = vsel %vm980, %v1075, 0
    %1094 = vmatprep.subr.mxu0 0.0
    %1095 = vmatpush1.msra.mxu0 0.0
    %1096 = vmatprep.subr.mxu0 0.0
    %1097 = vmatpush1.msra.mxu0 0.0
    %1098 = vmatprep.subr.mxu0 0.0
    %1099 = vmatpush1.msra.mxu0 0.0
    %1100 = vmatprep.subr.mxu0 0.0
    %1101 = vmatpush1.msra.mxu0 0.0
    %1102 = vmatprep.subr.mxu0 0.0
    %1103 = vmatpush1.msra.mxu0 0.0
    %1104 = vmatprep.subr.mxu0 0.0
    %1105 = vmatpush1.msra.mxu0 0.0
    %1106 = vmatprep.subr.mxu0 0.0
    %1107 = vmatpush1.msra.mxu0 0.0
    %1108 = vmatprep.subr.mxu0 0.0
    %1109 = vmatpush1.msra.mxu0 0.0
    %1110 = vmatprep.subr.mxu0 0.0
    %1111 = vmatpush1.msra.mxu0 0.0
    %1112 = vmatprep.subr.mxu0 0.0
    %1113 = vmatpush1.msra.mxu0 0.0
    %1114 = vmatprep.subr.mxu0 0.0
    %1115 = vmatpush1.msra.mxu0 0.0
    %1116 = vmatprep.subr.mxu0 0.0
    %1117 = vmatpush1.msra.mxu0 0.0
    %1118 = vmatprep.subr.mxu0 0.0
    %1119 = vmatpush1.msra.mxu0 %v1081
    %1120 = vmatprep.subr.mxu0 0.0
    %1121 = vmatpush1.msra.mxu0 %v1080
    %1122 = vmatprep.subr.mxu0 0.0
    %1123 = vmatpush1.msra.mxu0 %v1079
    %1124 = vmatprep.subr.mxu0 0.0
    %1125 = vmatpush1.msra.mxu0 %v1078
    %1126 = vmatprep.subr.mxu0 0.0
    %1127 = vmatpush2.msra.mxu0 0.0
    %1128 = vmatprep.subr.mxu0 0.0
    %1129 = vmatpush2.msra.mxu0 0.0
    %1130 = vmatprep.subr.mxu0 0.0
    %1131 = vmatpush2.msra.mxu0 0.0
    %1132 = vmatprep.subr.mxu0 0.0
    %1133 = vmatpush2.msra.mxu0 0.0
    %1134 = vmatprep.subr.mxu0 0.0
    %1135 = vmatpush2.msra.mxu0 0.0
    %1136 = vmatprep.subr.mxu0 0.0
    %1137 = vmatpush2.msra.mxu0 0.0
    %1138 = vmatprep.subr.mxu0 0.0
    %1139 = vmatpush2.msra.mxu0 0.0
    %1140 = vmatprep.subr.mxu0 0.0
    %1141 = vmatpush2.msra.mxu0 0.0
    %1142 = vmatprep.subr.mxu0 0.0
    %1143 = vmatpush2.msra.mxu0 0.0
    %1144 = vmatprep.subr.mxu0 0.0
    %1145 = vmatpush2.msra.mxu0 0.0
    %1146 = vmatprep.subr.mxu0 0.0
    %1147 = vmatpush2.msra.mxu0 0.0
    %1148 = vmatprep.subr.mxu0 0.0
    %1149 = vmatpush2.msra.mxu0 0.0
    %1150 = vmatprep.subr.mxu0 0.0
    %1151 = vmatpush2.msra.mxu0 0.0
    %1152 = vmatprep.subr.mxu0 0.0
    %1153 = vmatpush2.msra.mxu0 0.0
    %1154 = vmatprep.subr.mxu0 0.0
    %1155 = vmatpush2.msra.mxu0 0.0
    %1156 = vmatprep.subr.mxu0 0.0
    %1157 = vmatpush2.msra.mxu0 0.0
    %1158 = vmatprep.mubr.f32.mxu0 0.0
    %1159 = vmatmul.mubr.f32.gmra.mxu0 %v1083
    %v1160 = vpop.f32.mrf.mxu0
    %v1161 = vadd.f32 0.0, %v1160
    %v1162 = vpop.f32.mrf.mxu0
    %1163 = vmatprep.mubr.f32.mxu0 0.0
    %1164 = vmatmul.mubr.f32.gmra.mxu0 %v1086
    %v1165 = vpop.f32.mrf.mxu0
    %v1166 = vadd.f32 0.0, %v1165
    %v1167 = vpop.f32.mrf.mxu0
    %1168 = vmatprep.mubr.f32.mxu0 0.0
    %1169 = vmatmul.mubr.f32.gmra.mxu0 %v1089
    %v1170 = vpop.f32.mrf.mxu0
    %v1171 = vadd.f32 0.0, %v1170
    %v1172 = vpop.f32.mrf.mxu0
    %1173 = vmatprep.mubr.f32.mxu0 0.0
    %1174 = vmatmul.mubr.f32.gmra.mxu0 %v1092
    %v1175 = vpop.f32.mrf.mxu0
    %v1176 = vadd.f32 0.0, %v1175
    %v1177 = vpop.f32.mrf.mxu0
    %1178 = vdwg.mxu0
    %v1180 = vsel %vm980, %v967, 0
    %v1183 = vsel %vm980, %v968, 0
    %v1186 = vsel %vm980, %v969, 0
    %v1189 = vsel %vm980, %v970, 0
    %1191 = vmatprep.subr.mxu0 0.0
    %1192 = vmatpush1.msra.mxu0 0.0
    %1193 = vmatprep.subr.mxu0 0.0
    %1194 = vmatpush1.msra.mxu0 0.0
    %1195 = vmatprep.subr.mxu0 0.0
    %1196 = vmatpush1.msra.mxu0 0.0
    %1197 = vmatprep.subr.mxu0 0.0
    %1198 = vmatpush1.msra.mxu0 0.0
    %1199 = vmatprep.subr.mxu0 0.0
    %1200 = vmatpush1.msra.mxu0 0.0
    %1201 = vmatprep.subr.mxu0 0.0
    %1202 = vmatpush1.msra.mxu0 0.0
    %1203 = vmatprep.subr.mxu0 0.0
    %1204 = vmatpush1.msra.mxu0 0.0
    %1205 = vmatprep.subr.mxu0 0.0
    %1206 = vmatpush1.msra.mxu0 0.0
    %1207 = vmatprep.subr.mxu0 0.0
    %1208 = vmatpush1.msra.mxu0 0.0
    %1209 = vmatprep.subr.mxu0 0.0
    %1210 = vmatpush1.msra.mxu0 0.0
    %1211 = vmatprep.subr.mxu0 0.0
    %1212 = vmatpush1.msra.mxu0 0.0
    %1213 = vmatprep.subr.mxu0 0.0
    %1214 = vmatpush1.msra.mxu0 0.0
    %1215 = vmatprep.subr.mxu0 0.0
    %1216 = vmatpush1.msra.mxu0 %v975
    %1217 = vmatprep.subr.mxu0 0.0
    %1218 = vmatpush1.msra.mxu0 %v974
    %1219 = vmatprep.subr.mxu0 0.0
    %1220 = vmatpush1.msra.mxu0 %v973
    %1221 = vmatprep.subr.mxu0 0.0
    %1222 = vmatpush1.msra.mxu0 %v972
    %1223 = vmatprep.subr.mxu0 0.0
    %1224 = vmatpush2.msra.mxu0 0.0
    %1225 = vmatprep.subr.mxu0 0.0
    %1226 = vmatpush2.msra.mxu0 0.0
    %1227 = vmatprep.subr.mxu0 0.0
    %1228 = vmatpush2.msra.mxu0 0.0
    %1229 = vmatprep.subr.mxu0 0.0
    %1230 = vmatpush2.msra.mxu0 0.0
    %1231 = vmatprep.subr.mxu0 0.0
    %1232 = vmatpush2.msra.mxu0 0.0
    %1233 = vmatprep.subr.mxu0 0.0
    %1234 = vmatpush2.msra.mxu0 0.0
    %1235 = vmatprep.subr.mxu0 0.0
    %1236 = vmatpush2.msra.mxu0 0.0
    %1237 = vmatprep.subr.mxu0 0.0
    %1238 = vmatpush2.msra.mxu0 0.0
    %1239 = vmatprep.subr.mxu0 0.0
    %1240 = vmatpush2.msra.mxu0 0.0
    %1241 = vmatprep.subr.mxu0 0.0
    %1242 = vmatpush2.msra.mxu0 0.0
    %1243 = vmatprep.subr.mxu0 0.0
    %1244 = vmatpush2.msra.mxu0 0.0
    %1245 = vmatprep.subr.mxu0 0.0
    %1246 = vmatpush2.msra.mxu0 0.0
    %1247 = vmatprep.subr.mxu0 0.0
    %1248 = vmatpush2.msra.mxu0 0.0
    %1249 = vmatprep.subr.mxu0 0.0
    %1250 = vmatpush2.msra.mxu0 0.0
    %1251 = vmatprep.subr.mxu0 0.0
    %1252 = vmatpush2.msra.mxu0 0.0
    %1253 = vmatprep.subr.mxu0 0.0
    %1254 = vmatpush2.msra.mxu0 0.0
    %1255 = vmatprep.mubr.f32.mxu0 0.0
    %1256 = vmatmul.mubr.f32.gmra.mxu0 %v1180
    %v1257 = vpop.f32.mrf.mxu0
    %v1258 = vadd.f32 %v1161, %v1257
    %v1259 = vpop.f32.mrf.mxu0
    %1260 = vmatprep.mubr.f32.mxu0 0.0
    %1261 = vmatmul.mubr.f32.gmra.mxu0 %v1183
    %v1262 = vpop.f32.mrf.mxu0
    %v1263 = vadd.f32 %v1166, %v1262
    %v1264 = vpop.f32.mrf.mxu0
    %1265 = vmatprep.mubr.f32.mxu0 0.0
    %1266 = vmatmul.mubr.f32.gmra.mxu0 %v1186
    %v1267 = vpop.f32.mrf.mxu0
    %v1268 = vadd.f32 %v1171, %v1267
    %v1269 = vpop.f32.mrf.mxu0
    %1270 = vmatprep.mubr.f32.mxu0 0.0
    %1271 = vmatmul.mubr.f32.gmra.mxu0 %v1189
    %v1272 = vpop.f32.mrf.mxu0
    %v1273 = vadd.f32 %v1176, %v1272
    %v1274 = vpop.f32.mrf.mxu0
    %1275 = vdwg.mxu0
    %s1276 = scalar_lea.vmem %s3, 32
    %v1277 = vld [vmem:[%s1276] sm:$0xff]
    %v1278 = vld [vmem:[%s1276 + $0x8] sm:$0xff]
    %v1279 = vld [vmem:[%s1276 + $0x10] sm:$0xff]
    %v1280 = vld [vmem:[%s1276 + $0x18] sm:$0xff]
    %v1282 = vsel %vm980, %v1277, 0
    %v1285 = vsel %vm980, %v1278, 0
    %v1288 = vsel %vm980, %v1279, 0
    %v1291 = vsel %vm980, %v1280, 0
    %1293 = vmatprep.subr.mxu0 0.0
    %1294 = vmatpush1.msra.mxu0 0.0
    %1295 = vmatprep.subr.mxu0 0.0
    %1296 = vmatpush1.msra.mxu0 0.0
    %1297 = vmatprep.subr.mxu0 0.0
    %1298 = vmatpush1.msra.mxu0 0.0
    %1299 = vmatprep.subr.mxu0 0.0
    %1300 = vmatpush1.msra.mxu0 0.0
    %1301 = vmatprep.subr.mxu0 0.0
    %1302 = vmatpush1.msra.mxu0 0.0
    %1303 = vmatprep.subr.mxu0 0.0
    %1304 = vmatpush1.msra.mxu0 0.0
    %1305 = vmatprep.subr.mxu0 0.0
    %1306 = vmatpush1.msra.mxu0 0.0
    %1307 = vmatprep.subr.mxu0 0.0
    %1308 = vmatpush1.msra.mxu0 0.0
    %1309 = vmatprep.subr.mxu0 0.0
    %1310 = vmatpush1.msra.mxu0 0.0
    %1311 = vmatprep.subr.mxu0 0.0
    %1312 = vmatpush1.msra.mxu0 0.0
    %1313 = vmatprep.subr.mxu0 0.0
    %1314 = vmatpush1.msra.mxu0 0.0
    %1315 = vmatprep.subr.mxu0 0.0
    %1316 = vmatpush1.msra.mxu0 0.0
    %1317 = vmatprep.subr.mxu0 0.0
    %1318 = vmatpush1.msra.mxu0 %v970
    %1319 = vmatprep.subr.mxu0 0.0
    %1320 = vmatpush1.msra.mxu0 %v969
    %1321 = vmatprep.subr.mxu0 0.0
    %1322 = vmatpush1.msra.mxu0 %v968
    %1323 = vmatprep.subr.mxu0 0.0
    %1324 = vmatpush1.msra.mxu0 %v967
    %1325 = vmatprep.subr.mxu0 0.0
    %1326 = vmatpush2.msra.mxu0 0.0
    %1327 = vmatprep.subr.mxu0 0.0
    %1328 = vmatpush2.msra.mxu0 0.0
    %1329 = vmatprep.subr.mxu0 0.0
    %1330 = vmatpush2.msra.mxu0 0.0
    %1331 = vmatprep.subr.mxu0 0.0
    %1332 = vmatpush2.msra.mxu0 0.0
    %1333 = vmatprep.subr.mxu0 0.0
    %1334 = vmatpush2.msra.mxu0 0.0
    %1335 = vmatprep.subr.mxu0 0.0
    %1336 = vmatpush2.msra.mxu0 0.0
    %1337 = vmatprep.subr.mxu0 0.0
    %1338 = vmatpush2.msra.mxu0 0.0
    %1339 = vmatprep.subr.mxu0 0.0
    %1340 = vmatpush2.msra.mxu0 0.0
    %1341 = vmatprep.subr.mxu0 0.0
    %1342 = vmatpush2.msra.mxu0 0.0
    %1343 = vmatprep.subr.mxu0 0.0
    %1344 = vmatpush2.msra.mxu0 0.0
    %1345 = vmatprep.subr.mxu0 0.0
    %1346 = vmatpush2.msra.mxu0 0.0
    %1347 = vmatprep.subr.mxu0 0.0
    %1348 = vmatpush2.msra.mxu0 0.0
    %1349 = vmatprep.subr.mxu0 0.0
    %1350 = vmatpush2.msra.mxu0 0.0
    %1351 = vmatprep.subr.mxu0 0.0
    %1352 = vmatpush2.msra.mxu0 0.0
    %1353 = vmatprep.subr.mxu0 0.0
    %1354 = vmatpush2.msra.mxu0 0.0
    %1355 = vmatprep.subr.mxu0 0.0
    %1356 = vmatpush2.msra.mxu0 0.0
    %1357 = vmatprep.mubr.f32.mxu0 0.0
    %1358 = vmatmul.mubr.f32.gmra.mxu0 %v1282
    %v1359 = vpop.f32.mrf.mxu0
    %v1360 = vadd.f32 0.0, %v1359
    %v1361 = vpop.f32.mrf.mxu0
    %1362 = vmatprep.mubr.f32.mxu0 0.0
    %1363 = vmatmul.mubr.f32.gmra.mxu0 %v1285
    %v1364 = vpop.f32.mrf.mxu0
    %v1365 = vadd.f32 0.0, %v1364
    %v1366 = vpop.f32.mrf.mxu0
    %1367 = vmatprep.mubr.f32.mxu0 0.0
    %1368 = vmatmul.mubr.f32.gmra.mxu0 %v1288
    %v1369 = vpop.f32.mrf.mxu0
    %v1370 = vadd.f32 0.0, %v1369
    %v1371 = vpop.f32.mrf.mxu0
    %1372 = vmatprep.mubr.f32.mxu0 0.0
    %1373 = vmatmul.mubr.f32.gmra.mxu0 %v1291
    %v1374 = vpop.f32.mrf.mxu0
    %v1375 = vadd.f32 0.0, %v1374
    %v1376 = vpop.f32.mrf.mxu0
    %1377 = vdwg.mxu0
    %s1378 = scalar_lea.vmem %s4, 64
    %v1379 = vld [vmem:[%s1378] sm:$0xff]
    %v1380 = vld [vmem:[%s1378 + $0x8] sm:$0xff]
    %v1381 = vld [vmem:[%s1378 + $0x10] sm:$0xff]
    %v1382 = vld [vmem:[%s1378 + $0x18] sm:$0xff]
    %v1384 = vsel %vm980, %v1360, 0
    %v1387 = vsel %vm980, %v1365, 0
    %v1390 = vsel %vm980, %v1370, 0
    %v1393 = vsel %vm980, %v1375, 0
    %1395 = vmatprep.subr.mxu0 0.0
    %1396 = vmatpush1.msra.mxu0 0.0
    %1397 = vmatprep.subr.mxu0 0.0
    %1398 = vmatpush1.msra.mxu0 0.0
    %1399 = vmatprep.subr.mxu0 0.0
    %1400 = vmatpush1.msra.mxu0 0.0
    %1401 = vmatprep.subr.mxu0 0.0
    %1402 = vmatpush1.msra.mxu0 0.0
    %1403 = vmatprep.subr.mxu0 0.0
    %1404 = vmatpush1.msra.mxu0 0.0
    %1405 = vmatprep.subr.mxu0 0.0
    %1406 = vmatpush1.msra.mxu0 0.0
    %1407 = vmatprep.subr.mxu0 0.0
    %1408 = vmatpush1.msra.mxu0 0.0
    %1409 = vmatprep.subr.mxu0 0.0
    %1410 = vmatpush1.msra.mxu0 0.0
    %1411 = vmatprep.subr.mxu0 0.0
    %1412 = vmatpush1.msra.mxu0 0.0
    %1413 = vmatprep.subr.mxu0 0.0
    %1414 = vmatpush1.msra.mxu0 0.0
    %1415 = vmatprep.subr.mxu0 0.0
    %1416 = vmatpush1.msra.mxu0 0.0
    %1417 = vmatprep.subr.mxu0 0.0
    %1418 = vmatpush1.msra.mxu0 0.0
    %1419 = vmatprep.subr.mxu0 0.0
    %1420 = vmatpush1.msra.mxu0 %v1382
    %1421 = vmatprep.subr.mxu0 0.0
    %1422 = vmatpush1.msra.mxu0 %v1381
    %1423 = vmatprep.subr.mxu0 0.0
    %1424 = vmatpush1.msra.mxu0 %v1380
    %1425 = vmatprep.subr.mxu0 0.0
    %1426 = vmatpush1.msra.mxu0 %v1379
    %1427 = vmatprep.subr.mxu0 0.0
    %1428 = vmatpush2.msra.mxu0 0.0
    %1429 = vmatprep.subr.mxu0 0.0
    %1430 = vmatpush2.msra.mxu0 0.0
    %1431 = vmatprep.subr.mxu0 0.0
    %1432 = vmatpush2.msra.mxu0 0.0
    %1433 = vmatprep.subr.mxu0 0.0
    %1434 = vmatpush2.msra.mxu0 0.0
    %1435 = vmatprep.subr.mxu0 0.0
    %1436 = vmatpush2.msra.mxu0 0.0
    %1437 = vmatprep.subr.mxu0 0.0
    %1438 = vmatpush2.msra.mxu0 0.0
    %1439 = vmatprep.subr.mxu0 0.0
    %1440 = vmatpush2.msra.mxu0 0.0
    %1441 = vmatprep.subr.mxu0 0.0
    %1442 = vmatpush2.msra.mxu0 0.0
    %1443 = vmatprep.subr.mxu0 0.0
    %1444 = vmatpush2.msra.mxu0 0.0
    %1445 = vmatprep.subr.mxu0 0.0
    %1446 = vmatpush2.msra.mxu0 0.0
    %1447 = vmatprep.subr.mxu0 0.0
    %1448 = vmatpush2.msra.mxu0 0.0
    %1449 = vmatprep.subr.mxu0 0.0
    %1450 = vmatpush2.msra.mxu0 0.0
    %1451 = vmatprep.subr.mxu0 0.0
    %1452 = vmatpush2.msra.mxu0 0.0
    %1453 = vmatprep.subr.mxu0 0.0
    %1454 = vmatpush2.msra.mxu0 0.0
    %1455 = vmatprep.subr.mxu0 0.0
    %1456 = vmatpush2.msra.mxu0 0.0
    %1457 = vmatprep.subr.mxu0 0.0
    %1458 = vmatpush2.msra.mxu0 0.0
    %1459 = vmatprep.mubr.f32.mxu0 0.0
    %1460 = vmatmul.mubr.f32.gmra.mxu0 %v1384
    %v1461 = vpop.f32.mrf.mxu0
    %v1462 = vadd.f32 0.0, %v1461
    %v1463 = vpop.f32.mrf.mxu0
    %1464 = vmatprep.mubr.f32.mxu0 0.0
    %1465 = vmatmul.mubr.f32.gmra.mxu0 %v1387
    %v1466 = vpop.f32.mrf.mxu0
    %v1467 = vadd.f32 0.0, %v1466
    %v1468 = vpop.f32.mrf.mxu0
    %1469 = vmatprep.mubr.f32.mxu0 0.0
    %1470 = vmatmul.mubr.f32.gmra.mxu0 %v1390
    %v1471 = vpop.f32.mrf.mxu0
    %v1472 = vadd.f32 0.0, %v1471
    %v1473 = vpop.f32.mrf.mxu0
    %1474 = vmatprep.mubr.f32.mxu0 0.0
    %1475 = vmatmul.mubr.f32.gmra.mxu0 %v1393
    %v1476 = vpop.f32.mrf.mxu0
    %v1477 = vadd.f32 0.0, %v1476
    %v1478 = vpop.f32.mrf.mxu0
    %1479 = vdwg.mxu0
    %v1480 = vadd.f32 %v1258, %v1462
    %v1481 = vadd.f32 %v1263, %v1467
    %v1482 = vadd.f32 %v1268, %v1472
    %v1483 = vadd.f32 %v1273, %v1477
    %v1484 = vld [vmem:[%s5] sm:$0x1]
    %v1486 = vlaneseq
    %v1487 = vshrl.u32 %v1486, 7
    %v1488 = vsub.s32 0, %v1487
    %v1489 = vrot.slane %v1484, %v1488
    %v1491 = vadd.f32 %v1480, %v1489
    %v1492 = vadd.f32 %v1481, %v1489
    %v1493 = vadd.f32 %v1482, %v1489
    %v1494 = vadd.f32 %v1483, %v1489
    %v1495 = vsub.f32 0.0, %v1491
    %v1496 = vsub.f32 0.0, %v1492
    %v1497 = vsub.f32 0.0, %v1493
    %v1498 = vsub.f32 0.0, %v1494
    %v1499 = vmul.f32 %v1495, 1.442695
    %v1500 = vpow.pop %v1499
    %v1501 = vmul.f32 %v1496, 1.442695
    %v1502 = vpow.pop %v1501
    %v1503 = vmul.f32 %v1497, 1.442695
    %v1504 = vpow.pop %v1503
    %v1505 = vmul.f32 %v1498, 1.442695
    %v1506 = vpow.pop %v1505
    %v1507 = vadd.f32 %v1500, 1.0
    %v1508 = vadd.f32 %v1502, 1.0
    %v1509 = vadd.f32 %v1504, 1.0
    %v1510 = vadd.f32 %v1506, 1.0
    %v1511 = vrcp.pop %v1507
    %v1512 = vrcp.pop %v1508
    %v1513 = vrcp.pop %v1509
    %v1514 = vrcp.pop %v1510
    %v1515 = vmul.f32 %v1491, %v1511
    %v1516 = vmul.f32 %v1492, %v1512
    %v1517 = vmul.f32 %v1493, %v1513
    %v1518 = vmul.f32 %v1494, %v1514
    %s1519 = scalar_lea.vmem %s6, 128
    %v1520 = vld [vmem:[%s1519] sm:$0xff]
    %v1521 = vld [vmem:[%s1519 + $0x8] sm:$0xff]
    %v1522 = vld [vmem:[%s1519 + $0x10] sm:$0xff]
    %v1523 = vld [vmem:[%s1519 + $0x18] sm:$0xff]
    %v1524 = vld [vmem:[%s1519 + $0x20] sm:$0xff]
    %v1525 = vld [vmem:[%s1519 + $0x28] sm:$0xff]
    %v1526 = vld [vmem:[%s1519 + $0x30] sm:$0xff]
    %v1527 = vld [vmem:[%s1519 + $0x38] sm:$0xff]
    %v1528 = vld [vmem:[%s1519 + $0x40] sm:$0xff]
    %v1529 = vld [vmem:[%s1519 + $0x48] sm:$0xff]
    %v1530 = vld [vmem:[%s1519 + $0x50] sm:$0xff]
    %v1531 = vld [vmem:[%s1519 + $0x58] sm:$0xff]
    %v1532 = vld [vmem:[%s1519 + $0x60] sm:$0xff]
    %v1533 = vld [vmem:[%s1519 + $0x68] sm:$0xff]
    %v1534 = vld [vmem:[%s1519 + $0x70] sm:$0xff]
    %v1535 = vld [vmem:[%s1519 + $0x78] sm:$0xff]
    %1536 = vmatprep.subr.mxu0 0.0
    %1537 = vmatpush1.msra.mxu0 0.0
    %1538 = vmatprep.subr.mxu0 0.0
    %1539 = vmatpush1.msra.mxu0 0.0
    %1540 = vmatprep.subr.mxu0 0.0
    %1541 = vmatpush1.msra.mxu0 0.0
    %1542 = vmatprep.subr.mxu0 0.0
    %1543 = vmatpush1.msra.mxu0 0.0
    %1544 = vmatprep.subr.mxu0 0.0
    %1545 = vmatpush1.msra.mxu0 0.0
    %1546 = vmatprep.subr.mxu0 0.0
    %1547 = vmatpush1.msra.mxu0 0.0
    %1548 = vmatprep.subr.mxu0 0.0
    %1549 = vmatpush1.msra.mxu0 0.0
    %1550 = vmatprep.subr.mxu0 0.0
    %1551 = vmatpush1.msra.mxu0 0.0
    %1552 = vmatprep.subr.mxu0 0.0
    %1553 = vmatpush1.msra.mxu0 0.0
    %1554 = vmatprep.subr.mxu0 0.0
    %1555 = vmatpush1.msra.mxu0 0.0
    %1556 = vmatprep.subr.mxu0 0.0
    %1557 = vmatpush1.msra.mxu0 0.0
    %1558 = vmatprep.subr.mxu0 0.0
    %1559 = vmatpush1.msra.mxu0 0.0
    %1560 = vmatprep.subr.mxu0 0.0
    %1561 = vmatpush1.msra.mxu0 %v1518
    %1562 = vmatprep.subr.mxu0 0.0
    %1563 = vmatpush1.msra.mxu0 %v1517
    %1564 = vmatprep.subr.mxu0 0.0
    %1565 = vmatpush1.msra.mxu0 %v1516
    %1566 = vmatprep.subr.mxu0 0.0
    %1567 = vmatpush1.msra.mxu0 %v1515
    %1568 = vmatprep.subr.mxu0 0.0
    %1569 = vmatpush2.msra.mxu0 0.0
    %1570 = vmatprep.subr.mxu0 0.0
    %1571 = vmatpush2.msra.mxu0 0.0
    %1572 = vmatprep.subr.mxu0 0.0
    %1573 = vmatpush2.msra.mxu0 0.0
    %1574 = vmatprep.subr.mxu0 0.0
    %1575 = vmatpush2.msra.mxu0 0.0
    %1576 = vmatprep.subr.mxu0 0.0
    %1577 = vmatpush2.msra.mxu0 0.0
    %1578 = vmatprep.subr.mxu0 0.0
    %1579 = vmatpush2.msra.mxu0 0.0
    %1580 = vmatprep.subr.mxu0 0.0
    %1581 = vmatpush2.msra.mxu0 0.0
    %1582 = vmatprep.subr.mxu0 0.0
    %1583 = vmatpush2.msra.mxu0 0.0
    %1584 = vmatprep.subr.mxu0 0.0
    %1585 = vmatpush2.msra.mxu0 0.0
    %1586 = vmatprep.subr.mxu0 0.0
    %1587 = vmatpush2.msra.mxu0 0.0
    %1588 = vmatprep.subr.mxu0 0.0
    %1589 = vmatpush2.msra.mxu0 0.0
    %1590 = vmatprep.subr.mxu0 0.0
    %1591 = vmatpush2.msra.mxu0 0.0
    %1592 = vmatprep.subr.mxu0 0.0
    %1593 = vmatpush2.msra.mxu0 0.0
    %1594 = vmatprep.subr.mxu0 0.0
    %1595 = vmatpush2.msra.mxu0 0.0
    %1596 = vmatprep.subr.mxu0 0.0
    %1597 = vmatpush2.msra.mxu0 0.0
    %1598 = vmatprep.subr.mxu0 0.0
    %1599 = vmatpush2.msra.mxu0 0.0
    %1600 = vmatprep.mubr.f32.mxu0 0.0
    %1601 = vmatmul.mubr.f32.gmra.mxu0 %v982
    %v1602 = vpop.f32.mrf.mxu0
    %v1603 = vadd.f32 0.0, %v1602
    %v1604 = vpop.f32.mrf.mxu0
    %1605 = vmatprep.mubr.f32.mxu0 0.0
    %1606 = vmatmul.mubr.f32.gmra.mxu0 %v985
    %v1607 = vpop.f32.mrf.mxu0
    %v1608 = vadd.f32 0.0, %v1607
    %v1609 = vpop.f32.mrf.mxu0
    %1610 = vmatprep.mubr.f32.mxu0 0.0
    %1611 = vmatmul.mubr.f32.gmra.mxu0 %v988
    %v1612 = vpop.f32.mrf.mxu0
    %v1613 = vadd.f32 0.0, %v1612
    %v1614 = vpop.f32.mrf.mxu0
    %1615 = vmatprep.mubr.f32.mxu0 0.0
    %1616 = vmatmul.mubr.f32.gmra.mxu0 %v991
    %v1617 = vpop.f32.mrf.mxu0
    %v1618 = vadd.f32 0.0, %v1617
    %v1619 = vpop.f32.mrf.mxu0
    %1620 = vdwg.mxu0
    %v1621 = vld [vmem:[%s6] sm:$0xff]
    %v1622 = vld [vmem:[%s6 + $0x8] sm:$0xff]
    %v1623 = vld [vmem:[%s6 + $0x10] sm:$0xff]
    %v1624 = vld [vmem:[%s6 + $0x18] sm:$0xff]
    %v1625 = vld [vmem:[%s6 + $0x20] sm:$0xff]
    %v1626 = vld [vmem:[%s6 + $0x28] sm:$0xff]
    %v1627 = vld [vmem:[%s6 + $0x30] sm:$0xff]
    %v1628 = vld [vmem:[%s6 + $0x38] sm:$0xff]
    %v1629 = vld [vmem:[%s6 + $0x40] sm:$0xff]
    %v1630 = vld [vmem:[%s6 + $0x48] sm:$0xff]
    %v1631 = vld [vmem:[%s6 + $0x50] sm:$0xff]
    %v1632 = vld [vmem:[%s6 + $0x58] sm:$0xff]
    %v1633 = vld [vmem:[%s6 + $0x60] sm:$0xff]
    %v1634 = vld [vmem:[%s6 + $0x68] sm:$0xff]
    %v1635 = vld [vmem:[%s6 + $0x70] sm:$0xff]
    %v1636 = vld [vmem:[%s6 + $0x78] sm:$0xff]
    %1637 = vmatprep.subr.mxu0 0.0
    %1638 = vmatpush1.msra.mxu0 %v1636
    %1639 = vmatprep.subr.mxu0 0.0
    %1640 = vmatpush1.msra.mxu0 %v1635
    %1641 = vmatprep.subr.mxu0 0.0
    %1642 = vmatpush1.msra.mxu0 %v1634
    %1643 = vmatprep.subr.mxu0 0.0
    %1644 = vmatpush1.msra.mxu0 %v1633
    %1645 = vmatprep.subr.mxu0 0.0
    %1646 = vmatpush1.msra.mxu0 %v1632
    %1647 = vmatprep.subr.mxu0 0.0
    %1648 = vmatpush1.msra.mxu0 %v1631
    %1649 = vmatprep.subr.mxu0 0.0
    %1650 = vmatpush1.msra.mxu0 %v1630
    %1651 = vmatprep.subr.mxu0 0.0
    %1652 = vmatpush1.msra.mxu0 %v1629
    %1653 = vmatprep.subr.mxu0 0.0
    %1654 = vmatpush1.msra.mxu0 %v1628
    %1655 = vmatprep.subr.mxu0 0.0
    %1656 = vmatpush1.msra.mxu0 %v1627
    %1657 = vmatprep.subr.mxu0 0.0
    %1658 = vmatpush1.msra.mxu0 %v1626
    %1659 = vmatprep.subr.mxu0 0.0
    %1660 = vmatpush1.msra.mxu0 %v1625
    %1661 = vmatprep.subr.mxu0 0.0
    %1662 = vmatpush1.msra.mxu0 %v1624
    %1663 = vmatprep.subr.mxu0 0.0
    %1664 = vmatpush1.msra.mxu0 %v1623
    %1665 = vmatprep.subr.mxu0 0.0
    %1666 = vmatpush1.msra.mxu0 %v1622
    %1667 = vmatprep.subr.mxu0 0.0
    %1668 = vmatpush1.msra.mxu0 %v1621
    %1669 = vmatprep.subr.mxu0 0.0
    %1670 = vmatpush2.msra.mxu0 0.0
    %1671 = vmatprep.subr.mxu0 0.0
    %1672 = vmatpush2.msra.mxu0 0.0
    %1673 = vmatprep.subr.mxu0 0.0
    %1674 = vmatpush2.msra.mxu0 0.0
    %1675 = vmatprep.subr.mxu0 0.0
    %1676 = vmatpush2.msra.mxu0 0.0
    %1677 = vmatprep.subr.mxu0 0.0
    %1678 = vmatpush2.msra.mxu0 0.0
    %1679 = vmatprep.subr.mxu0 0.0
    %1680 = vmatpush2.msra.mxu0 0.0
    %1681 = vmatprep.subr.mxu0 0.0
    %1682 = vmatpush2.msra.mxu0 0.0
    %1683 = vmatprep.subr.mxu0 0.0
    %1684 = vmatpush2.msra.mxu0 0.0
    %1685 = vmatprep.subr.mxu0 0.0
    %1686 = vmatpush2.msra.mxu0 0.0
    %1687 = vmatprep.subr.mxu0 0.0
    %1688 = vmatpush2.msra.mxu0 0.0
    %1689 = vmatprep.subr.mxu0 0.0
    %1690 = vmatpush2.msra.mxu0 0.0
    %1691 = vmatprep.subr.mxu0 0.0
    %1692 = vmatpush2.msra.mxu0 0.0
    %1693 = vmatprep.subr.mxu0 0.0
    %1694 = vmatpush2.msra.mxu0 0.0
    %1695 = vmatprep.subr.mxu0 0.0
    %1696 = vmatpush2.msra.mxu0 0.0
    %1697 = vmatprep.subr.mxu0 0.0
    %1698 = vmatpush2.msra.mxu0 0.0
    %1699 = vmatprep.subr.mxu0 0.0
    %1700 = vmatpush2.msra.mxu0 0.0
    %1701 = vmatprep.mubr.f32.mxu0 0.0
    %1702 = vmatmul.mubr.f32.gmra.mxu0 %v1603
    %v1703 = vpop.f32.mrf.mxu0
    %v1704 = vadd.f32 0.0, %v1703
    %v1705 = vpop.f32.mrf.mxu0
    %1706 = vmatprep.mubr.f32.mxu0 0.0
    %1707 = vmatmul.mubr.f32.gmra.mxu0 %v1608
    %v1708 = vpop.f32.mrf.mxu0
    %v1709 = vadd.f32 0.0, %v1708
    %v1710 = vpop.f32.mrf.mxu0
    %1711 = vmatprep.mubr.f32.mxu0 0.0
    %1712 = vmatmul.mubr.f32.gmra.mxu0 %v1613
    %v1713 = vpop.f32.mrf.mxu0
    %v1714 = vadd.f32 0.0, %v1713
    %v1715 = vpop.f32.mrf.mxu0
    %1716 = vmatprep.mubr.f32.mxu0 0.0
    %1717 = vmatmul.mubr.f32.gmra.mxu0 %v1618
    %v1718 = vpop.f32.mrf.mxu0
    %v1719 = vadd.f32 0.0, %v1718
    %v1720 = vpop.f32.mrf.mxu0
    %1721 = vdwg.mxu0
    %1722 = vmatprep.subr.mxu0 0.0
    %1723 = vmatpush1.msra.mxu0 %v1535
    %1724 = vmatprep.subr.mxu0 0.0
    %1725 = vmatpush1.msra.mxu0 %v1534
    %1726 = vmatprep.subr.mxu0 0.0
    %1727 = vmatpush1.msra.mxu0 %v1533
    %1728 = vmatprep.subr.mxu0 0.0
    %1729 = vmatpush1.msra.mxu0 %v1532
    %1730 = vmatprep.subr.mxu0 0.0
    %1731 = vmatpush1.msra.mxu0 %v1531
    %1732 = vmatprep.subr.mxu0 0.0
    %1733 = vmatpush1.msra.mxu0 %v1530
    %1734 = vmatprep.subr.mxu0 0.0
    %1735 = vmatpush1.msra.mxu0 %v1529
    %1736 = vmatprep.subr.mxu0 0.0
    %1737 = vmatpush1.msra.mxu0 %v1528
    %1738 = vmatprep.subr.mxu0 0.0
    %1739 = vmatpush1.msra.mxu0 %v1527
    %1740 = vmatprep.subr.mxu0 0.0
    %1741 = vmatpush1.msra.mxu0 %v1526
    %1742 = vmatprep.subr.mxu0 0.0
    %1743 = vmatpush1.msra.mxu0 %v1525
    %1744 = vmatprep.subr.mxu0 0.0
    %1745 = vmatpush1.msra.mxu0 %v1524
    %1746 = vmatprep.subr.mxu0 0.0
    %1747 = vmatpush1.msra.mxu0 %v1523
    %1748 = vmatprep.subr.mxu0 0.0
    %1749 = vmatpush1.msra.mxu0 %v1522
    %1750 = vmatprep.subr.mxu0 0.0
    %1751 = vmatpush1.msra.mxu0 %v1521
    %1752 = vmatprep.subr.mxu0 0.0
    %1753 = vmatpush1.msra.mxu0 %v1520
    %1754 = vmatprep.subr.mxu0 0.0
    %1755 = vmatpush2.msra.mxu0 0.0
    %1756 = vmatprep.subr.mxu0 0.0
    %1757 = vmatpush2.msra.mxu0 0.0
    %1758 = vmatprep.subr.mxu0 0.0
    %1759 = vmatpush2.msra.mxu0 0.0
    %1760 = vmatprep.subr.mxu0 0.0
    %1761 = vmatpush2.msra.mxu0 0.0
    %1762 = vmatprep.subr.mxu0 0.0
    %1763 = vmatpush2.msra.mxu0 0.0
    %1764 = vmatprep.subr.mxu0 0.0
    %1765 = vmatpush2.msra.mxu0 0.0
    %1766 = vmatprep.subr.mxu0 0.0
    %1767 = vmatpush2.msra.mxu0 0.0
    %1768 = vmatprep.subr.mxu0 0.0
    %1769 = vmatpush2.msra.mxu0 0.0
    %1770 = vmatprep.subr.mxu0 0.0
    %1771 = vmatpush2.msra.mxu0 0.0
    %1772 = vmatprep.subr.mxu0 0.0
    %1773 = vmatpush2.msra.mxu0 0.0
    %1774 = vmatprep.subr.mxu0 0.0
    %1775 = vmatpush2.msra.mxu0 0.0
    %1776 = vmatprep.subr.mxu0 0.0
    %1777 = vmatpush2.msra.mxu0 0.0
    %1778 = vmatprep.subr.mxu0 0.0
    %1779 = vmatpush2.msra.mxu0 0.0
    %1780 = vmatprep.subr.mxu0 0.0
    %1781 = vmatpush2.msra.mxu0 0.0
    %1782 = vmatprep.subr.mxu0 0.0
    %1783 = vmatpush2.msra.mxu0 0.0
    %1784 = vmatprep.subr.mxu0 0.0
    %1785 = vmatpush2.msra.mxu0 0.0
    %1786 = vmatprep.mubr.f32.mxu0 0.0
    %1787 = vmatmul.mubr.f32.gmra.mxu0 %v1515
    %v1788 = vpop.f32.mrf.mxu0
    %v1789 = vadd.f32 %v1704, %v1788
    %v1790 = vpop.f32.mrf.mxu0
    %1791 = vmatprep.mubr.f32.mxu0 0.0
    %1792 = vmatmul.mubr.f32.gmra.mxu0 %v1516
    %v1793 = vpop.f32.mrf.mxu0
    %v1794 = vadd.f32 %v1709, %v1793
    %v1795 = vpop.f32.mrf.mxu0
    %1796 = vmatprep.mubr.f32.mxu0 0.0
    %1797 = vmatmul.mubr.f32.gmra.mxu0 %v1517
    %v1798 = vpop.f32.mrf.mxu0
    %v1799 = vadd.f32 %v1714, %v1798
    %v1800 = vpop.f32.mrf.mxu0
    %1801 = vmatprep.mubr.f32.mxu0 0.0
    %1802 = vmatmul.mubr.f32.gmra.mxu0 %v1518
    %v1803 = vpop.f32.mrf.mxu0
    %v1804 = vadd.f32 %v1719, %v1803
    %v1805 = vpop.f32.mrf.mxu0
    %1806 = vdwg.mxu0
    %1807 = vmatprep.subr.mxu0 0.0
    %1808 = vmatpush1.msra.mxu0 0.0
    %1809 = vmatprep.subr.mxu0 0.0
    %1810 = vmatpush1.msra.mxu0 0.0
    %1811 = vmatprep.subr.mxu0 0.0
    %1812 = vmatpush1.msra.mxu0 0.0
    %1813 = vmatprep.subr.mxu0 0.0
    %1814 = vmatpush1.msra.mxu0 0.0
    %1815 = vmatprep.subr.mxu0 0.0
    %1816 = vmatpush1.msra.mxu0 0.0
    %1817 = vmatprep.subr.mxu0 0.0
    %1818 = vmatpush1.msra.mxu0 0.0
    %1819 = vmatprep.subr.mxu0 0.0
    %1820 = vmatpush1.msra.mxu0 0.0
    %1821 = vmatprep.subr.mxu0 0.0
    %1822 = vmatpush1.msra.mxu0 0.0
    %1823 = vmatprep.subr.mxu0 0.0
    %1824 = vmatpush1.msra.mxu0 0.0
    %1825 = vmatprep.subr.mxu0 0.0
    %1826 = vmatpush1.msra.mxu0 0.0
    %1827 = vmatprep.subr.mxu0 0.0
    %1828 = vmatpush1.msra.mxu0 0.0
    %1829 = vmatprep.subr.mxu0 0.0
    %1830 = vmatpush1.msra.mxu0 0.0
    %1831 = vmatprep.subr.mxu0 0.0
    %1832 = vmatpush1.msra.mxu0 %v1518
    %1833 = vmatprep.subr.mxu0 0.0
    %1834 = vmatpush1.msra.mxu0 %v1517
    %1835 = vmatprep.subr.mxu0 0.0
    %1836 = vmatpush1.msra.mxu0 %v1516
    %1837 = vmatprep.subr.mxu0 0.0
    %1838 = vmatpush1.msra.mxu0 %v1515
    %1839 = vmatprep.subr.mxu0 0.0
    %1840 = vmatpush2.msra.mxu0 0.0
    %1841 = vmatprep.subr.mxu0 0.0
    %1842 = vmatpush2.msra.mxu0 0.0
    %1843 = vmatprep.subr.mxu0 0.0
    %1844 = vmatpush2.msra.mxu0 0.0
    %1845 = vmatprep.subr.mxu0 0.0
    %1846 = vmatpush2.msra.mxu0 0.0
    %1847 = vmatprep.subr.mxu0 0.0
    %1848 = vmatpush2.msra.mxu0 0.0
    %1849 = vmatprep.subr.mxu0 0.0
    %1850 = vmatpush2.msra.mxu0 0.0
    %1851 = vmatprep.subr.mxu0 0.0
    %1852 = vmatpush2.msra.mxu0 0.0
    %1853 = vmatprep.subr.mxu0 0.0
    %1854 = vmatpush2.msra.mxu0 0.0
    %1855 = vmatprep.subr.mxu0 0.0
    %1856 = vmatpush2.msra.mxu0 0.0
    %1857 = vmatprep.subr.mxu0 0.0
    %1858 = vmatpush2.msra.mxu0 0.0
    %1859 = vmatprep.subr.mxu0 0.0
    %1860 = vmatpush2.msra.mxu0 0.0
    %1861 = vmatprep.subr.mxu0 0.0
    %1862 = vmatpush2.msra.mxu0 0.0
    %1863 = vmatprep.subr.mxu0 0.0
    %1864 = vmatpush2.msra.mxu0 0.0
    %1865 = vmatprep.subr.mxu0 0.0
    %1866 = vmatpush2.msra.mxu0 0.0
    %1867 = vmatprep.subr.mxu0 0.0
    %1868 = vmatpush2.msra.mxu0 0.0
    %1869 = vmatprep.subr.mxu0 0.0
    %1870 = vmatpush2.msra.mxu0 0.0
    %1871 = vmatprep.mubr.f32.mxu0 0.0
    %1872 = vmatmul.mubr.f32.gmra.mxu0 %v1282
    %v1873 = vpop.f32.mrf.mxu0
    %v1874 = vadd.f32 0.0, %v1873
    %v1875 = vpop.f32.mrf.mxu0
    %1876 = vmatprep.mubr.f32.mxu0 0.0
    %1877 = vmatmul.mubr.f32.gmra.mxu0 %v1285
    %v1878 = vpop.f32.mrf.mxu0
    %v1879 = vadd.f32 0.0, %v1878
    %v1880 = vpop.f32.mrf.mxu0
    %1881 = vmatprep.mubr.f32.mxu0 0.0
    %1882 = vmatmul.mubr.f32.gmra.mxu0 %v1288
    %v1883 = vpop.f32.mrf.mxu0
    %v1884 = vadd.f32 0.0, %v1883
    %v1885 = vpop.f32.mrf.mxu0
    %1886 = vmatprep.mubr.f32.mxu0 0.0
    %1887 = vmatmul.mubr.f32.gmra.mxu0 %v1291
    %v1888 = vpop.f32.mrf.mxu0
    %v1889 = vadd.f32 0.0, %v1888
    %v1890 = vpop.f32.mrf.mxu0
    %1891 = vdwg.mxu0
    %s1892 = scalar_lea.vmem %s6, 256
    %v1893 = vld [vmem:[%s1892] sm:$0xff]
    %v1894 = vld [vmem:[%s1892 + $0x8] sm:$0xff]
    %v1895 = vld [vmem:[%s1892 + $0x10] sm:$0xff]
    %v1896 = vld [vmem:[%s1892 + $0x18] sm:$0xff]
    %v1897 = vld [vmem:[%s1892 + $0x20] sm:$0xff]
    %v1898 = vld [vmem:[%s1892 + $0x28] sm:$0xff]
    %v1899 = vld [vmem:[%s1892 + $0x30] sm:$0xff]
    %v1900 = vld [vmem:[%s1892 + $0x38] sm:$0xff]
    %v1901 = vld [vmem:[%s1892 + $0x40] sm:$0xff]
    %v1902 = vld [vmem:[%s1892 + $0x48] sm:$0xff]
    %v1903 = vld [vmem:[%s1892 + $0x50] sm:$0xff]
    %v1904 = vld [vmem:[%s1892 + $0x58] sm:$0xff]
    %v1905 = vld [vmem:[%s1892 + $0x60] sm:$0xff]
    %v1906 = vld [vmem:[%s1892 + $0x68] sm:$0xff]
    %v1907 = vld [vmem:[%s1892 + $0x70] sm:$0xff]
    %v1908 = vld [vmem:[%s1892 + $0x78] sm:$0xff]
    %1909 = vmatprep.subr.mxu0 0.0
    %1910 = vmatpush1.msra.mxu0 %v1908
    %1911 = vmatprep.subr.mxu0 0.0
    %1912 = vmatpush1.msra.mxu0 %v1907
    %1913 = vmatprep.subr.mxu0 0.0
    %1914 = vmatpush1.msra.mxu0 %v1906
    %1915 = vmatprep.subr.mxu0 0.0
    %1916 = vmatpush1.msra.mxu0 %v1905
    %1917 = vmatprep.subr.mxu0 0.0
    %1918 = vmatpush1.msra.mxu0 %v1904
    %1919 = vmatprep.subr.mxu0 0.0
    %1920 = vmatpush1.msra.mxu0 %v1903
    %1921 = vmatprep.subr.mxu0 0.0
    %1922 = vmatpush1.msra.mxu0 %v1902
    %1923 = vmatprep.subr.mxu0 0.0
    %1924 = vmatpush1.msra.mxu0 %v1901
    %1925 = vmatprep.subr.mxu0 0.0
    %1926 = vmatpush1.msra.mxu0 %v1900
    %1927 = vmatprep.subr.mxu0 0.0
    %1928 = vmatpush1.msra.mxu0 %v1899
    %1929 = vmatprep.subr.mxu0 0.0
    %1930 = vmatpush1.msra.mxu0 %v1898
    %1931 = vmatprep.subr.mxu0 0.0
    %1932 = vmatpush1.msra.mxu0 %v1897
    %1933 = vmatprep.subr.mxu0 0.0
    %1934 = vmatpush1.msra.mxu0 %v1896
    %1935 = vmatprep.subr.mxu0 0.0
    %1936 = vmatpush1.msra.mxu0 %v1895
    %1937 = vmatprep.subr.mxu0 0.0
    %1938 = vmatpush1.msra.mxu0 %v1894
    %1939 = vmatprep.subr.mxu0 0.0
    %1940 = vmatpush1.msra.mxu0 %v1893
    %1941 = vmatprep.subr.mxu0 0.0
    %1942 = vmatpush2.msra.mxu0 0.0
    %1943 = vmatprep.subr.mxu0 0.0
    %1944 = vmatpush2.msra.mxu0 0.0
    %1945 = vmatprep.subr.mxu0 0.0
    %1946 = vmatpush2.msra.mxu0 0.0
    %1947 = vmatprep.subr.mxu0 0.0
    %1948 = vmatpush2.msra.mxu0 0.0
    %1949 = vmatprep.subr.mxu0 0.0
    %1950 = vmatpush2.msra.mxu0 0.0
    %1951 = vmatprep.subr.mxu0 0.0
    %1952 = vmatpush2.msra.mxu0 0.0
    %1953 = vmatprep.subr.mxu0 0.0
    %1954 = vmatpush2.msra.mxu0 0.0
    %1955 = vmatprep.subr.mxu0 0.0
    %1956 = vmatpush2.msra.mxu0 0.0
    %1957 = vmatprep.subr.mxu0 0.0
    %1958 = vmatpush2.msra.mxu0 0.0
    %1959 = vmatprep.subr.mxu0 0.0
    %1960 = vmatpush2.msra.mxu0 0.0
    %1961 = vmatprep.subr.mxu0 0.0
    %1962 = vmatpush2.msra.mxu0 0.0
    %1963 = vmatprep.subr.mxu0 0.0
    %1964 = vmatpush2.msra.mxu0 0.0
    %1965 = vmatprep.subr.mxu0 0.0
    %1966 = vmatpush2.msra.mxu0 0.0
    %1967 = vmatprep.subr.mxu0 0.0
    %1968 = vmatpush2.msra.mxu0 0.0
    %1969 = vmatprep.subr.mxu0 0.0
    %1970 = vmatpush2.msra.mxu0 0.0
    %1971 = vmatprep.subr.mxu0 0.0
    %1972 = vmatpush2.msra.mxu0 0.0
    %1973 = vmatprep.mubr.f32.mxu0 0.0
    %1974 = vmatmul.mubr.f32.gmra.mxu0 %v1874
    %v1975 = vpop.f32.mrf.mxu0
    %v1976 = vadd.f32 0.0, %v1975
    %v1977 = vpop.f32.mrf.mxu0
    %1978 = vmatprep.mubr.f32.mxu0 0.0
    %1979 = vmatmul.mubr.f32.gmra.mxu0 %v1879
    %v1980 = vpop.f32.mrf.mxu0
    %v1981 = vadd.f32 0.0, %v1980
    %v1982 = vpop.f32.mrf.mxu0
    %1983 = vmatprep.mubr.f32.mxu0 0.0
    %1984 = vmatmul.mubr.f32.gmra.mxu0 %v1884
    %v1985 = vpop.f32.mrf.mxu0
    %v1986 = vadd.f32 0.0, %v1985
    %v1987 = vpop.f32.mrf.mxu0
    %1988 = vmatprep.mubr.f32.mxu0 0.0
    %1989 = vmatmul.mubr.f32.gmra.mxu0 %v1889
    %v1990 = vpop.f32.mrf.mxu0
    %v1991 = vadd.f32 0.0, %v1990
    %v1992 = vpop.f32.mrf.mxu0
    %1993 = vdwg.mxu0
    %v1994 = vadd.f32 %v1789, %v1976
    %v1995 = vadd.f32 %v1794, %v1981
    %v1996 = vadd.f32 %v1799, %v1986
    %v1997 = vadd.f32 %v1804, %v1991
    %v1998 = vld [vmem:[%s7] sm:$0x1]
    %v2000 = vlaneseq
    %v2001 = vshrl.u32 %v2000, 7
    %v2002 = vsub.s32 0, %v2001
    %v2003 = vrot.slane %v1998, %v2002
    %v2005 = vadd.f32 %v1994, %v2003
    %v2006 = vadd.f32 %v1995, %v2003
    %v2007 = vadd.f32 %v1996, %v2003
    %v2008 = vadd.f32 %v1997, %v2003
    %v2009 = vmul.f32 %v2005, %v2005
    %v2010 = vmul.f32 %v2006, %v2006
    %v2011 = vmul.f32 %v2007, %v2007
    %v2012 = vmul.f32 %v2008, %v2008
    %2017 = vrot.lane.b32.xlu0 %v2009, 112
    %v2018 = vpop.permute.xlu0 %2017
    %2019 = vrot.lane.b32.xlu0 %v2010, 112
    %v2020 = vpop.permute.xlu0 %2019
    %2021 = vrot.lane.b32.xlu0 %v2011, 112
    %v2022 = vpop.permute.xlu0 %2021
    %2023 = vrot.lane.b32.xlu0 %v2012, 112
    %v2024 = vpop.permute.xlu0 %2023
    %v2029 = vadd.f32 %v2009, %v2018
    %v2030 = vadd.f32 %v2010, %v2020
    %v2031 = vadd.f32 %v2011, %v2022
    %v2032 = vadd.f32 %v2012, %v2024
    %vm2033 = vcmp.gt.f32.partialorder %v2029, 0.0
    %vm2034 = vcmp.gt.f32.partialorder %v2030, 0.0
    %vm2035 = vcmp.gt.f32.partialorder %v2031, 0.0
    %vm2036 = vcmp.gt.f32.partialorder %v2032, 0.0
    %v2037 = vsel %vm2033, %v2029, 1.0
    %v2038 = vsel %vm2034, %v2030, 1.0
    %v2039 = vsel %vm2035, %v2031, 1.0
    %v2040 = vsel %vm2036, %v2032, 1.0
    %v2041 = vrsqrt.pop %v2037
    %v2042 = vmul.f32 %v2037, %v2041
    %vm2043 = vcmp.eq.f32.partialorder %v2037, inf
    %v2044 = vsel %vm2043, %v2037, %v2042
    %vm2045 = vcmp.eq.f32.partialorder %v2037, 0.0
    %v2046 = vand.u32 %v2037, 2147483648
    %v2047 = vsel %vm2045, %v2046, %v2044
    %v2048 = vrsqrt.pop %v2038
    %v2049 = vmul.f32 %v2038, %v2048
    %vm2050 = vcmp.eq.f32.partialorder %v2038, inf
    %v2051 = vsel %vm2050, %v2038, %v2049
    %vm2052 = vcmp.eq.f32.partialorder %v2038, 0.0
    %v2053 = vand.u32 %v2038, 2147483648
    %v2054 = vsel %vm2052, %v2053, %v2051
    %v2055 = vrsqrt.pop %v2039
    %v2056 = vmul.f32 %v2039, %v2055
    %vm2057 = vcmp.eq.f32.partialorder %v2039, inf
    %v2058 = vsel %vm2057, %v2039, %v2056
    %vm2059 = vcmp.eq.f32.partialorder %v2039, 0.0
    %v2060 = vand.u32 %v2039, 2147483648
    %v2061 = vsel %vm2059, %v2060, %v2058
    %v2062 = vrsqrt.pop %v2040
    %v2063 = vmul.f32 %v2040, %v2062
    %vm2064 = vcmp.eq.f32.partialorder %v2040, inf
    %v2065 = vsel %vm2064, %v2040, %v2063
    %vm2066 = vcmp.eq.f32.partialorder %v2040, 0.0
    %v2067 = vand.u32 %v2040, 2147483648
    %v2068 = vsel %vm2066, %v2067, %v2065
    %v2069 = vsel %vm2033, %v2047, 0.0
    %v2070 = vsel %vm2034, %v2054, 0.0
    %v2071 = vsel %vm2035, %v2061, 0.0
    %v2072 = vsel %vm2036, %v2068, 0.0
    %v2073 = vmul.f32 %v2005, %v2069
    %v2074 = vmul.f32 %v2006, %v2070
    %v2075 = vmul.f32 %v2007, %v2071
    %v2076 = vmul.f32 %v2008, %v2072
    %2081 = vrot.lane.b32.xlu0 %v2069, 16
    %v2082 = vpop.permute.xlu0 %2081
    %2083 = vrot.lane.b32.xlu0 %v2070, 16
    %v2084 = vpop.permute.xlu0 %2083
    %2085 = vrot.lane.b32.xlu0 %v2071, 16
    %v2086 = vpop.permute.xlu0 %2085
    %2087 = vrot.lane.b32.xlu0 %v2072, 16
    %v2088 = vpop.permute.xlu0 %2087
    %v2093 = vmul.f32 %v2005, %v2082
    %v2094 = vmul.f32 %v2006, %v2084
    %v2095 = vmul.f32 %v2007, %v2086
    %v2096 = vmul.f32 %v2008, %v2088
    %v2097 = vsel %vm966, %v2073, %v2093
    %v2098 = vsel %vm966, %v2074, %v2094
    %v2099 = vsel %vm966, %v2075, %v2095
    %v2100 = vsel %vm966, %v2076, %v2096
    %v2101 = vld [vmem:[%s8] sm:$0x3]
    %v2103 = vsel %vm980, %v2101, 0
    %2105 = vmatprep.subr.mxu0 0.0
    %2106 = vmatpush1.msra.mxu0 0.0
    %2107 = vmatprep.subr.mxu0 0.0
    %2108 = vmatpush1.msra.mxu0 0.0
    %2109 = vmatprep.subr.mxu0 0.0
    %2110 = vmatpush1.msra.mxu0 0.0
    %2111 = vmatprep.subr.mxu0 0.0
    %2112 = vmatpush1.msra.mxu0 0.0
    %2113 = vmatprep.subr.mxu0 0.0
    %2114 = vmatpush1.msra.mxu0 0.0
    %2115 = vmatprep.subr.mxu0 0.0
    %2116 = vmatpush1.msra.mxu0 0.0
    %2117 = vmatprep.subr.mxu0 0.0
    %2118 = vmatpush1.msra.mxu0 0.0
    %2119 = vmatprep.subr.mxu0 0.0
    %2120 = vmatpush1.msra.mxu0 0.0
    %2121 = vmatprep.subr.mxu0 0.0
    %2122 = vmatpush1.msra.mxu0 0.0
    %2123 = vmatprep.subr.mxu0 0.0
    %2124 = vmatpush1.msra.mxu0 0.0
    %2125 = vmatprep.subr.mxu0 0.0
    %2126 = vmatpush1.msra.mxu0 0.0
    %2127 = vmatprep.subr.mxu0 0.0
    %2128 = vmatpush1.msra.mxu0 0.0
    %2129 = vmatprep.subr.mxu0 0.0
    %2130 = vmatpush1.msra.mxu0 %v2100
    %2131 = vmatprep.subr.mxu0 0.0
    %2132 = vmatpush1.msra.mxu0 %v2099
    %2133 = vmatprep.subr.mxu0 0.0
    %2134 = vmatpush1.msra.mxu0 %v2098
    %2135 = vmatprep.subr.mxu0 0.0
    %2136 = vmatpush1.msra.mxu0 %v2097
    %2137 = vmatprep.subr.mxu0 0.0
    %2138 = vmatpush2.msra.mxu0 0.0
    %2139 = vmatprep.subr.mxu0 0.0
    %2140 = vmatpush2.msra.mxu0 0.0
    %2141 = vmatprep.subr.mxu0 0.0
    %2142 = vmatpush2.msra.mxu0 0.0
    %2143 = vmatprep.subr.mxu0 0.0
    %2144 = vmatpush2.msra.mxu0 0.0
    %2145 = vmatprep.subr.mxu0 0.0
    %2146 = vmatpush2.msra.mxu0 0.0
    %2147 = vmatprep.subr.mxu0 0.0
    %2148 = vmatpush2.msra.mxu0 0.0
    %2149 = vmatprep.subr.mxu0 0.0
    %2150 = vmatpush2.msra.mxu0 0.0
    %2151 = vmatprep.subr.mxu0 0.0
    %2152 = vmatpush2.msra.mxu0 0.0
    %2153 = vmatprep.subr.mxu0 0.0
    %2154 = vmatpush2.msra.mxu0 0.0
    %2155 = vmatprep.subr.mxu0 0.0
    %2156 = vmatpush2.msra.mxu0 0.0
    %2157 = vmatprep.subr.mxu0 0.0
    %2158 = vmatpush2.msra.mxu0 0.0
    %2159 = vmatprep.subr.mxu0 0.0
    %2160 = vmatpush2.msra.mxu0 0.0
    %2161 = vmatprep.subr.mxu0 0.0
    %2162 = vmatpush2.msra.mxu0 0.0
    %2163 = vmatprep.subr.mxu0 0.0
    %2164 = vmatpush2.msra.mxu0 0.0
    %2165 = vmatprep.subr.mxu0 0.0
    %2166 = vmatpush2.msra.mxu0 0.0
    %2167 = vmatprep.subr.mxu0 0.0
    %2168 = vmatpush2.msra.mxu0 0.0
    %2169 = vmatprep.mubr.f32.mxu0 0.0
    %2170 = vmatmul.mubr.f32.gmra.mxu0 %v2103
    %v2171 = vpop.f32.mrf.mxu0
    %v2172 = vadd.f32 0.0, %v2171
    %v2173 = vpop.f32.mrf.mxu0
    %2174 = vdwg.mxu0
    %v2175 = vld [vmem:[#allocation2] sm:$0xff]
    %v2176 = vld [vmem:[#allocation2 + $0x8] sm:$0xff]
    %v2177 = vld [vmem:[#allocation2 + $0x10] sm:$0xff]
    %v2178 = vld [vmem:[#allocation2 + $0x18] sm:$0xff]
    %v2179 = vld [vmem:[#allocation2 + $0x20] sm:$0xff]
    %v2180 = vld [vmem:[#allocation2 + $0x28] sm:$0xff]
    %v2181 = vld [vmem:[#allocation2 + $0x30] sm:$0xff]
    %v2182 = vld [vmem:[#allocation2 + $0x38] sm:$0xff]
    %s2183 = scalar_lea.vmem %s8, 2
    %v2184 = vld [vmem:[%s2183] sm:$0x3]
    %v2186 = vsel %vm980, %v2184, 0
    %2188 = vmatprep.subr.mxu0 0.0
    %2189 = vmatpush1.msra.mxu0 0.0
    %2190 = vmatprep.subr.mxu0 0.0
    %2191 = vmatpush1.msra.mxu0 0.0
    %2192 = vmatprep.subr.mxu0 0.0
    %2193 = vmatpush1.msra.mxu0 0.0
    %2194 = vmatprep.subr.mxu0 0.0
    %2195 = vmatpush1.msra.mxu0 0.0
    %2196 = vmatprep.subr.mxu0 0.0
    %2197 = vmatpush1.msra.mxu0 0.0
    %2198 = vmatprep.subr.mxu0 0.0
    %2199 = vmatpush1.msra.mxu0 0.0
    %2200 = vmatprep.subr.mxu0 0.0
    %2201 = vmatpush1.msra.mxu0 0.0
    %2202 = vmatprep.subr.mxu0 0.0
    %2203 = vmatpush1.msra.mxu0 0.0
    %2204 = vmatprep.subr.mxu0 0.0
    %2205 = vmatpush1.msra.mxu0 0.0
    %2206 = vmatprep.subr.mxu0 0.0
    %2207 = vmatpush1.msra.mxu0 0.0
    %2208 = vmatprep.subr.mxu0 0.0
    %2209 = vmatpush1.msra.mxu0 0.0
    %2210 = vmatprep.subr.mxu0 0.0
    %2211 = vmatpush1.msra.mxu0 0.0
    %2212 = vmatprep.subr.mxu0 0.0
    %2213 = vmatpush1.msra.mxu0 %v2100
    %2214 = vmatprep.subr.mxu0 0.0
    %2215 = vmatpush1.msra.mxu0 %v2099
    %2216 = vmatprep.subr.mxu0 0.0
    %2217 = vmatpush1.msra.mxu0 %v2098
    %2218 = vmatprep.subr.mxu0 0.0
    %2219 = vmatpush1.msra.mxu0 %v2097
    %2220 = vmatprep.subr.mxu0 0.0
    %2221 = vmatpush2.msra.mxu0 0.0
    %2222 = vmatprep.subr.mxu0 0.0
    %2223 = vmatpush2.msra.mxu0 0.0
    %2224 = vmatprep.subr.mxu0 0.0
    %2225 = vmatpush2.msra.mxu0 0.0
    %2226 = vmatprep.subr.mxu0 0.0
    %2227 = vmatpush2.msra.mxu0 0.0
    %2228 = vmatprep.subr.mxu0 0.0
    %2229 = vmatpush2.msra.mxu0 0.0
    %2230 = vmatprep.subr.mxu0 0.0
    %2231 = vmatpush2.msra.mxu0 0.0
    %2232 = vmatprep.subr.mxu0 0.0
    %2233 = vmatpush2.msra.mxu0 0.0
    %2234 = vmatprep.subr.mxu0 0.0
    %2235 = vmatpush2.msra.mxu0 0.0
    %2236 = vmatprep.subr.mxu0 0.0
    %2237 = vmatpush2.msra.mxu0 0.0
    %2238 = vmatprep.subr.mxu0 0.0
    %2239 = vmatpush2.msra.mxu0 0.0
    %2240 = vmatprep.subr.mxu0 0.0
    %2241 = vmatpush2.msra.mxu0 0.0
    %2242 = vmatprep.subr.mxu0 0.0
    %2243 = vmatpush2.msra.mxu0 0.0
    %2244 = vmatprep.subr.mxu0 0.0
    %2245 = vmatpush2.msra.mxu0 0.0
    %2246 = vmatprep.subr.mxu0 0.0
    %2247 = vmatpush2.msra.mxu0 0.0
    %2248 = vmatprep.subr.mxu0 0.0
    %2249 = vmatpush2.msra.mxu0 0.0
    %2250 = vmatprep.subr.mxu0 0.0
    %2251 = vmatpush2.msra.mxu0 0.0
    %2252 = vmatprep.mubr.f32.mxu0 0.0
    %2253 = vmatmul.mubr.f32.gmra.mxu0 %v2186
    %v2254 = vpop.f32.mrf.mxu0
    %v2255 = vadd.f32 0.0, %v2254
    %v2256 = vpop.f32.mrf.mxu0
    %2257 = vdwg.mxu0
    %s2258 = scalar_lea.vmem [#allocation2], 64
    %v2259 = vld [vmem:[%s2258] sm:$0xff]
    %v2260 = vld [vmem:[%s2258 + $0x8] sm:$0xff]
    %v2261 = vld [vmem:[%s2258 + $0x10] sm:$0xff]
    %v2262 = vld [vmem:[%s2258 + $0x18] sm:$0xff]
    %v2263 = vld [vmem:[%s2258 + $0x20] sm:$0xff]
    %v2264 = vld [vmem:[%s2258 + $0x28] sm:$0xff]
    %v2265 = vld [vmem:[%s2258 + $0x30] sm:$0xff]
    %v2266 = vld [vmem:[%s2258 + $0x38] sm:$0xff]
    %v2268 = vsel %vm980, %v2255, 0
    %2270 = vmatprep.subr.mxu0 0.0
    %2271 = vmatpush1.msra.mxu0 0.0
    %2272 = vmatprep.subr.mxu0 0.0
    %2273 = vmatpush1.msra.mxu0 0.0
    %2274 = vmatprep.subr.mxu0 0.0
    %2275 = vmatpush1.msra.mxu0 0.0
    %2276 = vmatprep.subr.mxu0 0.0
    %2277 = vmatpush1.msra.mxu0 0.0
    %2278 = vmatprep.subr.mxu0 0.0
    %2279 = vmatpush1.msra.mxu0 0.0
    %2280 = vmatprep.subr.mxu0 0.0
    %2281 = vmatpush1.msra.mxu0 0.0
    %2282 = vmatprep.subr.mxu0 0.0
    %2283 = vmatpush1.msra.mxu0 0.0
    %2284 = vmatprep.subr.mxu0 0.0
    %2285 = vmatpush1.msra.mxu0 0.0
    %2286 = vmatprep.subr.mxu0 0.0
    %2287 = vmatpush1.msra.mxu0 0.0
    %2288 = vmatprep.subr.mxu0 0.0
    %2289 = vmatpush1.msra.mxu0 0.0
    %2290 = vmatprep.subr.mxu0 0.0
    %2291 = vmatpush1.msra.mxu0 0.0
    %2292 = vmatprep.subr.mxu0 0.0
    %2293 = vmatpush1.msra.mxu0 0.0
    %2294 = vmatprep.subr.mxu0 %v2266
    %2295 = vmatpush1.msra.mxu0 %v2265
    %2296 = vmatprep.subr.mxu0 %v2264
    %2297 = vmatpush1.msra.mxu0 %v2263
    %2298 = vmatprep.subr.mxu0 %v2262
    %2299 = vmatpush1.msra.mxu0 %v2261
    %2300 = vmatprep.subr.mxu0 %v2260
    %2301 = vmatpush1.msra.mxu0 %v2259
    %2302 = vmatprep.subr.mxu0 0.0
    %2303 = vmatpush2.msra.mxu0 0.0
    %2304 = vmatprep.subr.mxu0 0.0
    %2305 = vmatpush2.msra.mxu0 0.0
    %2306 = vmatprep.subr.mxu0 0.0
    %2307 = vmatpush2.msra.mxu0 0.0
    %2308 = vmatprep.subr.mxu0 0.0
    %2309 = vmatpush2.msra.mxu0 0.0
    %2310 = vmatprep.subr.mxu0 0.0
    %2311 = vmatpush2.msra.mxu0 0.0
    %2312 = vmatprep.subr.mxu0 0.0
    %2313 = vmatpush2.msra.mxu0 0.0
    %2314 = vmatprep.subr.mxu0 0.0
    %2315 = vmatpush2.msra.mxu0 0.0
    %2316 = vmatprep.subr.mxu0 0.0
    %2317 = vmatpush2.msra.mxu0 0.0
    %2318 = vmatprep.subr.mxu0 0.0
    %2319 = vmatpush2.msra.mxu0 0.0
    %2320 = vmatprep.subr.mxu0 0.0
    %2321 = vmatpush2.msra.mxu0 0.0
    %2322 = vmatprep.subr.mxu0 0.0
    %2323 = vmatpush2.msra.mxu0 0.0
    %2324 = vmatprep.subr.mxu0 0.0
    %2325 = vmatpush2.msra.mxu0 0.0
    %2326 = vmatprep.subr.mxu0 0.0
    %2327 = vmatpush2.msra.mxu0 0.0
    %2328 = vmatprep.subr.mxu0 0.0
    %2329 = vmatpush2.msra.mxu0 0.0
    %2330 = vmatprep.subr.mxu0 0.0
    %2331 = vmatpush2.msra.mxu0 0.0
    %2332 = vmatprep.subr.mxu0 0.0
    %2333 = vmatpush2.msra.mxu0 0.0
    %2334 = vmatprep.mubr.f32.mxu0 0.0
    %2335 = vmatmul.mubr.f32.gmra.mxu0 %v2268
    %v2336 = vpop.f32.mrf.mxu0
    %v2337 = vadd.f32 0.0, %v2336
    %v2338 = vpop.f32.mrf.mxu0
    %v2339 = vadd.f32 0.0, %v2338
    %2340 = vdwg.mxu0
    %v2342 = vsel %vm980, %v2172, 0
    %2344 = vmatprep.subr.mxu0 0.0
    %2345 = vmatpush1.msra.mxu0 0.0
    %2346 = vmatprep.subr.mxu0 0.0
    %2347 = vmatpush1.msra.mxu0 0.0
    %2348 = vmatprep.subr.mxu0 0.0
    %2349 = vmatpush1.msra.mxu0 0.0
    %2350 = vmatprep.subr.mxu0 0.0
    %2351 = vmatpush1.msra.mxu0 0.0
    %2352 = vmatprep.subr.mxu0 0.0
    %2353 = vmatpush1.msra.mxu0 0.0
    %2354 = vmatprep.subr.mxu0 0.0
    %2355 = vmatpush1.msra.mxu0 0.0
    %2356 = vmatprep.subr.mxu0 0.0
    %2357 = vmatpush1.msra.mxu0 0.0
    %2358 = vmatprep.subr.mxu0 0.0
    %2359 = vmatpush1.msra.mxu0 0.0
    %2360 = vmatprep.subr.mxu0 0.0
    %2361 = vmatpush1.msra.mxu0 0.0
    %2362 = vmatprep.subr.mxu0 0.0
    %2363 = vmatpush1.msra.mxu0 0.0
    %2364 = vmatprep.subr.mxu0 0.0
    %2365 = vmatpush1.msra.mxu0 0.0
    %2366 = vmatprep.subr.mxu0 0.0
    %2367 = vmatpush1.msra.mxu0 0.0
    %2368 = vmatprep.subr.mxu0 %v2182
    %2369 = vmatpush1.msra.mxu0 %v2181
    %2370 = vmatprep.subr.mxu0 %v2180
    %2371 = vmatpush1.msra.mxu0 %v2179
    %2372 = vmatprep.subr.mxu0 %v2178
    %2373 = vmatpush1.msra.mxu0 %v2177
    %2374 = vmatprep.subr.mxu0 %v2176
    %2375 = vmatpush1.msra.mxu0 %v2175
    %2376 = vmatprep.subr.mxu0 0.0
    %2377 = vmatpush2.msra.mxu0 0.0
    %2378 = vmatprep.subr.mxu0 0.0
    %2379 = vmatpush2.msra.mxu0 0.0
    %2380 = vmatprep.subr.mxu0 0.0
    %2381 = vmatpush2.msra.mxu0 0.0
    %2382 = vmatprep.subr.mxu0 0.0
    %2383 = vmatpush2.msra.mxu0 0.0
    %2384 = vmatprep.subr.mxu0 0.0
    %2385 = vmatpush2.msra.mxu0 0.0
    %2386 = vmatprep.subr.mxu0 0.0
    %2387 = vmatpush2.msra.mxu0 0.0
    %2388 = vmatprep.subr.mxu0 0.0
    %2389 = vmatpush2.msra.mxu0 0.0
    %2390 = vmatprep.subr.mxu0 0.0
    %2391 = vmatpush2.msra.mxu0 0.0
    %2392 = vmatprep.subr.mxu0 0.0
    %2393 = vmatpush2.msra.mxu0 0.0
    %2394 = vmatprep.subr.mxu0 0.0
    %2395 = vmatpush2.msra.mxu0 0.0
    %2396 = vmatprep.subr.mxu0 0.0
    %2397 = vmatpush2.msra.mxu0 0.0
    %2398 = vmatprep.subr.mxu0 0.0
    %2399 = vmatpush2.msra.mxu0 0.0
    %2400 = vmatprep.subr.mxu0 0.0
    %2401 = vmatpush2.msra.mxu0 0.0
    %2402 = vmatprep.subr.mxu0 0.0
    %2403 = vmatpush2.msra.mxu0 0.0
    %2404 = vmatprep.subr.mxu0 0.0
    %2405 = vmatpush2.msra.mxu0 0.0
    %2406 = vmatprep.subr.mxu0 0.0
    %2407 = vmatpush2.msra.mxu0 0.0
    %2408 = vmatprep.mubr.f32.mxu0 0.0
    %2409 = vmatmul.mubr.f32.gmra.mxu0 %v2342
    %v2410 = vpop.f32.mrf.mxu0
    %v2411 = vadd.f32 %v2337, %v2410
    %v2412 = vpop.f32.mrf.mxu0
    %v2413 = vadd.f32 %v2339, %v2412
    %2414 = vdwg.mxu0
    %s2415 = scalar_lea.vmem %s8, 4
    %v2416 = vld [vmem:[%s2415] sm:$0x3]
    %v2418 = vsel %vm980, %v2416, 0
    %2420 = vmatprep.subr.mxu0 0.0
    %2421 = vmatpush1.msra.mxu0 0.0
    %2422 = vmatprep.subr.mxu0 0.0
    %2423 = vmatpush1.msra.mxu0 0.0
    %2424 = vmatprep.subr.mxu0 0.0
    %2425 = vmatpush1.msra.mxu0 0.0
    %2426 = vmatprep.subr.mxu0 0.0
    %2427 = vmatpush1.msra.mxu0 0.0
    %2428 = vmatprep.subr.mxu0 0.0
    %2429 = vmatpush1.msra.mxu0 0.0
    %2430 = vmatprep.subr.mxu0 0.0
    %2431 = vmatpush1.msra.mxu0 0.0
    %2432 = vmatprep.subr.mxu0 0.0
    %2433 = vmatpush1.msra.mxu0 0.0
    %2434 = vmatprep.subr.mxu0 0.0
    %2435 = vmatpush1.msra.mxu0 0.0
    %2436 = vmatprep.subr.mxu0 0.0
    %2437 = vmatpush1.msra.mxu0 0.0
    %2438 = vmatprep.subr.mxu0 0.0
    %2439 = vmatpush1.msra.mxu0 0.0
    %2440 = vmatprep.subr.mxu0 0.0
    %2441 = vmatpush1.msra.mxu0 0.0
    %2442 = vmatprep.subr.mxu0 0.0
    %2443 = vmatpush1.msra.mxu0 0.0
    %2444 = vmatprep.subr.mxu0 0.0
    %2445 = vmatpush1.msra.mxu0 %v2100
    %2446 = vmatprep.subr.mxu0 0.0
    %2447 = vmatpush1.msra.mxu0 %v2099
    %2448 = vmatprep.subr.mxu0 0.0
    %2449 = vmatpush1.msra.mxu0 %v2098
    %2450 = vmatprep.subr.mxu0 0.0
    %2451 = vmatpush1.msra.mxu0 %v2097
    %2452 = vmatprep.subr.mxu0 0.0
    %2453 = vmatpush2.msra.mxu0 0.0
    %2454 = vmatprep.subr.mxu0 0.0
    %2455 = vmatpush2.msra.mxu0 0.0
    %2456 = vmatprep.subr.mxu0 0.0
    %2457 = vmatpush2.msra.mxu0 0.0
    %2458 = vmatprep.subr.mxu0 0.0
    %2459 = vmatpush2.msra.mxu0 0.0
    %2460 = vmatprep.subr.mxu0 0.0
    %2461 = vmatpush2.msra.mxu0 0.0
    %2462 = vmatprep.subr.mxu0 0.0
    %2463 = vmatpush2.msra.mxu0 0.0
    %2464 = vmatprep.subr.mxu0 0.0
    %2465 = vmatpush2.msra.mxu0 0.0
    %2466 = vmatprep.subr.mxu0 0.0
    %2467 = vmatpush2.msra.mxu0 0.0
    %2468 = vmatprep.subr.mxu0 0.0
    %2469 = vmatpush2.msra.mxu0 0.0
    %2470 = vmatprep.subr.mxu0 0.0
    %2471 = vmatpush2.msra.mxu0 0.0
    %2472 = vmatprep.subr.mxu0 0.0
    %2473 = vmatpush2.msra.mxu0 0.0
    %2474 = vmatprep.subr.mxu0 0.0
    %2475 = vmatpush2.msra.mxu0 0.0
    %2476 = vmatprep.subr.mxu0 0.0
    %2477 = vmatpush2.msra.mxu0 0.0
    %2478 = vmatprep.subr.mxu0 0.0
    %2479 = vmatpush2.msra.mxu0 0.0
    %2480 = vmatprep.subr.mxu0 0.0
    %2481 = vmatpush2.msra.mxu0 0.0
    %2482 = vmatprep.subr.mxu0 0.0
    %2483 = vmatpush2.msra.mxu0 0.0
    %2484 = vmatprep.mubr.f32.mxu0 0.0
    %2485 = vmatmul.mubr.f32.gmra.mxu0 %v2418
    %v2486 = vpop.f32.mrf.mxu0
    %v2487 = vadd.f32 0.0, %v2486
    %v2488 = vpop.f32.mrf.mxu0
    %2489 = vdwg.mxu0
    %s2490 = scalar_lea.vmem [#allocation2], 128
    %v2491 = vld [vmem:[%s2490] sm:$0xff]
    %v2492 = vld [vmem:[%s2490 + $0x8] sm:$0xff]
    %v2493 = vld [vmem:[%s2490 + $0x10] sm:$0xff]
    %v2494 = vld [vmem:[%s2490 + $0x18] sm:$0xff]
    %v2495 = vld [vmem:[%s2490 + $0x20] sm:$0xff]
    %v2496 = vld [vmem:[%s2490 + $0x28] sm:$0xff]
    %v2497 = vld [vmem:[%s2490 + $0x30] sm:$0xff]
    %v2498 = vld [vmem:[%s2490 + $0x38] sm:$0xff]
    %v2500 = vsel %vm980, %v2487, 0
    %2502 = vmatprep.subr.mxu0 0.0
    %2503 = vmatpush1.msra.mxu0 0.0
    %2504 = vmatprep.subr.mxu0 0.0
    %2505 = vmatpush1.msra.mxu0 0.0
    %2506 = vmatprep.subr.mxu0 0.0
    %2507 = vmatpush1.msra.mxu0 0.0
    %2508 = vmatprep.subr.mxu0 0.0
    %2509 = vmatpush1.msra.mxu0 0.0
    %2510 = vmatprep.subr.mxu0 0.0
    %2511 = vmatpush1.msra.mxu0 0.0
    %2512 = vmatprep.subr.mxu0 0.0
    %2513 = vmatpush1.msra.mxu0 0.0
    %2514 = vmatprep.subr.mxu0 0.0
    %2515 = vmatpush1.msra.mxu0 0.0
    %2516 = vmatprep.subr.mxu0 0.0
    %2517 = vmatpush1.msra.mxu0 0.0
    %2518 = vmatprep.subr.mxu0 0.0
    %2519 = vmatpush1.msra.mxu0 0.0
    %2520 = vmatprep.subr.mxu0 0.0
    %2521 = vmatpush1.msra.mxu0 0.0
    %2522 = vmatprep.subr.mxu0 0.0
    %2523 = vmatpush1.msra.mxu0 0.0
    %2524 = vmatprep.subr.mxu0 0.0
    %2525 = vmatpush1.msra.mxu0 0.0
    %2526 = vmatprep.subr.mxu0 %v2498
    %2527 = vmatpush1.msra.mxu0 %v2497
    %2528 = vmatprep.subr.mxu0 %v2496
    %2529 = vmatpush1.msra.mxu0 %v2495
    %2530 = vmatprep.subr.mxu0 %v2494
    %2531 = vmatpush1.msra.mxu0 %v2493
    %2532 = vmatprep.subr.mxu0 %v2492
    %2533 = vmatpush1.msra.mxu0 %v2491
    %2534 = vmatprep.subr.mxu0 0.0
    %2535 = vmatpush2.msra.mxu0 0.0
    %2536 = vmatprep.subr.mxu0 0.0
    %2537 = vmatpush2.msra.mxu0 0.0
    %2538 = vmatprep.subr.mxu0 0.0
    %2539 = vmatpush2.msra.mxu0 0.0
    %2540 = vmatprep.subr.mxu0 0.0
    %2541 = vmatpush2.msra.mxu0 0.0
    %2542 = vmatprep.subr.mxu0 0.0
    %2543 = vmatpush2.msra.mxu0 0.0
    %2544 = vmatprep.subr.mxu0 0.0
    %2545 = vmatpush2.msra.mxu0 0.0
    %2546 = vmatprep.subr.mxu0 0.0
    %2547 = vmatpush2.msra.mxu0 0.0
    %2548 = vmatprep.subr.mxu0 0.0
    %2549 = vmatpush2.msra.mxu0 0.0
    %2550 = vmatprep.subr.mxu0 0.0
    %2551 = vmatpush2.msra.mxu0 0.0
    %2552 = vmatprep.subr.mxu0 0.0
    %2553 = vmatpush2.msra.mxu0 0.0
    %2554 = vmatprep.subr.mxu0 0.0
    %2555 = vmatpush2.msra.mxu0 0.0
    %2556 = vmatprep.subr.mxu0 0.0
    %2557 = vmatpush2.msra.mxu0 0.0
    %2558 = vmatprep.subr.mxu0 0.0
    %2559 = vmatpush2.msra.mxu0 0.0
    %2560 = vmatprep.subr.mxu0 0.0
    %2561 = vmatpush2.msra.mxu0 0.0
    %2562 = vmatprep.subr.mxu0 0.0
    %2563 = vmatpush2.msra.mxu0 0.0
    %2564 = vmatprep.subr.mxu0 0.0
    %2565 = vmatpush2.msra.mxu0 0.0
    %2566 = vmatprep.mubr.f32.mxu0 0.0
    %2567 = vmatmul.mubr.f32.gmra.mxu0 %v2500
    %v2568 = vpop.f32.mrf.mxu0
    %v2569 = vadd.f32 0.0, %v2568
    %v2570 = vpop.f32.mrf.mxu0
    %v2571 = vadd.f32 0.0, %v2570
    %2572 = vdwg.mxu0
    %v2573 = vadd.f32 %v2411, %v2569
    %v2574 = vadd.f32 %v2413, %v2571
    %s2575 = scalar_lea.vmem %s8, 6
    %v2576 = vld [vmem:[%s2575] sm:$0x3]
    %v2578 = vsel %vm980, %v2576, 0
    %2580 = vmatprep.subr.mxu0 0.0
    %2581 = vmatpush1.msra.mxu0 0.0
    %2582 = vmatprep.subr.mxu0 0.0
    %2583 = vmatpush1.msra.mxu0 0.0
    %2584 = vmatprep.subr.mxu0 0.0
    %2585 = vmatpush1.msra.mxu0 0.0
    %2586 = vmatprep.subr.mxu0 0.0
    %2587 = vmatpush1.msra.mxu0 0.0
    %2588 = vmatprep.subr.mxu0 0.0
    %2589 = vmatpush1.msra.mxu0 0.0
    %2590 = vmatprep.subr.mxu0 0.0
    %2591 = vmatpush1.msra.mxu0 0.0
    %2592 = vmatprep.subr.mxu0 0.0
    %2593 = vmatpush1.msra.mxu0 0.0
    %2594 = vmatprep.subr.mxu0 0.0
    %2595 = vmatpush1.msra.mxu0 0.0
    %2596 = vmatprep.subr.mxu0 0.0
    %2597 = vmatpush1.msra.mxu0 0.0
    %2598 = vmatprep.subr.mxu0 0.0
    %2599 = vmatpush1.msra.mxu0 0.0
    %2600 = vmatprep.subr.mxu0 0.0
    %2601 = vmatpush1.msra.mxu0 0.0
    %2602 = vmatprep.subr.mxu0 0.0
    %2603 = vmatpush1.msra.mxu0 0.0
    %2604 = vmatprep.subr.mxu0 0.0
    %2605 = vmatpush1.msra.mxu0 %v2100
    %2606 = vmatprep.subr.mxu0 0.0
    %2607 = vmatpush1.msra.mxu0 %v2099
    %2608 = vmatprep.subr.mxu0 0.0
    %2609 = vmatpush1.msra.mxu0 %v2098
    %2610 = vmatprep.subr.mxu0 0.0
    %2611 = vmatpush1.msra.mxu0 %v2097
    %2612 = vmatprep.subr.mxu0 0.0
    %2613 = vmatpush2.msra.mxu0 0.0
    %2614 = vmatprep.subr.mxu0 0.0
    %2615 = vmatpush2.msra.mxu0 0.0
    %2616 = vmatprep.subr.mxu0 0.0
    %2617 = vmatpush2.msra.mxu0 0.0
    %2618 = vmatprep.subr.mxu0 0.0
    %2619 = vmatpush2.msra.mxu0 0.0
    %2620 = vmatprep.subr.mxu0 0.0
    %2621 = vmatpush2.msra.mxu0 0.0
    %2622 = vmatprep.subr.mxu0 0.0
    %2623 = vmatpush2.msra.mxu0 0.0
    %2624 = vmatprep.subr.mxu0 0.0
    %2625 = vmatpush2.msra.mxu0 0.0
    %2626 = vmatprep.subr.mxu0 0.0
    %2627 = vmatpush2.msra.mxu0 0.0
    %2628 = vmatprep.subr.mxu0 0.0
    %2629 = vmatpush2.msra.mxu0 0.0
    %2630 = vmatprep.subr.mxu0 0.0
    %2631 = vmatpush2.msra.mxu0 0.0
    %2632 = vmatprep.subr.mxu0 0.0
    %2633 = vmatpush2.msra.mxu0 0.0
    %2634 = vmatprep.subr.mxu0 0.0
    %2635 = vmatpush2.msra.mxu0 0.0
    %2636 = vmatprep.subr.mxu0 0.0
    %2637 = vmatpush2.msra.mxu0 0.0
    %2638 = vmatprep.subr.mxu0 0.0
    %2639 = vmatpush2.msra.mxu0 0.0
    %2640 = vmatprep.subr.mxu0 0.0
    %2641 = vmatpush2.msra.mxu0 0.0
    %2642 = vmatprep.subr.mxu0 0.0
    %2643 = vmatpush2.msra.mxu0 0.0
    %2644 = vmatprep.mubr.f32.mxu0 0.0
    %2645 = vmatmul.mubr.f32.gmra.mxu0 %v2578
    %v2646 = vpop.f32.mrf.mxu0
    %v2647 = vadd.f32 0.0, %v2646
    %v2648 = vpop.f32.mrf.mxu0
    %2649 = vdwg.mxu0
    %s2650 = scalar_lea.vmem [#allocation2], 192
    %v2651 = vld [vmem:[%s2650] sm:$0xff]
    %v2652 = vld [vmem:[%s2650 + $0x8] sm:$0xff]
    %v2653 = vld [vmem:[%s2650 + $0x10] sm:$0xff]
    %v2654 = vld [vmem:[%s2650 + $0x18] sm:$0xff]
    %v2655 = vld [vmem:[%s2650 + $0x20] sm:$0xff]
    %v2656 = vld [vmem:[%s2650 + $0x28] sm:$0xff]
    %v2657 = vld [vmem:[%s2650 + $0x30] sm:$0xff]
    %v2658 = vld [vmem:[%s2650 + $0x38] sm:$0xff]
    %v2660 = vsel %vm980, %v2647, 0
    %2662 = vmatprep.subr.mxu0 0.0
    %2663 = vmatpush1.msra.mxu0 0.0
    %2664 = vmatprep.subr.mxu0 0.0
    %2665 = vmatpush1.msra.mxu0 0.0
    %2666 = vmatprep.subr.mxu0 0.0
    %2667 = vmatpush1.msra.mxu0 0.0
    %2668 = vmatprep.subr.mxu0 0.0
    %2669 = vmatpush1.msra.mxu0 0.0
    %2670 = vmatprep.subr.mxu0 0.0
    %2671 = vmatpush1.msra.mxu0 0.0
    %2672 = vmatprep.subr.mxu0 0.0
    %2673 = vmatpush1.msra.mxu0 0.0
    %2674 = vmatprep.subr.mxu0 0.0
    %2675 = vmatpush1.msra.mxu0 0.0
    %2676 = vmatprep.subr.mxu0 0.0
    %2677 = vmatpush1.msra.mxu0 0.0
    %2678 = vmatprep.subr.mxu0 0.0
    %2679 = vmatpush1.msra.mxu0 0.0
    %2680 = vmatprep.subr.mxu0 0.0
    %2681 = vmatpush1.msra.mxu0 0.0
    %2682 = vmatprep.subr.mxu0 0.0
    %2683 = vmatpush1.msra.mxu0 0.0
    %2684 = vmatprep.subr.mxu0 0.0
    %2685 = vmatpush1.msra.mxu0 0.0
    %2686 = vmatprep.subr.mxu0 %v2658
    %2687 = vmatpush1.msra.mxu0 %v2657
    %2688 = vmatprep.subr.mxu0 %v2656
    %2689 = vmatpush1.msra.mxu0 %v2655
    %2690 = vmatprep.subr.mxu0 %v2654
    %2691 = vmatpush1.msra.mxu0 %v2653
    %2692 = vmatprep.subr.mxu0 %v2652
    %2693 = vmatpush1.msra.mxu0 %v2651
    %2694 = vmatprep.subr.mxu0 0.0
    %2695 = vmatpush2.msra.mxu0 0.0
    %2696 = vmatprep.subr.mxu0 0.0
    %2697 = vmatpush2.msra.mxu0 0.0
    %2698 = vmatprep.subr.mxu0 0.0
    %2699 = vmatpush2.msra.mxu0 0.0
    %2700 = vmatprep.subr.mxu0 0.0
    %2701 = vmatpush2.msra.mxu0 0.0
    %2702 = vmatprep.subr.mxu0 0.0
    %2703 = vmatpush2.msra.mxu0 0.0
    %2704 = vmatprep.subr.mxu0 0.0
    %2705 = vmatpush2.msra.mxu0 0.0
    %2706 = vmatprep.subr.mxu0 0.0
    %2707 = vmatpush2.msra.mxu0 0.0
    %2708 = vmatprep.subr.mxu0 0.0
    %2709 = vmatpush2.msra.mxu0 0.0
    %2710 = vmatprep.subr.mxu0 0.0
    %2711 = vmatpush2.msra.mxu0 0.0
    %2712 = vmatprep.subr.mxu0 0.0
    %2713 = vmatpush2.msra.mxu0 0.0
    %2714 = vmatprep.subr.mxu0 0.0
    %2715 = vmatpush2.msra.mxu0 0.0
    %2716 = vmatprep.subr.mxu0 0.0
    %2717 = vmatpush2.msra.mxu0 0.0
    %2718 = vmatprep.subr.mxu0 0.0
    %2719 = vmatpush2.msra.mxu0 0.0
    %2720 = vmatprep.subr.mxu0 0.0
    %2721 = vmatpush2.msra.mxu0 0.0
    %2722 = vmatprep.subr.mxu0 0.0
    %2723 = vmatpush2.msra.mxu0 0.0
    %2724 = vmatprep.subr.mxu0 0.0
    %2725 = vmatpush2.msra.mxu0 0.0
    %2726 = vmatprep.mubr.f32.mxu0 0.0
    %2727 = vmatmul.mubr.f32.gmra.mxu0 %v2660
    %v2728 = vpop.f32.mrf.mxu0
    %v2729 = vadd.f32 0.0, %v2728
    %v2730 = vpop.f32.mrf.mxu0
    %v2731 = vadd.f32 0.0, %v2730
    %2732 = vdwg.mxu0
    %v2733 = vadd.f32 %v2573, %v2729
    %v2734 = vadd.f32 %v2574, %v2731
    %s2735 = scalar_lea.vmem %s8, 8
    %v2736 = vld [vmem:[%s2735] sm:$0x3]
    %v2738 = vsel %vm980, %v2736, 0
    %2740 = vmatprep.subr.mxu0 0.0
    %2741 = vmatpush1.msra.mxu0 0.0
    %2742 = vmatprep.subr.mxu0 0.0
    %2743 = vmatpush1.msra.mxu0 0.0
    %2744 = vmatprep.subr.mxu0 0.0
    %2745 = vmatpush1.msra.mxu0 0.0
    %2746 = vmatprep.subr.mxu0 0.0
    %2747 = vmatpush1.msra.mxu0 0.0
    %2748 = vmatprep.subr.mxu0 0.0
    %2749 = vmatpush1.msra.mxu0 0.0
    %2750 = vmatprep.subr.mxu0 0.0
    %2751 = vmatpush1.msra.mxu0 0.0
    %2752 = vmatprep.subr.mxu0 0.0
    %2753 = vmatpush1.msra.mxu0 0.0
    %2754 = vmatprep.subr.mxu0 0.0
    %2755 = vmatpush1.msra.mxu0 0.0
    %2756 = vmatprep.subr.mxu0 0.0
    %2757 = vmatpush1.msra.mxu0 0.0
    %2758 = vmatprep.subr.mxu0 0.0
    %2759 = vmatpush1.msra.mxu0 0.0
    %2760 = vmatprep.subr.mxu0 0.0
    %2761 = vmatpush1.msra.mxu0 0.0
    %2762 = vmatprep.subr.mxu0 0.0
    %2763 = vmatpush1.msra.mxu0 0.0
    %2764 = vmatprep.subr.mxu0 0.0
    %2765 = vmatpush1.msra.mxu0 %v2100
    %2766 = vmatprep.subr.mxu0 0.0
    %2767 = vmatpush1.msra.mxu0 %v2099
    %2768 = vmatprep.subr.mxu0 0.0
    %2769 = vmatpush1.msra.mxu0 %v2098
    %2770 = vmatprep.subr.mxu0 0.0
    %2771 = vmatpush1.msra.mxu0 %v2097
    %2772 = vmatprep.subr.mxu0 0.0
    %2773 = vmatpush2.msra.mxu0 0.0
    %2774 = vmatprep.subr.mxu0 0.0
    %2775 = vmatpush2.msra.mxu0 0.0
    %2776 = vmatprep.subr.mxu0 0.0
    %2777 = vmatpush2.msra.mxu0 0.0
    %2778 = vmatprep.subr.mxu0 0.0
    %2779 = vmatpush2.msra.mxu0 0.0
    %2780 = vmatprep.subr.mxu0 0.0
    %2781 = vmatpush2.msra.mxu0 0.0
    %2782 = vmatprep.subr.mxu0 0.0
    %2783 = vmatpush2.msra.mxu0 0.0
    %2784 = vmatprep.subr.mxu0 0.0
    %2785 = vmatpush2.msra.mxu0 0.0
    %2786 = vmatprep.subr.mxu0 0.0
    %2787 = vmatpush2.msra.mxu0 0.0
    %2788 = vmatprep.subr.mxu0 0.0
    %2789 = vmatpush2.msra.mxu0 0.0
    %2790 = vmatprep.subr.mxu0 0.0
    %2791 = vmatpush2.msra.mxu0 0.0
    %2792 = vmatprep.subr.mxu0 0.0
    %2793 = vmatpush2.msra.mxu0 0.0
    %2794 = vmatprep.subr.mxu0 0.0
    %2795 = vmatpush2.msra.mxu0 0.0
    %2796 = vmatprep.subr.mxu0 0.0
    %2797 = vmatpush2.msra.mxu0 0.0
    %2798 = vmatprep.subr.mxu0 0.0
    %2799 = vmatpush2.msra.mxu0 0.0
    %2800 = vmatprep.subr.mxu0 0.0
    %2801 = vmatpush2.msra.mxu0 0.0
    %2802 = vmatprep.subr.mxu0 0.0
    %2803 = vmatpush2.msra.mxu0 0.0
    %2804 = vmatprep.mubr.f32.mxu0 0.0
    %2805 = vmatmul.mubr.f32.gmra.mxu0 %v2738
    %v2806 = vpop.f32.mrf.mxu0
    %v2807 = vadd.f32 0.0, %v2806
    %v2808 = vpop.f32.mrf.mxu0
    %2809 = vdwg.mxu0
    %s2810 = scalar_lea.vmem [#allocation2], 256
    %v2811 = vld [vmem:[%s2810] sm:$0xff]
    %v2812 = vld [vmem:[%s2810 + $0x8] sm:$0xff]
    %v2813 = vld [vmem:[%s2810 + $0x10] sm:$0xff]
    %v2814 = vld [vmem:[%s2810 + $0x18] sm:$0xff]
    %v2815 = vld [vmem:[%s2810 + $0x20] sm:$0xff]
    %v2816 = vld [vmem:[%s2810 + $0x28] sm:$0xff]
    %v2817 = vld [vmem:[%s2810 + $0x30] sm:$0xff]
    %v2818 = vld [vmem:[%s2810 + $0x38] sm:$0xff]
    %v2820 = vsel %vm980, %v2807, 0
    %2822 = vmatprep.subr.mxu0 0.0
    %2823 = vmatpush1.msra.mxu0 0.0
    %2824 = vmatprep.subr.mxu0 0.0
    %2825 = vmatpush1.msra.mxu0 0.0
    %2826 = vmatprep.subr.mxu0 0.0
    %2827 = vmatpush1.msra.mxu0 0.0
    %2828 = vmatprep.subr.mxu0 0.0
    %2829 = vmatpush1.msra.mxu0 0.0
    %2830 = vmatprep.subr.mxu0 0.0
    %2831 = vmatpush1.msra.mxu0 0.0
    %2832 = vmatprep.subr.mxu0 0.0
    %2833 = vmatpush1.msra.mxu0 0.0
    %2834 = vmatprep.subr.mxu0 0.0
    %2835 = vmatpush1.msra.mxu0 0.0
    %2836 = vmatprep.subr.mxu0 0.0
    %2837 = vmatpush1.msra.mxu0 0.0
    %2838 = vmatprep.subr.mxu0 0.0
    %2839 = vmatpush1.msra.mxu0 0.0
    %2840 = vmatprep.subr.mxu0 0.0
    %2841 = vmatpush1.msra.mxu0 0.0
    %2842 = vmatprep.subr.mxu0 0.0
    %2843 = vmatpush1.msra.mxu0 0.0
    %2844 = vmatprep.subr.mxu0 0.0
    %2845 = vmatpush1.msra.mxu0 0.0
    %2846 = vmatprep.subr.mxu0 %v2818
    %2847 = vmatpush1.msra.mxu0 %v2817
    %2848 = vmatprep.subr.mxu0 %v2816
    %2849 = vmatpush1.msra.mxu0 %v2815
    %2850 = vmatprep.subr.mxu0 %v2814
    %2851 = vmatpush1.msra.mxu0 %v2813
    %2852 = vmatprep.subr.mxu0 %v2812
    %2853 = vmatpush1.msra.mxu0 %v2811
    %2854 = vmatprep.subr.mxu0 0.0
    %2855 = vmatpush2.msra.mxu0 0.0
    %2856 = vmatprep.subr.mxu0 0.0
    %2857 = vmatpush2.msra.mxu0 0.0
    %2858 = vmatprep.subr.mxu0 0.0
    %2859 = vmatpush2.msra.mxu0 0.0
    %2860 = vmatprep.subr.mxu0 0.0
    %2861 = vmatpush2.msra.mxu0 0.0
    %2862 = vmatprep.subr.mxu0 0.0
    %2863 = vmatpush2.msra.mxu0 0.0
    %2864 = vmatprep.subr.mxu0 0.0
    %2865 = vmatpush2.msra.mxu0 0.0
    %2866 = vmatprep.subr.mxu0 0.0
    %2867 = vmatpush2.msra.mxu0 0.0
    %2868 = vmatprep.subr.mxu0 0.0
    %2869 = vmatpush2.msra.mxu0 0.0
    %2870 = vmatprep.subr.mxu0 0.0
    %2871 = vmatpush2.msra.mxu0 0.0
    %2872 = vmatprep.subr.mxu0 0.0
    %2873 = vmatpush2.msra.mxu0 0.0
    %2874 = vmatprep.subr.mxu0 0.0
    %2875 = vmatpush2.msra.mxu0 0.0
    %2876 = vmatprep.subr.mxu0 0.0
    %2877 = vmatpush2.msra.mxu0 0.0
    %2878 = vmatprep.subr.mxu0 0.0
    %2879 = vmatpush2.msra.mxu0 0.0
    %2880 = vmatprep.subr.mxu0 0.0
    %2881 = vmatpush2.msra.mxu0 0.0
    %2882 = vmatprep.subr.mxu0 0.0
    %2883 = vmatpush2.msra.mxu0 0.0
    %2884 = vmatprep.subr.mxu0 0.0
    %2885 = vmatpush2.msra.mxu0 0.0
    %2886 = vmatprep.mubr.f32.mxu0 0.0
    %2887 = vmatmul.mubr.f32.gmra.mxu0 %v2820
    %v2888 = vpop.f32.mrf.mxu0
    %v2889 = vadd.f32 0.0, %v2888
    %v2890 = vpop.f32.mrf.mxu0
    %v2891 = vadd.f32 0.0, %v2890
    %2892 = vdwg.mxu0
    %v2893 = vadd.f32 %v2733, %v2889
    %v2894 = vadd.f32 %v2734, %v2891
    %s2895 = scalar_lea.vmem %s8, 10
    %v2896 = vld [vmem:[%s2895] sm:$0x3]
    %v2898 = vsel %vm980, %v2896, 0
    %2900 = vmatprep.subr.mxu0 0.0
    %2901 = vmatpush1.msra.mxu0 0.0
    %2902 = vmatprep.subr.mxu0 0.0
    %2903 = vmatpush1.msra.mxu0 0.0
    %2904 = vmatprep.subr.mxu0 0.0
    %2905 = vmatpush1.msra.mxu0 0.0
    %2906 = vmatprep.subr.mxu0 0.0
    %2907 = vmatpush1.msra.mxu0 0.0
    %2908 = vmatprep.subr.mxu0 0.0
    %2909 = vmatpush1.msra.mxu0 0.0
    %2910 = vmatprep.subr.mxu0 0.0
    %2911 = vmatpush1.msra.mxu0 0.0
    %2912 = vmatprep.subr.mxu0 0.0
    %2913 = vmatpush1.msra.mxu0 0.0
    %2914 = vmatprep.subr.mxu0 0.0
    %2915 = vmatpush1.msra.mxu0 0.0
    %2916 = vmatprep.subr.mxu0 0.0
    %2917 = vmatpush1.msra.mxu0 0.0
    %2918 = vmatprep.subr.mxu0 0.0
    %2919 = vmatpush1.msra.mxu0 0.0
    %2920 = vmatprep.subr.mxu0 0.0
    %2921 = vmatpush1.msra.mxu0 0.0
    %2922 = vmatprep.subr.mxu0 0.0
    %2923 = vmatpush1.msra.mxu0 0.0
    %2924 = vmatprep.subr.mxu0 0.0
    %2925 = vmatpush1.msra.mxu0 %v2100
    %2926 = vmatprep.subr.mxu0 0.0
    %2927 = vmatpush1.msra.mxu0 %v2099
    %2928 = vmatprep.subr.mxu0 0.0
    %2929 = vmatpush1.msra.mxu0 %v2098
    %2930 = vmatprep.subr.mxu0 0.0
    %2931 = vmatpush1.msra.mxu0 %v2097
    %2932 = vmatprep.subr.mxu0 0.0
    %2933 = vmatpush2.msra.mxu0 0.0
    %2934 = vmatprep.subr.mxu0 0.0
    %2935 = vmatpush2.msra.mxu0 0.0
    %2936 = vmatprep.subr.mxu0 0.0
    %2937 = vmatpush2.msra.mxu0 0.0
    %2938 = vmatprep.subr.mxu0 0.0
    %2939 = vmatpush2.msra.mxu0 0.0
    %2940 = vmatprep.subr.mxu0 0.0
    %2941 = vmatpush2.msra.mxu0 0.0
    %2942 = vmatprep.subr.mxu0 0.0
    %2943 = vmatpush2.msra.mxu0 0.0
    %2944 = vmatprep.subr.mxu0 0.0
    %2945 = vmatpush2.msra.mxu0 0.0
    %2946 = vmatprep.subr.mxu0 0.0
    %2947 = vmatpush2.msra.mxu0 0.0
    %2948 = vmatprep.subr.mxu0 0.0
    %2949 = vmatpush2.msra.mxu0 0.0
    %2950 = vmatprep.subr.mxu0 0.0
    %2951 = vmatpush2.msra.mxu0 0.0
    %2952 = vmatprep.subr.mxu0 0.0
    %2953 = vmatpush2.msra.mxu0 0.0
    %2954 = vmatprep.subr.mxu0 0.0
    %2955 = vmatpush2.msra.mxu0 0.0
    %2956 = vmatprep.subr.mxu0 0.0
    %2957 = vmatpush2.msra.mxu0 0.0
    %2958 = vmatprep.subr.mxu0 0.0
    %2959 = vmatpush2.msra.mxu0 0.0
    %2960 = vmatprep.subr.mxu0 0.0
    %2961 = vmatpush2.msra.mxu0 0.0
    %2962 = vmatprep.subr.mxu0 0.0
    %2963 = vmatpush2.msra.mxu0 0.0
    %2964 = vmatprep.mubr.f32.mxu0 0.0
    %2965 = vmatmul.mubr.f32.gmra.mxu0 %v2898
    %v2966 = vpop.f32.mrf.mxu0
    %v2967 = vadd.f32 0.0, %v2966
    %v2968 = vpop.f32.mrf.mxu0
    %2969 = vdwg.mxu0
    %s2970 = scalar_lea.vmem [#allocation2], 320
    %v2971 = vld [vmem:[%s2970] sm:$0xff]
    %v2972 = vld [vmem:[%s2970 + $0x8] sm:$0xff]
    %v2973 = vld [vmem:[%s2970 + $0x10] sm:$0xff]
    %v2974 = vld [vmem:[%s2970 + $0x18] sm:$0xff]
    %v2975 = vld [vmem:[%s2970 + $0x20] sm:$0xff]
    %v2976 = vld [vmem:[%s2970 + $0x28] sm:$0xff]
    %v2977 = vld [vmem:[%s2970 + $0x30] sm:$0xff]
    %v2978 = vld [vmem:[%s2970 + $0x38] sm:$0xff]
    %v2980 = vsel %vm980, %v2967, 0
    %2982 = vmatprep.subr.mxu0 0.0
    %2983 = vmatpush1.msra.mxu0 0.0
    %2984 = vmatprep.subr.mxu0 0.0
    %2985 = vmatpush1.msra.mxu0 0.0
    %2986 = vmatprep.subr.mxu0 0.0
    %2987 = vmatpush1.msra.mxu0 0.0
    %2988 = vmatprep.subr.mxu0 0.0
    %2989 = vmatpush1.msra.mxu0 0.0
    %2990 = vmatprep.subr.mxu0 0.0
    %2991 = vmatpush1.msra.mxu0 0.0
    %2992 = vmatprep.subr.mxu0 0.0
    %2993 = vmatpush1.msra.mxu0 0.0
    %2994 = vmatprep.subr.mxu0 0.0
    %2995 = vmatpush1.msra.mxu0 0.0
    %2996 = vmatprep.subr.mxu0 0.0
    %2997 = vmatpush1.msra.mxu0 0.0
    %2998 = vmatprep.subr.mxu0 0.0
    %2999 = vmatpush1.msra.mxu0 0.0
    %3000 = vmatprep.subr.mxu0 0.0
    %3001 = vmatpush1.msra.mxu0 0.0
    %3002 = vmatprep.subr.mxu0 0.0
    %3003 = vmatpush1.msra.mxu0 0.0
    %3004 = vmatprep.subr.mxu0 0.0
    %3005 = vmatpush1.msra.mxu0 0.0
    %3006 = vmatprep.subr.mxu0 %v2978
    %3007 = vmatpush1.msra.mxu0 %v2977
    %3008 = vmatprep.subr.mxu0 %v2976
    %3009 = vmatpush1.msra.mxu0 %v2975
    %3010 = vmatprep.subr.mxu0 %v2974
    %3011 = vmatpush1.msra.mxu0 %v2973
    %3012 = vmatprep.subr.mxu0 %v2972
    %3013 = vmatpush1.msra.mxu0 %v2971
    %3014 = vmatprep.subr.mxu0 0.0
    %3015 = vmatpush2.msra.mxu0 0.0
    %3016 = vmatprep.subr.mxu0 0.0
    %3017 = vmatpush2.msra.mxu0 0.0
    %3018 = vmatprep.subr.mxu0 0.0
    %3019 = vmatpush2.msra.mxu0 0.0
    %3020 = vmatprep.subr.mxu0 0.0
    %3021 = vmatpush2.msra.mxu0 0.0
    %3022 = vmatprep.subr.mxu0 0.0
    %3023 = vmatpush2.msra.mxu0 0.0
    %3024 = vmatprep.subr.mxu0 0.0
    %3025 = vmatpush2.msra.mxu0 0.0
    %3026 = vmatprep.subr.mxu0 0.0
    %3027 = vmatpush2.msra.mxu0 0.0
    %3028 = vmatprep.subr.mxu0 0.0
    %3029 = vmatpush2.msra.mxu0 0.0
    %3030 = vmatprep.subr.mxu0 0.0
    %3031 = vmatpush2.msra.mxu0 0.0
    %3032 = vmatprep.subr.mxu0 0.0
    %3033 = vmatpush2.msra.mxu0 0.0
    %3034 = vmatprep.subr.mxu0 0.0
    %3035 = vmatpush2.msra.mxu0 0.0
    %3036 = vmatprep.subr.mxu0 0.0
    %3037 = vmatpush2.msra.mxu0 0.0
    %3038 = vmatprep.subr.mxu0 0.0
    %3039 = vmatpush2.msra.mxu0 0.0
    %3040 = vmatprep.subr.mxu0 0.0
    %3041 = vmatpush2.msra.mxu0 0.0
    %3042 = vmatprep.subr.mxu0 0.0
    %3043 = vmatpush2.msra.mxu0 0.0
    %3044 = vmatprep.subr.mxu0 0.0
    %3045 = vmatpush2.msra.mxu0 0.0
    %3046 = vmatprep.mubr.f32.mxu0 0.0
    %3047 = vmatmul.mubr.f32.gmra.mxu0 %v2980
    %v3048 = vpop.f32.mrf.mxu0
    %v3049 = vadd.f32 0.0, %v3048
    %v3050 = vpop.f32.mrf.mxu0
    %v3051 = vadd.f32 0.0, %v3050
    %3052 = vdwg.mxu0
    %v3053 = vadd.f32 %v2893, %v3049
    %v3054 = vadd.f32 %v2894, %v3051
    %s3055 = scalar_lea.vmem %s8, 12
    %v3056 = vld [vmem:[%s3055] sm:$0x3]
    %v3058 = vsel %vm980, %v3056, 0
    %3060 = vmatprep.subr.mxu0 0.0
    %3061 = vmatpush1.msra.mxu0 0.0
    %3062 = vmatprep.subr.mxu0 0.0
    %3063 = vmatpush1.msra.mxu0 0.0
    %3064 = vmatprep.subr.mxu0 0.0
    %3065 = vmatpush1.msra.mxu0 0.0
    %3066 = vmatprep.subr.mxu0 0.0
    %3067 = vmatpush1.msra.mxu0 0.0
    %3068 = vmatprep.subr.mxu0 0.0
    %3069 = vmatpush1.msra.mxu0 0.0
    %3070 = vmatprep.subr.mxu0 0.0
    %3071 = vmatpush1.msra.mxu0 0.0
    %3072 = vmatprep.subr.mxu0 0.0
    %3073 = vmatpush1.msra.mxu0 0.0
    %3074 = vmatprep.subr.mxu0 0.0
    %3075 = vmatpush1.msra.mxu0 0.0
    %3076 = vmatprep.subr.mxu0 0.0
    %3077 = vmatpush1.msra.mxu0 0.0
    %3078 = vmatprep.subr.mxu0 0.0
    %3079 = vmatpush1.msra.mxu0 0.0
    %3080 = vmatprep.subr.mxu0 0.0
    %3081 = vmatpush1.msra.mxu0 0.0
    %3082 = vmatprep.subr.mxu0 0.0
    %3083 = vmatpush1.msra.mxu0 0.0
    %3084 = vmatprep.subr.mxu0 0.0
    %3085 = vmatpush1.msra.mxu0 %v2100
    %3086 = vmatprep.subr.mxu0 0.0
    %3087 = vmatpush1.msra.mxu0 %v2099
    %3088 = vmatprep.subr.mxu0 0.0
    %3089 = vmatpush1.msra.mxu0 %v2098
    %3090 = vmatprep.subr.mxu0 0.0
    %3091 = vmatpush1.msra.mxu0 %v2097
    %3092 = vmatprep.subr.mxu0 0.0
    %3093 = vmatpush2.msra.mxu0 0.0
    %3094 = vmatprep.subr.mxu0 0.0
    %3095 = vmatpush2.msra.mxu0 0.0
    %3096 = vmatprep.subr.mxu0 0.0
    %3097 = vmatpush2.msra.mxu0 0.0
    %3098 = vmatprep.subr.mxu0 0.0
    %3099 = vmatpush2.msra.mxu0 0.0
    %3100 = vmatprep.subr.mxu0 0.0
    %3101 = vmatpush2.msra.mxu0 0.0
    %3102 = vmatprep.subr.mxu0 0.0
    %3103 = vmatpush2.msra.mxu0 0.0
    %3104 = vmatprep.subr.mxu0 0.0
    %3105 = vmatpush2.msra.mxu0 0.0
    %3106 = vmatprep.subr.mxu0 0.0
    %3107 = vmatpush2.msra.mxu0 0.0
    %3108 = vmatprep.subr.mxu0 0.0
    %3109 = vmatpush2.msra.mxu0 0.0
    %3110 = vmatprep.subr.mxu0 0.0
    %3111 = vmatpush2.msra.mxu0 0.0
    %3112 = vmatprep.subr.mxu0 0.0
    %3113 = vmatpush2.msra.mxu0 0.0
    %3114 = vmatprep.subr.mxu0 0.0
    %3115 = vmatpush2.msra.mxu0 0.0
    %3116 = vmatprep.subr.mxu0 0.0
    %3117 = vmatpush2.msra.mxu0 0.0
    %3118 = vmatprep.subr.mxu0 0.0
    %3119 = vmatpush2.msra.mxu0 0.0
    %3120 = vmatprep.subr.mxu0 0.0
    %3121 = vmatpush2.msra.mxu0 0.0
    %3122 = vmatprep.subr.mxu0 0.0
    %3123 = vmatpush2.msra.mxu0 0.0
    %3124 = vmatprep.mubr.f32.mxu0 0.0
    %3125 = vmatmul.mubr.f32.gmra.mxu0 %v3058
    %v3126 = vpop.f32.mrf.mxu0
    %v3127 = vadd.f32 0.0, %v3126
    %v3128 = vpop.f32.mrf.mxu0
    %3129 = vdwg.mxu0
    %s3130 = scalar_lea.vmem [#allocation2], 384
    %v3131 = vld [vmem:[%s3130] sm:$0xff]
    %v3132 = vld [vmem:[%s3130 + $0x8] sm:$0xff]
    %v3133 = vld [vmem:[%s3130 + $0x10] sm:$0xff]
    %v3134 = vld [vmem:[%s3130 + $0x18] sm:$0xff]
    %v3135 = vld [vmem:[%s3130 + $0x20] sm:$0xff]
    %v3136 = vld [vmem:[%s3130 + $0x28] sm:$0xff]
    %v3137 = vld [vmem:[%s3130 + $0x30] sm:$0xff]
    %v3138 = vld [vmem:[%s3130 + $0x38] sm:$0xff]
    %v3140 = vsel %vm980, %v3127, 0
    %3142 = vmatprep.subr.mxu0 0.0
    %3143 = vmatpush1.msra.mxu0 0.0
    %3144 = vmatprep.subr.mxu0 0.0
    %3145 = vmatpush1.msra.mxu0 0.0
    %3146 = vmatprep.subr.mxu0 0.0
    %3147 = vmatpush1.msra.mxu0 0.0
    %3148 = vmatprep.subr.mxu0 0.0
    %3149 = vmatpush1.msra.mxu0 0.0
    %3150 = vmatprep.subr.mxu0 0.0
    %3151 = vmatpush1.msra.mxu0 0.0
    %3152 = vmatprep.subr.mxu0 0.0
    %3153 = vmatpush1.msra.mxu0 0.0
    %3154 = vmatprep.subr.mxu0 0.0
    %3155 = vmatpush1.msra.mxu0 0.0
    %3156 = vmatprep.subr.mxu0 0.0
    %3157 = vmatpush1.msra.mxu0 0.0
    %3158 = vmatprep.subr.mxu0 0.0
    %3159 = vmatpush1.msra.mxu0 0.0
    %3160 = vmatprep.subr.mxu0 0.0
    %3161 = vmatpush1.msra.mxu0 0.0
    %3162 = vmatprep.subr.mxu0 0.0
    %3163 = vmatpush1.msra.mxu0 0.0
    %3164 = vmatprep.subr.mxu0 0.0
    %3165 = vmatpush1.msra.mxu0 0.0
    %3166 = vmatprep.subr.mxu0 %v3138
    %3167 = vmatpush1.msra.mxu0 %v3137
    %3168 = vmatprep.subr.mxu0 %v3136
    %3169 = vmatpush1.msra.mxu0 %v3135
    %3170 = vmatprep.subr.mxu0 %v3134
    %3171 = vmatpush1.msra.mxu0 %v3133
    %3172 = vmatprep.subr.mxu0 %v3132
    %3173 = vmatpush1.msra.mxu0 %v3131
    %3174 = vmatprep.subr.mxu0 0.0
    %3175 = vmatpush2.msra.mxu0 0.0
    %3176 = vmatprep.subr.mxu0 0.0
    %3177 = vmatpush2.msra.mxu0 0.0
    %3178 = vmatprep.subr.mxu0 0.0
    %3179 = vmatpush2.msra.mxu0 0.0
    %3180 = vmatprep.subr.mxu0 0.0
    %3181 = vmatpush2.msra.mxu0 0.0
    %3182 = vmatprep.subr.mxu0 0.0
    %3183 = vmatpush2.msra.mxu0 0.0
    %3184 = vmatprep.subr.mxu0 0.0
    %3185 = vmatpush2.msra.mxu0 0.0
    %3186 = vmatprep.subr.mxu0 0.0
    %3187 = vmatpush2.msra.mxu0 0.0
    %3188 = vmatprep.subr.mxu0 0.0
    %3189 = vmatpush2.msra.mxu0 0.0
    %3190 = vmatprep.subr.mxu0 0.0
    %3191 = vmatpush2.msra.mxu0 0.0
    %3192 = vmatprep.subr.mxu0 0.0
    %3193 = vmatpush2.msra.mxu0 0.0
    %3194 = vmatprep.subr.mxu0 0.0
    %3195 = vmatpush2.msra.mxu0 0.0
    %3196 = vmatprep.subr.mxu0 0.0
    %3197 = vmatpush2.msra.mxu0 0.0
    %3198 = vmatprep.subr.mxu0 0.0
    %3199 = vmatpush2.msra.mxu0 0.0
    %3200 = vmatprep.subr.mxu0 0.0
    %3201 = vmatpush2.msra.mxu0 0.0
    %3202 = vmatprep.subr.mxu0 0.0
    %3203 = vmatpush2.msra.mxu0 0.0
    %3204 = vmatprep.subr.mxu0 0.0
    %3205 = vmatpush2.msra.mxu0 0.0
    %3206 = vmatprep.mubr.f32.mxu0 0.0
    %3207 = vmatmul.mubr.f32.gmra.mxu0 %v3140
    %v3208 = vpop.f32.mrf.mxu0
    %v3209 = vadd.f32 0.0, %v3208
    %v3210 = vpop.f32.mrf.mxu0
    %v3211 = vadd.f32 0.0, %v3210
    %3212 = vdwg.mxu0
    %v3213 = vadd.f32 %v3053, %v3209
    %v3214 = vadd.f32 %v3054, %v3211
    %s3215 = scalar_lea.vmem %s8, 14
    %v3216 = vld [vmem:[%s3215] sm:$0x3]
    %v3218 = vsel %vm980, %v3216, 0
    %3220 = vmatprep.subr.mxu0 0.0
    %3221 = vmatpush1.msra.mxu0 0.0
    %3222 = vmatprep.subr.mxu0 0.0
    %3223 = vmatpush1.msra.mxu0 0.0
    %3224 = vmatprep.subr.mxu0 0.0
    %3225 = vmatpush1.msra.mxu0 0.0
    %3226 = vmatprep.subr.mxu0 0.0
    %3227 = vmatpush1.msra.mxu0 0.0
    %3228 = vmatprep.subr.mxu0 0.0
    %3229 = vmatpush1.msra.mxu0 0.0
    %3230 = vmatprep.subr.mxu0 0.0
    %3231 = vmatpush1.msra.mxu0 0.0
    %3232 = vmatprep.subr.mxu0 0.0
    %3233 = vmatpush1.msra.mxu0 0.0
    %3234 = vmatprep.subr.mxu0 0.0
    %3235 = vmatpush1.msra.mxu0 0.0
    %3236 = vmatprep.subr.mxu0 0.0
    %3237 = vmatpush1.msra.mxu0 0.0
    %3238 = vmatprep.subr.mxu0 0.0
    %3239 = vmatpush1.msra.mxu0 0.0
    %3240 = vmatprep.subr.mxu0 0.0
    %3241 = vmatpush1.msra.mxu0 0.0
    %3242 = vmatprep.subr.mxu0 0.0
    %3243 = vmatpush1.msra.mxu0 0.0
    %3244 = vmatprep.subr.mxu0 0.0
    %3245 = vmatpush1.msra.mxu0 %v2100
    %3246 = vmatprep.subr.mxu0 0.0
    %3247 = vmatpush1.msra.mxu0 %v2099
    %3248 = vmatprep.subr.mxu0 0.0
    %3249 = vmatpush1.msra.mxu0 %v2098
    %3250 = vmatprep.subr.mxu0 0.0
    %3251 = vmatpush1.msra.mxu0 %v2097
    %3252 = vmatprep.subr.mxu0 0.0
    %3253 = vmatpush2.msra.mxu0 0.0
    %3254 = vmatprep.subr.mxu0 0.0
    %3255 = vmatpush2.msra.mxu0 0.0
    %3256 = vmatprep.subr.mxu0 0.0
    %3257 = vmatpush2.msra.mxu0 0.0
    %3258 = vmatprep.subr.mxu0 0.0
    %3259 = vmatpush2.msra.mxu0 0.0
    %3260 = vmatprep.subr.mxu0 0.0
    %3261 = vmatpush2.msra.mxu0 0.0
    %3262 = vmatprep.subr.mxu0 0.0
    %3263 = vmatpush2.msra.mxu0 0.0
    %3264 = vmatprep.subr.mxu0 0.0
    %3265 = vmatpush2.msra.mxu0 0.0
    %3266 = vmatprep.subr.mxu0 0.0
    %3267 = vmatpush2.msra.mxu0 0.0
    %3268 = vmatprep.subr.mxu0 0.0
    %3269 = vmatpush2.msra.mxu0 0.0
    %3270 = vmatprep.subr.mxu0 0.0
    %3271 = vmatpush2.msra.mxu0 0.0
    %3272 = vmatprep.subr.mxu0 0.0
    %3273 = vmatpush2.msra.mxu0 0.0
    %3274 = vmatprep.subr.mxu0 0.0
    %3275 = vmatpush2.msra.mxu0 0.0
    %3276 = vmatprep.subr.mxu0 0.0
    %3277 = vmatpush2.msra.mxu0 0.0
    %3278 = vmatprep.subr.mxu0 0.0
    %3279 = vmatpush2.msra.mxu0 0.0
    %3280 = vmatprep.subr.mxu0 0.0
    %3281 = vmatpush2.msra.mxu0 0.0
    %3282 = vmatprep.subr.mxu0 0.0
    %3283 = vmatpush2.msra.mxu0 0.0
    %3284 = vmatprep.mubr.f32.mxu0 0.0
    %3285 = vmatmul.mubr.f32.gmra.mxu0 %v3218
    %v3286 = vpop.f32.mrf.mxu0
    %v3287 = vadd.f32 0.0, %v3286
    %v3288 = vpop.f32.mrf.mxu0
    %3289 = vdwg.mxu0
    %s3290 = scalar_lea.vmem [#allocation2], 448
    %v3291 = vld [vmem:[%s3290] sm:$0xff]
    %v3292 = vld [vmem:[%s3290 + $0x8] sm:$0xff]
    %v3293 = vld [vmem:[%s3290 + $0x10] sm:$0xff]
    %v3294 = vld [vmem:[%s3290 + $0x18] sm:$0xff]
    %v3295 = vld [vmem:[%s3290 + $0x20] sm:$0xff]
    %v3296 = vld [vmem:[%s3290 + $0x28] sm:$0xff]
    %v3297 = vld [vmem:[%s3290 + $0x30] sm:$0xff]
    %v3298 = vld [vmem:[%s3290 + $0x38] sm:$0xff]
    %v3300 = vsel %vm980, %v3287, 0
    %3302 = vmatprep.subr.mxu0 0.0
    %3303 = vmatpush1.msra.mxu0 0.0
    %3304 = vmatprep.subr.mxu0 0.0
    %3305 = vmatpush1.msra.mxu0 0.0
    %3306 = vmatprep.subr.mxu0 0.0
    %3307 = vmatpush1.msra.mxu0 0.0
    %3308 = vmatprep.subr.mxu0 0.0
    %3309 = vmatpush1.msra.mxu0 0.0
    %3310 = vmatprep.subr.mxu0 0.0
    %3311 = vmatpush1.msra.mxu0 0.0
    %3312 = vmatprep.subr.mxu0 0.0
    %3313 = vmatpush1.msra.mxu0 0.0
    %3314 = vmatprep.subr.mxu0 0.0
    %3315 = vmatpush1.msra.mxu0 0.0
    %3316 = vmatprep.subr.mxu0 0.0
    %3317 = vmatpush1.msra.mxu0 0.0
    %3318 = vmatprep.subr.mxu0 0.0
    %3319 = vmatpush1.msra.mxu0 0.0
    %3320 = vmatprep.subr.mxu0 0.0
    %3321 = vmatpush1.msra.mxu0 0.0
    %3322 = vmatprep.subr.mxu0 0.0
    %3323 = vmatpush1.msra.mxu0 0.0
    %3324 = vmatprep.subr.mxu0 0.0
    %3325 = vmatpush1.msra.mxu0 0.0
    %3326 = vmatprep.subr.mxu0 %v3298
    %3327 = vmatpush1.msra.mxu0 %v3297
    %3328 = vmatprep.subr.mxu0 %v3296
    %3329 = vmatpush1.msra.mxu0 %v3295
    %3330 = vmatprep.subr.mxu0 %v3294
    %3331 = vmatpush1.msra.mxu0 %v3293
    %3332 = vmatprep.subr.mxu0 %v3292
    %3333 = vmatpush1.msra.mxu0 %v3291
    %3334 = vmatprep.subr.mxu0 0.0
    %3335 = vmatpush2.msra.mxu0 0.0
    %3336 = vmatprep.subr.mxu0 0.0
    %3337 = vmatpush2.msra.mxu0 0.0
    %3338 = vmatprep.subr.mxu0 0.0
    %3339 = vmatpush2.msra.mxu0 0.0
    %3340 = vmatprep.subr.mxu0 0.0
    %3341 = vmatpush2.msra.mxu0 0.0
    %3342 = vmatprep.subr.mxu0 0.0
    %3343 = vmatpush2.msra.mxu0 0.0
    %3344 = vmatprep.subr.mxu0 0.0
    %3345 = vmatpush2.msra.mxu0 0.0
    %3346 = vmatprep.subr.mxu0 0.0
    %3347 = vmatpush2.msra.mxu0 0.0
    %3348 = vmatprep.subr.mxu0 0.0
    %3349 = vmatpush2.msra.mxu0 0.0
    %3350 = vmatprep.subr.mxu0 0.0
    %3351 = vmatpush2.msra.mxu0 0.0
    %3352 = vmatprep.subr.mxu0 0.0
    %3353 = vmatpush2.msra.mxu0 0.0
    %3354 = vmatprep.subr.mxu0 0.0
    %3355 = vmatpush2.msra.mxu0 0.0
    %3356 = vmatprep.subr.mxu0 0.0
    %3357 = vmatpush2.msra.mxu0 0.0
    %3358 = vmatprep.subr.mxu0 0.0
    %3359 = vmatpush2.msra.mxu0 0.0
    %3360 = vmatprep.subr.mxu0 0.0
    %3361 = vmatpush2.msra.mxu0 0.0
    %3362 = vmatprep.subr.mxu0 0.0
    %3363 = vmatpush2.msra.mxu0 0.0
    %3364 = vmatprep.subr.mxu0 0.0
    %3365 = vmatpush2.msra.mxu0 0.0
    %3366 = vmatprep.mubr.f32.mxu0 0.0
    %3367 = vmatmul.mubr.f32.gmra.mxu0 %v3300
    %v3368 = vpop.f32.mrf.mxu0
    %v3369 = vadd.f32 0.0, %v3368
    %v3370 = vpop.f32.mrf.mxu0
    %v3371 = vadd.f32 0.0, %v3370
    %3372 = vdwg.mxu0
    %v3373 = vadd.f32 %v3213, %v3369
    %v3374 = vadd.f32 %v3214, %v3371
    %s3375 = scalar_lea.vmem %s8, 16
    %v3376 = vld [vmem:[%s3375] sm:$0x3]
    %v3378 = vsel %vm980, %v3376, 0
    %3380 = vmatprep.subr.mxu0 0.0
    %3381 = vmatpush1.msra.mxu0 0.0
    %3382 = vmatprep.subr.mxu0 0.0
    %3383 = vmatpush1.msra.mxu0 0.0
    %3384 = vmatprep.subr.mxu0 0.0
    %3385 = vmatpush1.msra.mxu0 0.0
    %3386 = vmatprep.subr.mxu0 0.0
    %3387 = vmatpush1.msra.mxu0 0.0
    %3388 = vmatprep.subr.mxu0 0.0
    %3389 = vmatpush1.msra.mxu0 0.0
    %3390 = vmatprep.subr.mxu0 0.0
    %3391 = vmatpush1.msra.mxu0 0.0
    %3392 = vmatprep.subr.mxu0 0.0
    %3393 = vmatpush1.msra.mxu0 0.0
    %3394 = vmatprep.subr.mxu0 0.0
    %3395 = vmatpush1.msra.mxu0 0.0
    %3396 = vmatprep.subr.mxu0 0.0
    %3397 = vmatpush1.msra.mxu0 0.0
    %3398 = vmatprep.subr.mxu0 0.0
    %3399 = vmatpush1.msra.mxu0 0.0
    %3400 = vmatprep.subr.mxu0 0.0
    %3401 = vmatpush1.msra.mxu0 0.0
    %3402 = vmatprep.subr.mxu0 0.0
    %3403 = vmatpush1.msra.mxu0 0.0
    %3404 = vmatprep.subr.mxu0 0.0
    %3405 = vmatpush1.msra.mxu0 %v2100
    %3406 = vmatprep.subr.mxu0 0.0
    %3407 = vmatpush1.msra.mxu0 %v2099
    %3408 = vmatprep.subr.mxu0 0.0
    %3409 = vmatpush1.msra.mxu0 %v2098
    %3410 = vmatprep.subr.mxu0 0.0
    %3411 = vmatpush1.msra.mxu0 %v2097
    %3412 = vmatprep.subr.mxu0 0.0
    %3413 = vmatpush2.msra.mxu0 0.0
    %3414 = vmatprep.subr.mxu0 0.0
    %3415 = vmatpush2.msra.mxu0 0.0
    %3416 = vmatprep.subr.mxu0 0.0
    %3417 = vmatpush2.msra.mxu0 0.0
    %3418 = vmatprep.subr.mxu0 0.0
    %3419 = vmatpush2.msra.mxu0 0.0
    %3420 = vmatprep.subr.mxu0 0.0
    %3421 = vmatpush2.msra.mxu0 0.0
    %3422 = vmatprep.subr.mxu0 0.0
    %3423 = vmatpush2.msra.mxu0 0.0
    %3424 = vmatprep.subr.mxu0 0.0
    %3425 = vmatpush2.msra.mxu0 0.0
    %3426 = vmatprep.subr.mxu0 0.0
    %3427 = vmatpush2.msra.mxu0 0.0
    %3428 = vmatprep.subr.mxu0 0.0
    %3429 = vmatpush2.msra.mxu0 0.0
    %3430 = vmatprep.subr.mxu0 0.0
    %3431 = vmatpush2.msra.mxu0 0.0
    %3432 = vmatprep.subr.mxu0 0.0
    %3433 = vmatpush2.msra.mxu0 0.0
    %3434 = vmatprep.subr.mxu0 0.0
    %3435 = vmatpush2.msra.mxu0 0.0
    %3436 = vmatprep.subr.mxu0 0.0
    %3437 = vmatpush2.msra.mxu0 0.0
    %3438 = vmatprep.subr.mxu0 0.0
    %3439 = vmatpush2.msra.mxu0 0.0
    %3440 = vmatprep.subr.mxu0 0.0
    %3441 = vmatpush2.msra.mxu0 0.0
    %3442 = vmatprep.subr.mxu0 0.0
    %3443 = vmatpush2.msra.mxu0 0.0
    %3444 = vmatprep.mubr.f32.mxu0 0.0
    %3445 = vmatmul.mubr.f32.gmra.mxu0 %v3378
    %v3446 = vpop.f32.mrf.mxu0
    %v3447 = vadd.f32 0.0, %v3446
    %v3448 = vpop.f32.mrf.mxu0
    %3449 = vdwg.mxu0
    %s3450 = scalar_lea.vmem [#allocation2], 512
    %v3451 = vld [vmem:[%s3450] sm:$0xff]
    %v3452 = vld [vmem:[%s3450 + $0x8] sm:$0xff]
    %v3453 = vld [vmem:[%s3450 + $0x10] sm:$0xff]
    %v3454 = vld [vmem:[%s3450 + $0x18] sm:$0xff]
    %v3455 = vld [vmem:[%s3450 + $0x20] sm:$0xff]
    %v3456 = vld [vmem:[%s3450 + $0x28] sm:$0xff]
    %v3457 = vld [vmem:[%s3450 + $0x30] sm:$0xff]
    %v3458 = vld [vmem:[%s3450 + $0x38] sm:$0xff]
    %v3460 = vsel %vm980, %v3447, 0
    %3462 = vmatprep.subr.mxu0 0.0
    %3463 = vmatpush1.msra.mxu0 0.0
    %3464 = vmatprep.subr.mxu0 0.0
    %3465 = vmatpush1.msra.mxu0 0.0
    %3466 = vmatprep.subr.mxu0 0.0
    %3467 = vmatpush1.msra.mxu0 0.0
    %3468 = vmatprep.subr.mxu0 0.0
    %3469 = vmatpush1.msra.mxu0 0.0
    %3470 = vmatprep.subr.mxu0 0.0
    %3471 = vmatpush1.msra.mxu0 0.0
    %3472 = vmatprep.subr.mxu0 0.0
    %3473 = vmatpush1.msra.mxu0 0.0
    %3474 = vmatprep.subr.mxu0 0.0
    %3475 = vmatpush1.msra.mxu0 0.0
    %3476 = vmatprep.subr.mxu0 0.0
    %3477 = vmatpush1.msra.mxu0 0.0
    %3478 = vmatprep.subr.mxu0 0.0
    %3479 = vmatpush1.msra.mxu0 0.0
    %3480 = vmatprep.subr.mxu0 0.0
    %3481 = vmatpush1.msra.mxu0 0.0
    %3482 = vmatprep.subr.mxu0 0.0
    %3483 = vmatpush1.msra.mxu0 0.0
    %3484 = vmatprep.subr.mxu0 0.0
    %3485 = vmatpush1.msra.mxu0 0.0
    %3486 = vmatprep.subr.mxu0 %v3458
    %3487 = vmatpush1.msra.mxu0 %v3457
    %3488 = vmatprep.subr.mxu0 %v3456
    %3489 = vmatpush1.msra.mxu0 %v3455
    %3490 = vmatprep.subr.mxu0 %v3454
    %3491 = vmatpush1.msra.mxu0 %v3453
    %3492 = vmatprep.subr.mxu0 %v3452
    %3493 = vmatpush1.msra.mxu0 %v3451
    %3494 = vmatprep.subr.mxu0 0.0
    %3495 = vmatpush2.msra.mxu0 0.0
    %3496 = vmatprep.subr.mxu0 0.0
    %3497 = vmatpush2.msra.mxu0 0.0
    %3498 = vmatprep.subr.mxu0 0.0
    %3499 = vmatpush2.msra.mxu0 0.0
    %3500 = vmatprep.subr.mxu0 0.0
    %3501 = vmatpush2.msra.mxu0 0.0
    %3502 = vmatprep.subr.mxu0 0.0
    %3503 = vmatpush2.msra.mxu0 0.0
    %3504 = vmatprep.subr.mxu0 0.0
    %3505 = vmatpush2.msra.mxu0 0.0
    %3506 = vmatprep.subr.mxu0 0.0
    %3507 = vmatpush2.msra.mxu0 0.0
    %3508 = vmatprep.subr.mxu0 0.0
    %3509 = vmatpush2.msra.mxu0 0.0
    %3510 = vmatprep.subr.mxu0 0.0
    %3511 = vmatpush2.msra.mxu0 0.0
    %3512 = vmatprep.subr.mxu0 0.0
    %3513 = vmatpush2.msra.mxu0 0.0
    %3514 = vmatprep.subr.mxu0 0.0
    %3515 = vmatpush2.msra.mxu0 0.0
    %3516 = vmatprep.subr.mxu0 0.0
    %3517 = vmatpush2.msra.mxu0 0.0
    %3518 = vmatprep.subr.mxu0 0.0
    %3519 = vmatpush2.msra.mxu0 0.0
    %3520 = vmatprep.subr.mxu0 0.0
    %3521 = vmatpush2.msra.mxu0 0.0
    %3522 = vmatprep.subr.mxu0 0.0
    %3523 = vmatpush2.msra.mxu0 0.0
    %3524 = vmatprep.subr.mxu0 0.0
    %3525 = vmatpush2.msra.mxu0 0.0
    %3526 = vmatprep.mubr.f32.mxu0 0.0
    %3527 = vmatmul.mubr.f32.gmra.mxu0 %v3460
    %v3528 = vpop.f32.mrf.mxu0
    %v3529 = vadd.f32 0.0, %v3528
    %v3530 = vpop.f32.mrf.mxu0
    %v3531 = vadd.f32 0.0, %v3530
    %3532 = vdwg.mxu0
    %v3533 = vadd.f32 %v3373, %v3529
    %v3534 = vadd.f32 %v3374, %v3531
    %s3535 = scalar_lea.vmem %s8, 18
    %v3536 = vld [vmem:[%s3535] sm:$0x3]
    %v3538 = vsel %vm980, %v3536, 0
    %3540 = vmatprep.subr.mxu0 0.0
    %3541 = vmatpush1.msra.mxu0 0.0
    %3542 = vmatprep.subr.mxu0 0.0
    %3543 = vmatpush1.msra.mxu0 0.0
    %3544 = vmatprep.subr.mxu0 0.0
    %3545 = vmatpush1.msra.mxu0 0.0
    %3546 = vmatprep.subr.mxu0 0.0
    %3547 = vmatpush1.msra.mxu0 0.0
    %3548 = vmatprep.subr.mxu0 0.0
    %3549 = vmatpush1.msra.mxu0 0.0
    %3550 = vmatprep.subr.mxu0 0.0
    %3551 = vmatpush1.msra.mxu0 0.0
    %3552 = vmatprep.subr.mxu0 0.0
    %3553 = vmatpush1.msra.mxu0 0.0
    %3554 = vmatprep.subr.mxu0 0.0
    %3555 = vmatpush1.msra.mxu0 0.0
    %3556 = vmatprep.subr.mxu0 0.0
    %3557 = vmatpush1.msra.mxu0 0.0
    %3558 = vmatprep.subr.mxu0 0.0
    %3559 = vmatpush1.msra.mxu0 0.0
    %3560 = vmatprep.subr.mxu0 0.0
    %3561 = vmatpush1.msra.mxu0 0.0
    %3562 = vmatprep.subr.mxu0 0.0
    %3563 = vmatpush1.msra.mxu0 0.0
    %3564 = vmatprep.subr.mxu0 0.0
    %3565 = vmatpush1.msra.mxu0 %v2100
    %3566 = vmatprep.subr.mxu0 0.0
    %3567 = vmatpush1.msra.mxu0 %v2099
    %3568 = vmatprep.subr.mxu0 0.0
    %3569 = vmatpush1.msra.mxu0 %v2098
    %3570 = vmatprep.subr.mxu0 0.0
    %3571 = vmatpush1.msra.mxu0 %v2097
    %3572 = vmatprep.subr.mxu0 0.0
    %3573 = vmatpush2.msra.mxu0 0.0
    %3574 = vmatprep.subr.mxu0 0.0
    %3575 = vmatpush2.msra.mxu0 0.0
    %3576 = vmatprep.subr.mxu0 0.0
    %3577 = vmatpush2.msra.mxu0 0.0
    %3578 = vmatprep.subr.mxu0 0.0
    %3579 = vmatpush2.msra.mxu0 0.0
    %3580 = vmatprep.subr.mxu0 0.0
    %3581 = vmatpush2.msra.mxu0 0.0
    %3582 = vmatprep.subr.mxu0 0.0
    %3583 = vmatpush2.msra.mxu0 0.0
    %3584 = vmatprep.subr.mxu0 0.0
    %3585 = vmatpush2.msra.mxu0 0.0
    %3586 = vmatprep.subr.mxu0 0.0
    %3587 = vmatpush2.msra.mxu0 0.0
    %3588 = vmatprep.subr.mxu0 0.0
    %3589 = vmatpush2.msra.mxu0 0.0
    %3590 = vmatprep.subr.mxu0 0.0
    %3591 = vmatpush2.msra.mxu0 0.0
    %3592 = vmatprep.subr.mxu0 0.0
    %3593 = vmatpush2.msra.mxu0 0.0
    %3594 = vmatprep.subr.mxu0 0.0
    %3595 = vmatpush2.msra.mxu0 0.0
    %3596 = vmatprep.subr.mxu0 0.0
    %3597 = vmatpush2.msra.mxu0 0.0
    %3598 = vmatprep.subr.mxu0 0.0
    %3599 = vmatpush2.msra.mxu0 0.0
    %3600 = vmatprep.subr.mxu0 0.0
    %3601 = vmatpush2.msra.mxu0 0.0
    %3602 = vmatprep.subr.mxu0 0.0
    %3603 = vmatpush2.msra.mxu0 0.0
    %3604 = vmatprep.mubr.f32.mxu0 0.0
    %3605 = vmatmul.mubr.f32.gmra.mxu0 %v3538
    %v3606 = vpop.f32.mrf.mxu0
    %v3607 = vadd.f32 0.0, %v3606
    %v3608 = vpop.f32.mrf.mxu0
    %3609 = vdwg.mxu0
    %s3610 = scalar_lea.vmem [#allocation2], 576
    %v3611 = vld [vmem:[%s3610] sm:$0xff]
    %v3612 = vld [vmem:[%s3610 + $0x8] sm:$0xff]
    %v3613 = vld [vmem:[%s3610 + $0x10] sm:$0xff]
    %v3614 = vld [vmem:[%s3610 + $0x18] sm:$0xff]
    %v3615 = vld [vmem:[%s3610 + $0x20] sm:$0xff]
    %v3616 = vld [vmem:[%s3610 + $0x28] sm:$0xff]
    %v3617 = vld [vmem:[%s3610 + $0x30] sm:$0xff]
    %v3618 = vld [vmem:[%s3610 + $0x38] sm:$0xff]
    %v3620 = vsel %vm980, %v3607, 0
    %3622 = vmatprep.subr.mxu0 0.0
    %3623 = vmatpush1.msra.mxu0 0.0
    %3624 = vmatprep.subr.mxu0 0.0
    %3625 = vmatpush1.msra.mxu0 0.0
    %3626 = vmatprep.subr.mxu0 0.0
    %3627 = vmatpush1.msra.mxu0 0.0
    %3628 = vmatprep.subr.mxu0 0.0
    %3629 = vmatpush1.msra.mxu0 0.0
    %3630 = vmatprep.subr.mxu0 0.0
    %3631 = vmatpush1.msra.mxu0 0.0
    %3632 = vmatprep.subr.mxu0 0.0
    %3633 = vmatpush1.msra.mxu0 0.0
    %3634 = vmatprep.subr.mxu0 0.0
    %3635 = vmatpush1.msra.mxu0 0.0
    %3636 = vmatprep.subr.mxu0 0.0
    %3637 = vmatpush1.msra.mxu0 0.0
    %3638 = vmatprep.subr.mxu0 0.0
    %3639 = vmatpush1.msra.mxu0 0.0
    %3640 = vmatprep.subr.mxu0 0.0
    %3641 = vmatpush1.msra.mxu0 0.0
    %3642 = vmatprep.subr.mxu0 0.0
    %3643 = vmatpush1.msra.mxu0 0.0
    %3644 = vmatprep.subr.mxu0 0.0
    %3645 = vmatpush1.msra.mxu0 0.0
    %3646 = vmatprep.subr.mxu0 %v3618
    %3647 = vmatpush1.msra.mxu0 %v3617
    %3648 = vmatprep.subr.mxu0 %v3616
    %3649 = vmatpush1.msra.mxu0 %v3615
    %3650 = vmatprep.subr.mxu0 %v3614
    %3651 = vmatpush1.msra.mxu0 %v3613
    %3652 = vmatprep.subr.mxu0 %v3612
    %3653 = vmatpush1.msra.mxu0 %v3611
    %3654 = vmatprep.subr.mxu0 0.0
    %3655 = vmatpush2.msra.mxu0 0.0
    %3656 = vmatprep.subr.mxu0 0.0
    %3657 = vmatpush2.msra.mxu0 0.0
    %3658 = vmatprep.subr.mxu0 0.0
    %3659 = vmatpush2.msra.mxu0 0.0
    %3660 = vmatprep.subr.mxu0 0.0
    %3661 = vmatpush2.msra.mxu0 0.0
    %3662 = vmatprep.subr.mxu0 0.0
    %3663 = vmatpush2.msra.mxu0 0.0
    %3664 = vmatprep.subr.mxu0 0.0
    %3665 = vmatpush2.msra.mxu0 0.0
    %3666 = vmatprep.subr.mxu0 0.0
    %3667 = vmatpush2.msra.mxu0 0.0
    %3668 = vmatprep.subr.mxu0 0.0
    %3669 = vmatpush2.msra.mxu0 0.0
    %3670 = vmatprep.subr.mxu0 0.0
    %3671 = vmatpush2.msra.mxu0 0.0
    %3672 = vmatprep.subr.mxu0 0.0
    %3673 = vmatpush2.msra.mxu0 0.0
    %3674 = vmatprep.subr.mxu0 0.0
    %3675 = vmatpush2.msra.mxu0 0.0
    %3676 = vmatprep.subr.mxu0 0.0
    %3677 = vmatpush2.msra.mxu0 0.0
    %3678 = vmatprep.subr.mxu0 0.0
    %3679 = vmatpush2.msra.mxu0 0.0
    %3680 = vmatprep.subr.mxu0 0.0
    %3681 = vmatpush2.msra.mxu0 0.0
    %3682 = vmatprep.subr.mxu0 0.0
    %3683 = vmatpush2.msra.mxu0 0.0
    %3684 = vmatprep.subr.mxu0 0.0
    %3685 = vmatpush2.msra.mxu0 0.0
    %3686 = vmatprep.mubr.f32.mxu0 0.0
    %3687 = vmatmul.mubr.f32.gmra.mxu0 %v3620
    %v3688 = vpop.f32.mrf.mxu0
    %v3689 = vadd.f32 0.0, %v3688
    %v3690 = vpop.f32.mrf.mxu0
    %v3691 = vadd.f32 0.0, %v3690
    %3692 = vdwg.mxu0
    %v3693 = vadd.f32 %v3533, %v3689
    %v3694 = vadd.f32 %v3534, %v3691
    %s3695 = scalar_lea.vmem %s8, 20
    %v3696 = vld [vmem:[%s3695] sm:$0x3]
    %v3698 = vsel %vm980, %v3696, 0
    %3700 = vmatprep.subr.mxu0 0.0
    %3701 = vmatpush1.msra.mxu0 0.0
    %3702 = vmatprep.subr.mxu0 0.0
    %3703 = vmatpush1.msra.mxu0 0.0
    %3704 = vmatprep.subr.mxu0 0.0
    %3705 = vmatpush1.msra.mxu0 0.0
    %3706 = vmatprep.subr.mxu0 0.0
    %3707 = vmatpush1.msra.mxu0 0.0
    %3708 = vmatprep.subr.mxu0 0.0
    %3709 = vmatpush1.msra.mxu0 0.0
    %3710 = vmatprep.subr.mxu0 0.0
    %3711 = vmatpush1.msra.mxu0 0.0
    %3712 = vmatprep.subr.mxu0 0.0
    %3713 = vmatpush1.msra.mxu0 0.0
    %3714 = vmatprep.subr.mxu0 0.0
    %3715 = vmatpush1.msra.mxu0 0.0
    %3716 = vmatprep.subr.mxu0 0.0
    %3717 = vmatpush1.msra.mxu0 0.0
    %3718 = vmatprep.subr.mxu0 0.0
    %3719 = vmatpush1.msra.mxu0 0.0
    %3720 = vmatprep.subr.mxu0 0.0
    %3721 = vmatpush1.msra.mxu0 0.0
    %3722 = vmatprep.subr.mxu0 0.0
    %3723 = vmatpush1.msra.mxu0 0.0
    %3724 = vmatprep.subr.mxu0 0.0
    %3725 = vmatpush1.msra.mxu0 %v2100
    %3726 = vmatprep.subr.mxu0 0.0
    %3727 = vmatpush1.msra.mxu0 %v2099
    %3728 = vmatprep.subr.mxu0 0.0
    %3729 = vmatpush1.msra.mxu0 %v2098
    %3730 = vmatprep.subr.mxu0 0.0
    %3731 = vmatpush1.msra.mxu0 %v2097
    %3732 = vmatprep.subr.mxu0 0.0
    %3733 = vmatpush2.msra.mxu0 0.0
    %3734 = vmatprep.subr.mxu0 0.0
    %3735 = vmatpush2.msra.mxu0 0.0
    %3736 = vmatprep.subr.mxu0 0.0
    %3737 = vmatpush2.msra.mxu0 0.0
    %3738 = vmatprep.subr.mxu0 0.0
    %3739 = vmatpush2.msra.mxu0 0.0
    %3740 = vmatprep.subr.mxu0 0.0
    %3741 = vmatpush2.msra.mxu0 0.0
    %3742 = vmatprep.subr.mxu0 0.0
    %3743 = vmatpush2.msra.mxu0 0.0
    %3744 = vmatprep.subr.mxu0 0.0
    %3745 = vmatpush2.msra.mxu0 0.0
    %3746 = vmatprep.subr.mxu0 0.0
    %3747 = vmatpush2.msra.mxu0 0.0
    %3748 = vmatprep.subr.mxu0 0.0
    %3749 = vmatpush2.msra.mxu0 0.0
    %3750 = vmatprep.subr.mxu0 0.0
    %3751 = vmatpush2.msra.mxu0 0.0
    %3752 = vmatprep.subr.mxu0 0.0
    %3753 = vmatpush2.msra.mxu0 0.0
    %3754 = vmatprep.subr.mxu0 0.0
    %3755 = vmatpush2.msra.mxu0 0.0
    %3756 = vmatprep.subr.mxu0 0.0
    %3757 = vmatpush2.msra.mxu0 0.0
    %3758 = vmatprep.subr.mxu0 0.0
    %3759 = vmatpush2.msra.mxu0 0.0
    %3760 = vmatprep.subr.mxu0 0.0
    %3761 = vmatpush2.msra.mxu0 0.0
    %3762 = vmatprep.subr.mxu0 0.0
    %3763 = vmatpush2.msra.mxu0 0.0
    %3764 = vmatprep.mubr.f32.mxu0 0.0
    %3765 = vmatmul.mubr.f32.gmra.mxu0 %v3698
    %v3766 = vpop.f32.mrf.mxu0
    %v3767 = vadd.f32 0.0, %v3766
    %v3768 = vpop.f32.mrf.mxu0
    %3769 = vdwg.mxu0
    %s3770 = scalar_lea.vmem [#allocation2], 640
    %v3771 = vld [vmem:[%s3770] sm:$0xff]
    %v3772 = vld [vmem:[%s3770 + $0x8] sm:$0xff]
    %v3773 = vld [vmem:[%s3770 + $0x10] sm:$0xff]
    %v3774 = vld [vmem:[%s3770 + $0x18] sm:$0xff]
    %v3775 = vld [vmem:[%s3770 + $0x20] sm:$0xff]
    %v3776 = vld [vmem:[%s3770 + $0x28] sm:$0xff]
    %v3777 = vld [vmem:[%s3770 + $0x30] sm:$0xff]
    %v3778 = vld [vmem:[%s3770 + $0x38] sm:$0xff]
    %v3780 = vsel %vm980, %v3767, 0
    %3782 = vmatprep.subr.mxu0 0.0
    %3783 = vmatpush1.msra.mxu0 0.0
    %3784 = vmatprep.subr.mxu0 0.0
    %3785 = vmatpush1.msra.mxu0 0.0
    %3786 = vmatprep.subr.mxu0 0.0
    %3787 = vmatpush1.msra.mxu0 0.0
    %3788 = vmatprep.subr.mxu0 0.0
    %3789 = vmatpush1.msra.mxu0 0.0
    %3790 = vmatprep.subr.mxu0 0.0
    %3791 = vmatpush1.msra.mxu0 0.0
    %3792 = vmatprep.subr.mxu0 0.0
    %3793 = vmatpush1.msra.mxu0 0.0
    %3794 = vmatprep.subr.mxu0 0.0
    %3795 = vmatpush1.msra.mxu0 0.0
    %3796 = vmatprep.subr.mxu0 0.0
    %3797 = vmatpush1.msra.mxu0 0.0
    %3798 = vmatprep.subr.mxu0 0.0
    %3799 = vmatpush1.msra.mxu0 0.0
    %3800 = vmatprep.subr.mxu0 0.0
    %3801 = vmatpush1.msra.mxu0 0.0
    %3802 = vmatprep.subr.mxu0 0.0
    %3803 = vmatpush1.msra.mxu0 0.0
    %3804 = vmatprep.subr.mxu0 0.0
    %3805 = vmatpush1.msra.mxu0 0.0
    %3806 = vmatprep.subr.mxu0 %v3778
    %3807 = vmatpush1.msra.mxu0 %v3777
    %3808 = vmatprep.subr.mxu0 %v3776
    %3809 = vmatpush1.msra.mxu0 %v3775
    %3810 = vmatprep.subr.mxu0 %v3774
    %3811 = vmatpush1.msra.mxu0 %v3773
    %3812 = vmatprep.subr.mxu0 %v3772
    %3813 = vmatpush1.msra.mxu0 %v3771
    %3814 = vmatprep.subr.mxu0 0.0
    %3815 = vmatpush2.msra.mxu0 0.0
    %3816 = vmatprep.subr.mxu0 0.0
    %3817 = vmatpush2.msra.mxu0 0.0
    %3818 = vmatprep.subr.mxu0 0.0
    %3819 = vmatpush2.msra.mxu0 0.0
    %3820 = vmatprep.subr.mxu0 0.0
    %3821 = vmatpush2.msra.mxu0 0.0
    %3822 = vmatprep.subr.mxu0 0.0
    %3823 = vmatpush2.msra.mxu0 0.0
    %3824 = vmatprep.subr.mxu0 0.0
    %3825 = vmatpush2.msra.mxu0 0.0
    %3826 = vmatprep.subr.mxu0 0.0
    %3827 = vmatpush2.msra.mxu0 0.0
    %3828 = vmatprep.subr.mxu0 0.0
    %3829 = vmatpush2.msra.mxu0 0.0
    %3830 = vmatprep.subr.mxu0 0.0
    %3831 = vmatpush2.msra.mxu0 0.0
    %3832 = vmatprep.subr.mxu0 0.0
    %3833 = vmatpush2.msra.mxu0 0.0
    %3834 = vmatprep.subr.mxu0 0.0
    %3835 = vmatpush2.msra.mxu0 0.0
    %3836 = vmatprep.subr.mxu0 0.0
    %3837 = vmatpush2.msra.mxu0 0.0
    %3838 = vmatprep.subr.mxu0 0.0
    %3839 = vmatpush2.msra.mxu0 0.0
    %3840 = vmatprep.subr.mxu0 0.0
    %3841 = vmatpush2.msra.mxu0 0.0
    %3842 = vmatprep.subr.mxu0 0.0
    %3843 = vmatpush2.msra.mxu0 0.0
    %3844 = vmatprep.subr.mxu0 0.0
    %3845 = vmatpush2.msra.mxu0 0.0
    %3846 = vmatprep.mubr.f32.mxu0 0.0
    %3847 = vmatmul.mubr.f32.gmra.mxu0 %v3780
    %v3848 = vpop.f32.mrf.mxu0
    %v3849 = vadd.f32 0.0, %v3848
    %v3850 = vpop.f32.mrf.mxu0
    %v3851 = vadd.f32 0.0, %v3850
    %3852 = vdwg.mxu0
    %v3853 = vadd.f32 %v3693, %v3849
    %v3854 = vadd.f32 %v3694, %v3851
    %s3855 = scalar_lea.vmem %s8, 22
    %v3856 = vld [vmem:[%s3855] sm:$0x3]
    %v3858 = vsel %vm980, %v3856, 0
    %3860 = vmatprep.subr.mxu0 0.0
    %3861 = vmatpush1.msra.mxu0 0.0
    %3862 = vmatprep.subr.mxu0 0.0
    %3863 = vmatpush1.msra.mxu0 0.0
    %3864 = vmatprep.subr.mxu0 0.0
    %3865 = vmatpush1.msra.mxu0 0.0
    %3866 = vmatprep.subr.mxu0 0.0
    %3867 = vmatpush1.msra.mxu0 0.0
    %3868 = vmatprep.subr.mxu0 0.0
    %3869 = vmatpush1.msra.mxu0 0.0
    %3870 = vmatprep.subr.mxu0 0.0
    %3871 = vmatpush1.msra.mxu0 0.0
    %3872 = vmatprep.subr.mxu0 0.0
    %3873 = vmatpush1.msra.mxu0 0.0
    %3874 = vmatprep.subr.mxu0 0.0
    %3875 = vmatpush1.msra.mxu0 0.0
    %3876 = vmatprep.subr.mxu0 0.0
    %3877 = vmatpush1.msra.mxu0 0.0
    %3878 = vmatprep.subr.mxu0 0.0
    %3879 = vmatpush1.msra.mxu0 0.0
    %3880 = vmatprep.subr.mxu0 0.0
    %3881 = vmatpush1.msra.mxu0 0.0
    %3882 = vmatprep.subr.mxu0 0.0
    %3883 = vmatpush1.msra.mxu0 0.0
    %3884 = vmatprep.subr.mxu0 0.0
    %3885 = vmatpush1.msra.mxu0 %v2100
    %3886 = vmatprep.subr.mxu0 0.0
    %3887 = vmatpush1.msra.mxu0 %v2099
    %3888 = vmatprep.subr.mxu0 0.0
    %3889 = vmatpush1.msra.mxu0 %v2098
    %3890 = vmatprep.subr.mxu0 0.0
    %3891 = vmatpush1.msra.mxu0 %v2097
    %3892 = vmatprep.subr.mxu0 0.0
    %3893 = vmatpush2.msra.mxu0 0.0
    %3894 = vmatprep.subr.mxu0 0.0
    %3895 = vmatpush2.msra.mxu0 0.0
    %3896 = vmatprep.subr.mxu0 0.0
    %3897 = vmatpush2.msra.mxu0 0.0
    %3898 = vmatprep.subr.mxu0 0.0
    %3899 = vmatpush2.msra.mxu0 0.0
    %3900 = vmatprep.subr.mxu0 0.0
    %3901 = vmatpush2.msra.mxu0 0.0
    %3902 = vmatprep.subr.mxu0 0.0
    %3903 = vmatpush2.msra.mxu0 0.0
    %3904 = vmatprep.subr.mxu0 0.0
    %3905 = vmatpush2.msra.mxu0 0.0
    %3906 = vmatprep.subr.mxu0 0.0
    %3907 = vmatpush2.msra.mxu0 0.0
    %3908 = vmatprep.subr.mxu0 0.0
    %3909 = vmatpush2.msra.mxu0 0.0
    %3910 = vmatprep.subr.mxu0 0.0
    %3911 = vmatpush2.msra.mxu0 0.0
    %3912 = vmatprep.subr.mxu0 0.0
    %3913 = vmatpush2.msra.mxu0 0.0
    %3914 = vmatprep.subr.mxu0 0.0
    %3915 = vmatpush2.msra.mxu0 0.0
    %3916 = vmatprep.subr.mxu0 0.0
    %3917 = vmatpush2.msra.mxu0 0.0
    %3918 = vmatprep.subr.mxu0 0.0
    %3919 = vmatpush2.msra.mxu0 0.0
    %3920 = vmatprep.subr.mxu0 0.0
    %3921 = vmatpush2.msra.mxu0 0.0
    %3922 = vmatprep.subr.mxu0 0.0
    %3923 = vmatpush2.msra.mxu0 0.0
    %3924 = vmatprep.mubr.f32.mxu0 0.0
    %3925 = vmatmul.mubr.f32.gmra.mxu0 %v3858
    %v3926 = vpop.f32.mrf.mxu0
    %v3927 = vadd.f32 0.0, %v3926
    %v3928 = vpop.f32.mrf.mxu0
    %3929 = vdwg.mxu0
    %s3930 = scalar_lea.vmem [#allocation2], 704
    %v3931 = vld [vmem:[%s3930] sm:$0xff]
    %v3932 = vld [vmem:[%s3930 + $0x8] sm:$0xff]
    %v3933 = vld [vmem:[%s3930 + $0x10] sm:$0xff]
    %v3934 = vld [vmem:[%s3930 + $0x18] sm:$0xff]
    %v3935 = vld [vmem:[%s3930 + $0x20] sm:$0xff]
    %v3936 = vld [vmem:[%s3930 + $0x28] sm:$0xff]
    %v3937 = vld [vmem:[%s3930 + $0x30] sm:$0xff]
    %v3938 = vld [vmem:[%s3930 + $0x38] sm:$0xff]
    %v3940 = vsel %vm980, %v3927, 0
    %3942 = vmatprep.subr.mxu0 0.0
    %3943 = vmatpush1.msra.mxu0 0.0
    %3944 = vmatprep.subr.mxu0 0.0
    %3945 = vmatpush1.msra.mxu0 0.0
    %3946 = vmatprep.subr.mxu0 0.0
    %3947 = vmatpush1.msra.mxu0 0.0
    %3948 = vmatprep.subr.mxu0 0.0
    %3949 = vmatpush1.msra.mxu0 0.0
    %3950 = vmatprep.subr.mxu0 0.0
    %3951 = vmatpush1.msra.mxu0 0.0
    %3952 = vmatprep.subr.mxu0 0.0
    %3953 = vmatpush1.msra.mxu0 0.0
    %3954 = vmatprep.subr.mxu0 0.0
    %3955 = vmatpush1.msra.mxu0 0.0
    %3956 = vmatprep.subr.mxu0 0.0
    %3957 = vmatpush1.msra.mxu0 0.0
    %3958 = vmatprep.subr.mxu0 0.0
    %3959 = vmatpush1.msra.mxu0 0.0
    %3960 = vmatprep.subr.mxu0 0.0
    %3961 = vmatpush1.msra.mxu0 0.0
    %3962 = vmatprep.subr.mxu0 0.0
    %3963 = vmatpush1.msra.mxu0 0.0
    %3964 = vmatprep.subr.mxu0 0.0
    %3965 = vmatpush1.msra.mxu0 0.0
    %3966 = vmatprep.subr.mxu0 %v3938
    %3967 = vmatpush1.msra.mxu0 %v3937
    %3968 = vmatprep.subr.mxu0 %v3936
    %3969 = vmatpush1.msra.mxu0 %v3935
    %3970 = vmatprep.subr.mxu0 %v3934
    %3971 = vmatpush1.msra.mxu0 %v3933
    %3972 = vmatprep.subr.mxu0 %v3932
    %3973 = vmatpush1.msra.mxu0 %v3931
    %3974 = vmatprep.subr.mxu0 0.0
    %3975 = vmatpush2.msra.mxu0 0.0
    %3976 = vmatprep.subr.mxu0 0.0
    %3977 = vmatpush2.msra.mxu0 0.0
    %3978 = vmatprep.subr.mxu0 0.0
    %3979 = vmatpush2.msra.mxu0 0.0
    %3980 = vmatprep.subr.mxu0 0.0
    %3981 = vmatpush2.msra.mxu0 0.0
    %3982 = vmatprep.subr.mxu0 0.0
    %3983 = vmatpush2.msra.mxu0 0.0
    %3984 = vmatprep.subr.mxu0 0.0
    %3985 = vmatpush2.msra.mxu0 0.0
    %3986 = vmatprep.subr.mxu0 0.0
    %3987 = vmatpush2.msra.mxu0 0.0
    %3988 = vmatprep.subr.mxu0 0.0
    %3989 = vmatpush2.msra.mxu0 0.0
    %3990 = vmatprep.subr.mxu0 0.0
    %3991 = vmatpush2.msra.mxu0 0.0
    %3992 = vmatprep.subr.mxu0 0.0
    %3993 = vmatpush2.msra.mxu0 0.0
    %3994 = vmatprep.subr.mxu0 0.0
    %3995 = vmatpush2.msra.mxu0 0.0
    %3996 = vmatprep.subr.mxu0 0.0
    %3997 = vmatpush2.msra.mxu0 0.0
    %3998 = vmatprep.subr.mxu0 0.0
    %3999 = vmatpush2.msra.mxu0 0.0
    %4000 = vmatprep.subr.mxu0 0.0
    %4001 = vmatpush2.msra.mxu0 0.0
    %4002 = vmatprep.subr.mxu0 0.0
    %4003 = vmatpush2.msra.mxu0 0.0
    %4004 = vmatprep.subr.mxu0 0.0
    %4005 = vmatpush2.msra.mxu0 0.0
    %4006 = vmatprep.mubr.f32.mxu0 0.0
    %4007 = vmatmul.mubr.f32.gmra.mxu0 %v3940
    %v4008 = vpop.f32.mrf.mxu0
    %v4009 = vadd.f32 0.0, %v4008
    %v4010 = vpop.f32.mrf.mxu0
    %v4011 = vadd.f32 0.0, %v4010
    %4012 = vdwg.mxu0
    %v4013 = vadd.f32 %v3853, %v4009
    %v4014 = vadd.f32 %v3854, %v4011
    %s4015 = scalar_lea.vmem %s8, 24
    %v4016 = vld [vmem:[%s4015] sm:$0x3]
    %v4018 = vsel %vm980, %v4016, 0
    %4020 = vmatprep.subr.mxu0 0.0
    %4021 = vmatpush1.msra.mxu0 0.0
    %4022 = vmatprep.subr.mxu0 0.0
    %4023 = vmatpush1.msra.mxu0 0.0
    %4024 = vmatprep.subr.mxu0 0.0
    %4025 = vmatpush1.msra.mxu0 0.0
    %4026 = vmatprep.subr.mxu0 0.0
    %4027 = vmatpush1.msra.mxu0 0.0
    %4028 = vmatprep.subr.mxu0 0.0
    %4029 = vmatpush1.msra.mxu0 0.0
    %4030 = vmatprep.subr.mxu0 0.0
    %4031 = vmatpush1.msra.mxu0 0.0
    %4032 = vmatprep.subr.mxu0 0.0
    %4033 = vmatpush1.msra.mxu0 0.0
    %4034 = vmatprep.subr.mxu0 0.0
    %4035 = vmatpush1.msra.mxu0 0.0
    %4036 = vmatprep.subr.mxu0 0.0
    %4037 = vmatpush1.msra.mxu0 0.0
    %4038 = vmatprep.subr.mxu0 0.0
    %4039 = vmatpush1.msra.mxu0 0.0
    %4040 = vmatprep.subr.mxu0 0.0
    %4041 = vmatpush1.msra.mxu0 0.0
    %4042 = vmatprep.subr.mxu0 0.0
    %4043 = vmatpush1.msra.mxu0 0.0
    %4044 = vmatprep.subr.mxu0 0.0
    %4045 = vmatpush1.msra.mxu0 %v2100
    %4046 = vmatprep.subr.mxu0 0.0
    %4047 = vmatpush1.msra.mxu0 %v2099
    %4048 = vmatprep.subr.mxu0 0.0
    %4049 = vmatpush1.msra.mxu0 %v2098
    %4050 = vmatprep.subr.mxu0 0.0
    %4051 = vmatpush1.msra.mxu0 %v2097
    %4052 = vmatprep.subr.mxu0 0.0
    %4053 = vmatpush2.msra.mxu0 0.0
    %4054 = vmatprep.subr.mxu0 0.0
    %4055 = vmatpush2.msra.mxu0 0.0
    %4056 = vmatprep.subr.mxu0 0.0
    %4057 = vmatpush2.msra.mxu0 0.0
    %4058 = vmatprep.subr.mxu0 0.0
    %4059 = vmatpush2.msra.mxu0 0.0
    %4060 = vmatprep.subr.mxu0 0.0
    %4061 = vmatpush2.msra.mxu0 0.0
    %4062 = vmatprep.subr.mxu0 0.0
    %4063 = vmatpush2.msra.mxu0 0.0
    %4064 = vmatprep.subr.mxu0 0.0
    %4065 = vmatpush2.msra.mxu0 0.0
    %4066 = vmatprep.subr.mxu0 0.0
    %4067 = vmatpush2.msra.mxu0 0.0
    %4068 = vmatprep.subr.mxu0 0.0
    %4069 = vmatpush2.msra.mxu0 0.0
    %4070 = vmatprep.subr.mxu0 0.0
    %4071 = vmatpush2.msra.mxu0 0.0
    %4072 = vmatprep.subr.mxu0 0.0
    %4073 = vmatpush2.msra.mxu0 0.0
    %4074 = vmatprep.subr.mxu0 0.0
    %4075 = vmatpush2.msra.mxu0 0.0
    %4076 = vmatprep.subr.mxu0 0.0
    %4077 = vmatpush2.msra.mxu0 0.0
    %4078 = vmatprep.subr.mxu0 0.0
    %4079 = vmatpush2.msra.mxu0 0.0
    %4080 = vmatprep.subr.mxu0 0.0
    %4081 = vmatpush2.msra.mxu0 0.0
    %4082 = vmatprep.subr.mxu0 0.0
    %4083 = vmatpush2.msra.mxu0 0.0
    %4084 = vmatprep.mubr.f32.mxu0 0.0
    %4085 = vmatmul.mubr.f32.gmra.mxu0 %v4018
    %v4086 = vpop.f32.mrf.mxu0
    %v4087 = vadd.f32 0.0, %v4086
    %v4088 = vpop.f32.mrf.mxu0
    %4089 = vdwg.mxu0
    %s4090 = scalar_lea.vmem [#allocation2], 768
    %v4091 = vld [vmem:[%s4090] sm:$0xff]
    %v4092 = vld [vmem:[%s4090 + $0x8] sm:$0xff]
    %v4093 = vld [vmem:[%s4090 + $0x10] sm:$0xff]
    %v4094 = vld [vmem:[%s4090 + $0x18] sm:$0xff]
    %v4095 = vld [vmem:[%s4090 + $0x20] sm:$0xff]
    %v4096 = vld [vmem:[%s4090 + $0x28] sm:$0xff]
    %v4097 = vld [vmem:[%s4090 + $0x30] sm:$0xff]
    %v4098 = vld [vmem:[%s4090 + $0x38] sm:$0xff]
    %v4100 = vsel %vm980, %v4087, 0
    %4102 = vmatprep.subr.mxu0 0.0
    %4103 = vmatpush1.msra.mxu0 0.0
    %4104 = vmatprep.subr.mxu0 0.0
    %4105 = vmatpush1.msra.mxu0 0.0
    %4106 = vmatprep.subr.mxu0 0.0
    %4107 = vmatpush1.msra.mxu0 0.0
    %4108 = vmatprep.subr.mxu0 0.0
    %4109 = vmatpush1.msra.mxu0 0.0
    %4110 = vmatprep.subr.mxu0 0.0
    %4111 = vmatpush1.msra.mxu0 0.0
    %4112 = vmatprep.subr.mxu0 0.0
    %4113 = vmatpush1.msra.mxu0 0.0
    %4114 = vmatprep.subr.mxu0 0.0
    %4115 = vmatpush1.msra.mxu0 0.0
    %4116 = vmatprep.subr.mxu0 0.0
    %4117 = vmatpush1.msra.mxu0 0.0
    %4118 = vmatprep.subr.mxu0 0.0
    %4119 = vmatpush1.msra.mxu0 0.0
    %4120 = vmatprep.subr.mxu0 0.0
    %4121 = vmatpush1.msra.mxu0 0.0
    %4122 = vmatprep.subr.mxu0 0.0
    %4123 = vmatpush1.msra.mxu0 0.0
    %4124 = vmatprep.subr.mxu0 0.0
    %4125 = vmatpush1.msra.mxu0 0.0
    %4126 = vmatprep.subr.mxu0 %v4098
    %4127 = vmatpush1.msra.mxu0 %v4097
    %4128 = vmatprep.subr.mxu0 %v4096
    %4129 = vmatpush1.msra.mxu0 %v4095
    %4130 = vmatprep.subr.mxu0 %v4094
    %4131 = vmatpush1.msra.mxu0 %v4093
    %4132 = vmatprep.subr.mxu0 %v4092
    %4133 = vmatpush1.msra.mxu0 %v4091
    %4134 = vmatprep.subr.mxu0 0.0
    %4135 = vmatpush2.msra.mxu0 0.0
    %4136 = vmatprep.subr.mxu0 0.0
    %4137 = vmatpush2.msra.mxu0 0.0
    %4138 = vmatprep.subr.mxu0 0.0
    %4139 = vmatpush2.msra.mxu0 0.0
    %4140 = vmatprep.subr.mxu0 0.0
    %4141 = vmatpush2.msra.mxu0 0.0
    %4142 = vmatprep.subr.mxu0 0.0
    %4143 = vmatpush2.msra.mxu0 0.0
    %4144 = vmatprep.subr.mxu0 0.0
    %4145 = vmatpush2.msra.mxu0 0.0
    %4146 = vmatprep.subr.mxu0 0.0
    %4147 = vmatpush2.msra.mxu0 0.0
    %4148 = vmatprep.subr.mxu0 0.0
    %4149 = vmatpush2.msra.mxu0 0.0
    %4150 = vmatprep.subr.mxu0 0.0
    %4151 = vmatpush2.msra.mxu0 0.0
    %4152 = vmatprep.subr.mxu0 0.0
    %4153 = vmatpush2.msra.mxu0 0.0
    %4154 = vmatprep.subr.mxu0 0.0
    %4155 = vmatpush2.msra.mxu0 0.0
    %4156 = vmatprep.subr.mxu0 0.0
    %4157 = vmatpush2.msra.mxu0 0.0
    %4158 = vmatprep.subr.mxu0 0.0
    %4159 = vmatpush2.msra.mxu0 0.0
    %4160 = vmatprep.subr.mxu0 0.0
    %4161 = vmatpush2.msra.mxu0 0.0
    %4162 = vmatprep.subr.mxu0 0.0
    %4163 = vmatpush2.msra.mxu0 0.0
    %4164 = vmatprep.subr.mxu0 0.0
    %4165 = vmatpush2.msra.mxu0 0.0
    %4166 = vmatprep.mubr.f32.mxu0 0.0
    %4167 = vmatmul.mubr.f32.gmra.mxu0 %v4100
    %v4168 = vpop.f32.mrf.mxu0
    %v4169 = vadd.f32 0.0, %v4168
    %v4170 = vpop.f32.mrf.mxu0
    %v4171 = vadd.f32 0.0, %v4170
    %4172 = vdwg.mxu0
    %v4173 = vadd.f32 %v4013, %v4169
    %v4174 = vadd.f32 %v4014, %v4171
    %s4175 = scalar_lea.vmem %s8, 26
    %v4176 = vld [vmem:[%s4175] sm:$0x3]
    %v4178 = vsel %vm980, %v4176, 0
    %4180 = vmatprep.subr.mxu0 0.0
    %4181 = vmatpush1.msra.mxu0 0.0
    %4182 = vmatprep.subr.mxu0 0.0
    %4183 = vmatpush1.msra.mxu0 0.0
    %4184 = vmatprep.subr.mxu0 0.0
    %4185 = vmatpush1.msra.mxu0 0.0
    %4186 = vmatprep.subr.mxu0 0.0
    %4187 = vmatpush1.msra.mxu0 0.0
    %4188 = vmatprep.subr.mxu0 0.0
    %4189 = vmatpush1.msra.mxu0 0.0
    %4190 = vmatprep.subr.mxu0 0.0
    %4191 = vmatpush1.msra.mxu0 0.0
    %4192 = vmatprep.subr.mxu0 0.0
    %4193 = vmatpush1.msra.mxu0 0.0
    %4194 = vmatprep.subr.mxu0 0.0
    %4195 = vmatpush1.msra.mxu0 0.0
    %4196 = vmatprep.subr.mxu0 0.0
    %4197 = vmatpush1.msra.mxu0 0.0
    %4198 = vmatprep.subr.mxu0 0.0
    %4199 = vmatpush1.msra.mxu0 0.0
    %4200 = vmatprep.subr.mxu0 0.0
    %4201 = vmatpush1.msra.mxu0 0.0
    %4202 = vmatprep.subr.mxu0 0.0
    %4203 = vmatpush1.msra.mxu0 0.0
    %4204 = vmatprep.subr.mxu0 0.0
    %4205 = vmatpush1.msra.mxu0 %v2100
    %4206 = vmatprep.subr.mxu0 0.0
    %4207 = vmatpush1.msra.mxu0 %v2099
    %4208 = vmatprep.subr.mxu0 0.0
    %4209 = vmatpush1.msra.mxu0 %v2098
    %4210 = vmatprep.subr.mxu0 0.0
    %4211 = vmatpush1.msra.mxu0 %v2097
    %4212 = vmatprep.subr.mxu0 0.0
    %4213 = vmatpush2.msra.mxu0 0.0
    %4214 = vmatprep.subr.mxu0 0.0
    %4215 = vmatpush2.msra.mxu0 0.0
    %4216 = vmatprep.subr.mxu0 0.0
    %4217 = vmatpush2.msra.mxu0 0.0
    %4218 = vmatprep.subr.mxu0 0.0
    %4219 = vmatpush2.msra.mxu0 0.0
    %4220 = vmatprep.subr.mxu0 0.0
    %4221 = vmatpush2.msra.mxu0 0.0
    %4222 = vmatprep.subr.mxu0 0.0
    %4223 = vmatpush2.msra.mxu0 0.0
    %4224 = vmatprep.subr.mxu0 0.0
    %4225 = vmatpush2.msra.mxu0 0.0
    %4226 = vmatprep.subr.mxu0 0.0
    %4227 = vmatpush2.msra.mxu0 0.0
    %4228 = vmatprep.subr.mxu0 0.0
    %4229 = vmatpush2.msra.mxu0 0.0
    %4230 = vmatprep.subr.mxu0 0.0
    %4231 = vmatpush2.msra.mxu0 0.0
    %4232 = vmatprep.subr.mxu0 0.0
    %4233 = vmatpush2.msra.mxu0 0.0
    %4234 = vmatprep.subr.mxu0 0.0
    %4235 = vmatpush2.msra.mxu0 0.0
    %4236 = vmatprep.subr.mxu0 0.0
    %4237 = vmatpush2.msra.mxu0 0.0
    %4238 = vmatprep.subr.mxu0 0.0
    %4239 = vmatpush2.msra.mxu0 0.0
    %4240 = vmatprep.subr.mxu0 0.0
    %4241 = vmatpush2.msra.mxu0 0.0
    %4242 = vmatprep.subr.mxu0 0.0
    %4243 = vmatpush2.msra.mxu0 0.0
    %4244 = vmatprep.mubr.f32.mxu0 0.0
    %4245 = vmatmul.mubr.f32.gmra.mxu0 %v4178
    %v4246 = vpop.f32.mrf.mxu0
    %v4247 = vadd.f32 0.0, %v4246
    %v4248 = vpop.f32.mrf.mxu0
    %4249 = vdwg.mxu0
    %s4250 = scalar_lea.vmem [#allocation2], 832
    %v4251 = vld [vmem:[%s4250] sm:$0xff]
    %v4252 = vld [vmem:[%s4250 + $0x8] sm:$0xff]
    %v4253 = vld [vmem:[%s4250 + $0x10] sm:$0xff]
    %v4254 = vld [vmem:[%s4250 + $0x18] sm:$0xff]
    %v4255 = vld [vmem:[%s4250 + $0x20] sm:$0xff]
    %v4256 = vld [vmem:[%s4250 + $0x28] sm:$0xff]
    %v4257 = vld [vmem:[%s4250 + $0x30] sm:$0xff]
    %v4258 = vld [vmem:[%s4250 + $0x38] sm:$0xff]
    %v4260 = vsel %vm980, %v4247, 0
    %4262 = vmatprep.subr.mxu0 0.0
    %4263 = vmatpush1.msra.mxu0 0.0
    %4264 = vmatprep.subr.mxu0 0.0
    %4265 = vmatpush1.msra.mxu0 0.0
    %4266 = vmatprep.subr.mxu0 0.0
    %4267 = vmatpush1.msra.mxu0 0.0
    %4268 = vmatprep.subr.mxu0 0.0
    %4269 = vmatpush1.msra.mxu0 0.0
    %4270 = vmatprep.subr.mxu0 0.0
    %4271 = vmatpush1.msra.mxu0 0.0
    %4272 = vmatprep.subr.mxu0 0.0
    %4273 = vmatpush1.msra.mxu0 0.0
    %4274 = vmatprep.subr.mxu0 0.0
    %4275 = vmatpush1.msra.mxu0 0.0
    %4276 = vmatprep.subr.mxu0 0.0
    %4277 = vmatpush1.msra.mxu0 0.0
    %4278 = vmatprep.subr.mxu0 0.0
    %4279 = vmatpush1.msra.mxu0 0.0
    %4280 = vmatprep.subr.mxu0 0.0
    %4281 = vmatpush1.msra.mxu0 0.0
    %4282 = vmatprep.subr.mxu0 0.0
    %4283 = vmatpush1.msra.mxu0 0.0
    %4284 = vmatprep.subr.mxu0 0.0
    %4285 = vmatpush1.msra.mxu0 0.0
    %4286 = vmatprep.subr.mxu0 %v4258
    %4287 = vmatpush1.msra.mxu0 %v4257
    %4288 = vmatprep.subr.mxu0 %v4256
    %4289 = vmatpush1.msra.mxu0 %v4255
    %4290 = vmatprep.subr.mxu0 %v4254
    %4291 = vmatpush1.msra.mxu0 %v4253
    %4292 = vmatprep.subr.mxu0 %v4252
    %4293 = vmatpush1.msra.mxu0 %v4251
    %4294 = vmatprep.subr.mxu0 0.0
    %4295 = vmatpush2.msra.mxu0 0.0
    %4296 = vmatprep.subr.mxu0 0.0
    %4297 = vmatpush2.msra.mxu0 0.0
    %4298 = vmatprep.subr.mxu0 0.0
    %4299 = vmatpush2.msra.mxu0 0.0
    %4300 = vmatprep.subr.mxu0 0.0
    %4301 = vmatpush2.msra.mxu0 0.0
    %4302 = vmatprep.subr.mxu0 0.0
    %4303 = vmatpush2.msra.mxu0 0.0
    %4304 = vmatprep.subr.mxu0 0.0
    %4305 = vmatpush2.msra.mxu0 0.0
    %4306 = vmatprep.subr.mxu0 0.0
    %4307 = vmatpush2.msra.mxu0 0.0
    %4308 = vmatprep.subr.mxu0 0.0
    %4309 = vmatpush2.msra.mxu0 0.0
    %4310 = vmatprep.subr.mxu0 0.0
    %4311 = vmatpush2.msra.mxu0 0.0
    %4312 = vmatprep.subr.mxu0 0.0
    %4313 = vmatpush2.msra.mxu0 0.0
    %4314 = vmatprep.subr.mxu0 0.0
    %4315 = vmatpush2.msra.mxu0 0.0
    %4316 = vmatprep.subr.mxu0 0.0
    %4317 = vmatpush2.msra.mxu0 0.0
    %4318 = vmatprep.subr.mxu0 0.0
    %4319 = vmatpush2.msra.mxu0 0.0
    %4320 = vmatprep.subr.mxu0 0.0
    %4321 = vmatpush2.msra.mxu0 0.0
    %4322 = vmatprep.subr.mxu0 0.0
    %4323 = vmatpush2.msra.mxu0 0.0
    %4324 = vmatprep.subr.mxu0 0.0
    %4325 = vmatpush2.msra.mxu0 0.0
    %4326 = vmatprep.mubr.f32.mxu0 0.0
    %4327 = vmatmul.mubr.f32.gmra.mxu0 %v4260
    %v4328 = vpop.f32.mrf.mxu0
    %v4329 = vadd.f32 0.0, %v4328
    %v4330 = vpop.f32.mrf.mxu0
    %v4331 = vadd.f32 0.0, %v4330
    %4332 = vdwg.mxu0
    %v4333 = vadd.f32 %v4173, %v4329
    %v4334 = vadd.f32 %v4174, %v4331
    %s4335 = scalar_lea.vmem %s8, 28
    %v4336 = vld [vmem:[%s4335] sm:$0x3]
    %v4338 = vsel %vm980, %v4336, 0
    %4340 = vmatprep.subr.mxu0 0.0
    %4341 = vmatpush1.msra.mxu0 0.0
    %4342 = vmatprep.subr.mxu0 0.0
    %4343 = vmatpush1.msra.mxu0 0.0
    %4344 = vmatprep.subr.mxu0 0.0
    %4345 = vmatpush1.msra.mxu0 0.0
    %4346 = vmatprep.subr.mxu0 0.0
    %4347 = vmatpush1.msra.mxu0 0.0
    %4348 = vmatprep.subr.mxu0 0.0
    %4349 = vmatpush1.msra.mxu0 0.0
    %4350 = vmatprep.subr.mxu0 0.0
    %4351 = vmatpush1.msra.mxu0 0.0
    %4352 = vmatprep.subr.mxu0 0.0
    %4353 = vmatpush1.msra.mxu0 0.0
    %4354 = vmatprep.subr.mxu0 0.0
    %4355 = vmatpush1.msra.mxu0 0.0
    %4356 = vmatprep.subr.mxu0 0.0
    %4357 = vmatpush1.msra.mxu0 0.0
    %4358 = vmatprep.subr.mxu0 0.0
    %4359 = vmatpush1.msra.mxu0 0.0
    %4360 = vmatprep.subr.mxu0 0.0
    %4361 = vmatpush1.msra.mxu0 0.0
    %4362 = vmatprep.subr.mxu0 0.0
    %4363 = vmatpush1.msra.mxu0 0.0
    %4364 = vmatprep.subr.mxu0 0.0
    %4365 = vmatpush1.msra.mxu0 %v2100
    %4366 = vmatprep.subr.mxu0 0.0
    %4367 = vmatpush1.msra.mxu0 %v2099
    %4368 = vmatprep.subr.mxu0 0.0
    %4369 = vmatpush1.msra.mxu0 %v2098
    %4370 = vmatprep.subr.mxu0 0.0
    %4371 = vmatpush1.msra.mxu0 %v2097
    %4372 = vmatprep.subr.mxu0 0.0
    %4373 = vmatpush2.msra.mxu0 0.0
    %4374 = vmatprep.subr.mxu0 0.0
    %4375 = vmatpush2.msra.mxu0 0.0
    %4376 = vmatprep.subr.mxu0 0.0
    %4377 = vmatpush2.msra.mxu0 0.0
    %4378 = vmatprep.subr.mxu0 0.0
    %4379 = vmatpush2.msra.mxu0 0.0
    %4380 = vmatprep.subr.mxu0 0.0
    %4381 = vmatpush2.msra.mxu0 0.0
    %4382 = vmatprep.subr.mxu0 0.0
    %4383 = vmatpush2.msra.mxu0 0.0
    %4384 = vmatprep.subr.mxu0 0.0
    %4385 = vmatpush2.msra.mxu0 0.0
    %4386 = vmatprep.subr.mxu0 0.0
    %4387 = vmatpush2.msra.mxu0 0.0
    %4388 = vmatprep.subr.mxu0 0.0
    %4389 = vmatpush2.msra.mxu0 0.0
    %4390 = vmatprep.subr.mxu0 0.0
    %4391 = vmatpush2.msra.mxu0 0.0
    %4392 = vmatprep.subr.mxu0 0.0
    %4393 = vmatpush2.msra.mxu0 0.0
    %4394 = vmatprep.subr.mxu0 0.0
    %4395 = vmatpush2.msra.mxu0 0.0
    %4396 = vmatprep.subr.mxu0 0.0
    %4397 = vmatpush2.msra.mxu0 0.0
    %4398 = vmatprep.subr.mxu0 0.0
    %4399 = vmatpush2.msra.mxu0 0.0
    %4400 = vmatprep.subr.mxu0 0.0
    %4401 = vmatpush2.msra.mxu0 0.0
    %4402 = vmatprep.subr.mxu0 0.0
    %4403 = vmatpush2.msra.mxu0 0.0
    %4404 = vmatprep.mubr.f32.mxu0 0.0
    %4405 = vmatmul.mubr.f32.gmra.mxu0 %v4338
    %v4406 = vpop.f32.mrf.mxu0
    %v4407 = vadd.f32 0.0, %v4406
    %v4408 = vpop.f32.mrf.mxu0
    %4409 = vdwg.mxu0
    %s4410 = scalar_lea.vmem [#allocation2], 896
    %v4411 = vld [vmem:[%s4410] sm:$0xff]
    %v4412 = vld [vmem:[%s4410 + $0x8] sm:$0xff]
    %v4413 = vld [vmem:[%s4410 + $0x10] sm:$0xff]
    %v4414 = vld [vmem:[%s4410 + $0x18] sm:$0xff]
    %v4415 = vld [vmem:[%s4410 + $0x20] sm:$0xff]
    %v4416 = vld [vmem:[%s4410 + $0x28] sm:$0xff]
    %v4417 = vld [vmem:[%s4410 + $0x30] sm:$0xff]
    %v4418 = vld [vmem:[%s4410 + $0x38] sm:$0xff]
    %v4420 = vsel %vm980, %v4407, 0
    %4422 = vmatprep.subr.mxu0 0.0
    %4423 = vmatpush1.msra.mxu0 0.0
    %4424 = vmatprep.subr.mxu0 0.0
    %4425 = vmatpush1.msra.mxu0 0.0
    %4426 = vmatprep.subr.mxu0 0.0
    %4427 = vmatpush1.msra.mxu0 0.0
    %4428 = vmatprep.subr.mxu0 0.0
    %4429 = vmatpush1.msra.mxu0 0.0
    %4430 = vmatprep.subr.mxu0 0.0
    %4431 = vmatpush1.msra.mxu0 0.0
    %4432 = vmatprep.subr.mxu0 0.0
    %4433 = vmatpush1.msra.mxu0 0.0
    %4434 = vmatprep.subr.mxu0 0.0
    %4435 = vmatpush1.msra.mxu0 0.0
    %4436 = vmatprep.subr.mxu0 0.0
    %4437 = vmatpush1.msra.mxu0 0.0
    %4438 = vmatprep.subr.mxu0 0.0
    %4439 = vmatpush1.msra.mxu0 0.0
    %4440 = vmatprep.subr.mxu0 0.0
    %4441 = vmatpush1.msra.mxu0 0.0
    %4442 = vmatprep.subr.mxu0 0.0
    %4443 = vmatpush1.msra.mxu0 0.0
    %4444 = vmatprep.subr.mxu0 0.0
    %4445 = vmatpush1.msra.mxu0 0.0
    %4446 = vmatprep.subr.mxu0 %v4418
    %4447 = vmatpush1.msra.mxu0 %v4417
    %4448 = vmatprep.subr.mxu0 %v4416
    %4449 = vmatpush1.msra.mxu0 %v4415
    %4450 = vmatprep.subr.mxu0 %v4414
    %4451 = vmatpush1.msra.mxu0 %v4413
    %4452 = vmatprep.subr.mxu0 %v4412
    %4453 = vmatpush1.msra.mxu0 %v4411
    %4454 = vmatprep.subr.mxu0 0.0
    %4455 = vmatpush2.msra.mxu0 0.0
    %4456 = vmatprep.subr.mxu0 0.0
    %4457 = vmatpush2.msra.mxu0 0.0
    %4458 = vmatprep.subr.mxu0 0.0
    %4459 = vmatpush2.msra.mxu0 0.0
    %4460 = vmatprep.subr.mxu0 0.0
    %4461 = vmatpush2.msra.mxu0 0.0
    %4462 = vmatprep.subr.mxu0 0.0
    %4463 = vmatpush2.msra.mxu0 0.0
    %4464 = vmatprep.subr.mxu0 0.0
    %4465 = vmatpush2.msra.mxu0 0.0
    %4466 = vmatprep.subr.mxu0 0.0
    %4467 = vmatpush2.msra.mxu0 0.0
    %4468 = vmatprep.subr.mxu0 0.0
    %4469 = vmatpush2.msra.mxu0 0.0
    %4470 = vmatprep.subr.mxu0 0.0
    %4471 = vmatpush2.msra.mxu0 0.0
    %4472 = vmatprep.subr.mxu0 0.0
    %4473 = vmatpush2.msra.mxu0 0.0
    %4474 = vmatprep.subr.mxu0 0.0
    %4475 = vmatpush2.msra.mxu0 0.0
    %4476 = vmatprep.subr.mxu0 0.0
    %4477 = vmatpush2.msra.mxu0 0.0
    %4478 = vmatprep.subr.mxu0 0.0
    %4479 = vmatpush2.msra.mxu0 0.0
    %4480 = vmatprep.subr.mxu0 0.0
    %4481 = vmatpush2.msra.mxu0 0.0
    %4482 = vmatprep.subr.mxu0 0.0
    %4483 = vmatpush2.msra.mxu0 0.0
    %4484 = vmatprep.subr.mxu0 0.0
    %4485 = vmatpush2.msra.mxu0 0.0
    %4486 = vmatprep.mubr.f32.mxu0 0.0
    %4487 = vmatmul.mubr.f32.gmra.mxu0 %v4420
    %v4488 = vpop.f32.mrf.mxu0
    %v4489 = vadd.f32 0.0, %v4488
    %v4490 = vpop.f32.mrf.mxu0
    %v4491 = vadd.f32 0.0, %v4490
    %4492 = vdwg.mxu0
    %v4493 = vadd.f32 %v4333, %v4489
    %v4494 = vadd.f32 %v4334, %v4491
    %s4495 = scalar_lea.vmem %s8, 30
    %v4496 = vld [vmem:[%s4495] sm:$0x3]
    %v4498 = vsel %vm980, %v4496, 0
    %4500 = vmatprep.subr.mxu0 0.0
    %4501 = vmatpush1.msra.mxu0 0.0
    %4502 = vmatprep.subr.mxu0 0.0
    %4503 = vmatpush1.msra.mxu0 0.0
    %4504 = vmatprep.subr.mxu0 0.0
    %4505 = vmatpush1.msra.mxu0 0.0
    %4506 = vmatprep.subr.mxu0 0.0
    %4507 = vmatpush1.msra.mxu0 0.0
    %4508 = vmatprep.subr.mxu0 0.0
    %4509 = vmatpush1.msra.mxu0 0.0
    %4510 = vmatprep.subr.mxu0 0.0
    %4511 = vmatpush1.msra.mxu0 0.0
    %4512 = vmatprep.subr.mxu0 0.0
    %4513 = vmatpush1.msra.mxu0 0.0
    %4514 = vmatprep.subr.mxu0 0.0
    %4515 = vmatpush1.msra.mxu0 0.0
    %4516 = vmatprep.subr.mxu0 0.0
    %4517 = vmatpush1.msra.mxu0 0.0
    %4518 = vmatprep.subr.mxu0 0.0
    %4519 = vmatpush1.msra.mxu0 0.0
    %4520 = vmatprep.subr.mxu0 0.0
    %4521 = vmatpush1.msra.mxu0 0.0
    %4522 = vmatprep.subr.mxu0 0.0
    %4523 = vmatpush1.msra.mxu0 0.0
    %4524 = vmatprep.subr.mxu0 0.0
    %4525 = vmatpush1.msra.mxu0 %v2100
    %4526 = vmatprep.subr.mxu0 0.0
    %4527 = vmatpush1.msra.mxu0 %v2099
    %4528 = vmatprep.subr.mxu0 0.0
    %4529 = vmatpush1.msra.mxu0 %v2098
    %4530 = vmatprep.subr.mxu0 0.0
    %4531 = vmatpush1.msra.mxu0 %v2097
    %4532 = vmatprep.subr.mxu0 0.0
    %4533 = vmatpush2.msra.mxu0 0.0
    %4534 = vmatprep.subr.mxu0 0.0
    %4535 = vmatpush2.msra.mxu0 0.0
    %4536 = vmatprep.subr.mxu0 0.0
    %4537 = vmatpush2.msra.mxu0 0.0
    %4538 = vmatprep.subr.mxu0 0.0
    %4539 = vmatpush2.msra.mxu0 0.0
    %4540 = vmatprep.subr.mxu0 0.0
    %4541 = vmatpush2.msra.mxu0 0.0
    %4542 = vmatprep.subr.mxu0 0.0
    %4543 = vmatpush2.msra.mxu0 0.0
    %4544 = vmatprep.subr.mxu0 0.0
    %4545 = vmatpush2.msra.mxu0 0.0
    %4546 = vmatprep.subr.mxu0 0.0
    %4547 = vmatpush2.msra.mxu0 0.0
    %4548 = vmatprep.subr.mxu0 0.0
    %4549 = vmatpush2.msra.mxu0 0.0
    %4550 = vmatprep.subr.mxu0 0.0
    %4551 = vmatpush2.msra.mxu0 0.0
    %4552 = vmatprep.subr.mxu0 0.0
    %4553 = vmatpush2.msra.mxu0 0.0
    %4554 = vmatprep.subr.mxu0 0.0
    %4555 = vmatpush2.msra.mxu0 0.0
    %4556 = vmatprep.subr.mxu0 0.0
    %4557 = vmatpush2.msra.mxu0 0.0
    %4558 = vmatprep.subr.mxu0 0.0
    %4559 = vmatpush2.msra.mxu0 0.0
    %4560 = vmatprep.subr.mxu0 0.0
    %4561 = vmatpush2.msra.mxu0 0.0
    %4562 = vmatprep.subr.mxu0 0.0
    %4563 = vmatpush2.msra.mxu0 0.0
    %4564 = vmatprep.mubr.f32.mxu0 0.0
    %4565 = vmatmul.mubr.f32.gmra.mxu0 %v4498
    %v4566 = vpop.f32.mrf.mxu0
    %v4567 = vadd.f32 0.0, %v4566
    %v4568 = vpop.f32.mrf.mxu0
    %4569 = vdwg.mxu0
    %s4570 = scalar_lea.vmem [#allocation2], 960
    %v4571 = vld [vmem:[%s4570] sm:$0xff]
    %v4572 = vld [vmem:[%s4570 + $0x8] sm:$0xff]
    %v4573 = vld [vmem:[%s4570 + $0x10] sm:$0xff]
    %v4574 = vld [vmem:[%s4570 + $0x18] sm:$0xff]
    %v4575 = vld [vmem:[%s4570 + $0x20] sm:$0xff]
    %v4576 = vld [vmem:[%s4570 + $0x28] sm:$0xff]
    %v4577 = vld [vmem:[%s4570 + $0x30] sm:$0xff]
    %v4578 = vld [vmem:[%s4570 + $0x38] sm:$0xff]
    %v4580 = vsel %vm980, %v4567, 0
    %4582 = vmatprep.subr.mxu0 0.0
    %4583 = vmatpush1.msra.mxu0 0.0
    %4584 = vmatprep.subr.mxu0 0.0
    %4585 = vmatpush1.msra.mxu0 0.0
    %4586 = vmatprep.subr.mxu0 0.0
    %4587 = vmatpush1.msra.mxu0 0.0
    %4588 = vmatprep.subr.mxu0 0.0
    %4589 = vmatpush1.msra.mxu0 0.0
    %4590 = vmatprep.subr.mxu0 0.0
    %4591 = vmatpush1.msra.mxu0 0.0
    %4592 = vmatprep.subr.mxu0 0.0
    %4593 = vmatpush1.msra.mxu0 0.0
    %4594 = vmatprep.subr.mxu0 0.0
    %4595 = vmatpush1.msra.mxu0 0.0
    %4596 = vmatprep.subr.mxu0 0.0
    %4597 = vmatpush1.msra.mxu0 0.0
    %4598 = vmatprep.subr.mxu0 0.0
    %4599 = vmatpush1.msra.mxu0 0.0
    %4600 = vmatprep.subr.mxu0 0.0
    %4601 = vmatpush1.msra.mxu0 0.0
    %4602 = vmatprep.subr.mxu0 0.0
    %4603 = vmatpush1.msra.mxu0 0.0
    %4604 = vmatprep.subr.mxu0 0.0
    %4605 = vmatpush1.msra.mxu0 0.0
    %4606 = vmatprep.subr.mxu0 %v4578
    %4607 = vmatpush1.msra.mxu0 %v4577
    %4608 = vmatprep.subr.mxu0 %v4576
    %4609 = vmatpush1.msra.mxu0 %v4575
    %4610 = vmatprep.subr.mxu0 %v4574
    %4611 = vmatpush1.msra.mxu0 %v4573
    %4612 = vmatprep.subr.mxu0 %v4572
    %4613 = vmatpush1.msra.mxu0 %v4571
    %4614 = vmatprep.subr.mxu0 0.0
    %4615 = vmatpush2.msra.mxu0 0.0
    %4616 = vmatprep.subr.mxu0 0.0
    %4617 = vmatpush2.msra.mxu0 0.0
    %4618 = vmatprep.subr.mxu0 0.0
    %4619 = vmatpush2.msra.mxu0 0.0
    %4620 = vmatprep.subr.mxu0 0.0
    %4621 = vmatpush2.msra.mxu0 0.0
    %4622 = vmatprep.subr.mxu0 0.0
    %4623 = vmatpush2.msra.mxu0 0.0
    %4624 = vmatprep.subr.mxu0 0.0
    %4625 = vmatpush2.msra.mxu0 0.0
    %4626 = vmatprep.subr.mxu0 0.0
    %4627 = vmatpush2.msra.mxu0 0.0
    %4628 = vmatprep.subr.mxu0 0.0
    %4629 = vmatpush2.msra.mxu0 0.0
    %4630 = vmatprep.subr.mxu0 0.0
    %4631 = vmatpush2.msra.mxu0 0.0
    %4632 = vmatprep.subr.mxu0 0.0
    %4633 = vmatpush2.msra.mxu0 0.0
    %4634 = vmatprep.subr.mxu0 0.0
    %4635 = vmatpush2.msra.mxu0 0.0
    %4636 = vmatprep.subr.mxu0 0.0
    %4637 = vmatpush2.msra.mxu0 0.0
    %4638 = vmatprep.subr.mxu0 0.0
    %4639 = vmatpush2.msra.mxu0 0.0
    %4640 = vmatprep.subr.mxu0 0.0
    %4641 = vmatpush2.msra.mxu0 0.0
    %4642 = vmatprep.subr.mxu0 0.0
    %4643 = vmatpush2.msra.mxu0 0.0
    %4644 = vmatprep.subr.mxu0 0.0
    %4645 = vmatpush2.msra.mxu0 0.0
    %4646 = vmatprep.mubr.f32.mxu0 0.0
    %4647 = vmatmul.mubr.f32.gmra.mxu0 %v4580
    %v4648 = vpop.f32.mrf.mxu0
    %v4649 = vadd.f32 0.0, %v4648
    %v4650 = vpop.f32.mrf.mxu0
    %v4651 = vadd.f32 0.0, %v4650
    %4652 = vdwg.mxu0
    %v4653 = vadd.f32 %v4493, %v4649
    %v4654 = vadd.f32 %v4494, %v4651
    %v4657 = vcombine.low %v4653, %v4654
    %v4659 = vunpack.c.l.s4 1983009808
    %v4660 = vunpack.c.0.s8 %v4659
    %v4661 = vlaneseq
    %v4662 = vshrl.u32 %v4661, 7
    %v4663 = vsub.s32 %v4660, %v4662
    %v4664 = vrot.slane %v4657, %v4663
    %vm4666 = vcmask 1041408
    %vm4667 = vcmask 191490
    %vm4668 = vmor %vm4667, %vm4666
    %4669 = vst.msk [vmem:[%s10] sm:$0xf] %vm4668, %v4664
    // Predicated region
    $region46: #{run_model.1} parent=1 // pred_check
      _
    $region47: #{run_model.1} parent=1 // pred_check_branch
      %4671 = sbr.rel (0) target = $region49
    $region48: #{run_model.1} parent=1 // pred_region
      _
    $region49: #{run_model.1} parent=1 // pred_fallthru
      _
    // Predicated region
    $region50: #{run_model.1} parent=1 // pred_check
      _
    $region51: #{run_model.1} parent=1 // pred_check_branch
      %4673 = sbr.rel (0) target = $region53
    $region52: #{run_model.1} parent=1 // pred_region
      _
    $region53: #{run_model.1} parent=1 // pred_fallthru
      _
    %4674 = vsyncpa [#allocation3], 1

</llo_original>
